<compile_context>
chip_gen: v7x
topology: tpu7x:2x2x1
jax: 0.10.0
libtpu: 0.0.40
codegen_flags: <defaults>
</compile_context>

<pallas_src>
import functools

import numpy as np
import jax
import jax.numpy as jnp
from jax import lax
from jax.experimental import pallas as pl
from jax.experimental.pallas import tpu as pltpu


def _round_up(x, m):
    return ((x + m - 1) // m) * m


def _default_vmem_limit():
    """Scoped-VMEM cap derived from the chip's physical VMEM (with headroom).

    v5e/v6e have 128 MiB physical VMEM, v7x only 64 MiB, so derive it per chip
    instead of hard-coding.  Falls back to the compiler default if unavailable.
    """
    try:
        info = pltpu.get_tpu_info()
        cap = getattr(info, "vmem_capacity_bytes", None)
        if cap:
            return int(cap) * 3 // 4
    except Exception:
        pass
    return None


def _bilstm_kernel(TS, T, HP, BP,
                   len_ref, x_ref, wih_ref, whh_ref, b_ref,
                   out_ref, hfin_ref,
                   h_sc, c_sc, gin_sc):
    """Fused bidirectional LSTM: input projection + recurrence, one time block.

    grid = (2, T // TS): axis 0 = direction (0 fwd, 1 bwd, "parallel"),
                         axis 1 = time block ("arbitrary", sequential).

    len_ref : (BP, 1)        int32  sequence lengths (packed-sequence mask)
    x_ref   : (TS*BP, IN)    bf16   layer-input rows for this time block
    wih_ref : (IN, 4*HP)     bf16   input weights, resident per direction
    whh_ref : (HP, 4*HP)     bf16   recurrent weights, resident per direction
    b_ref   : (1, 4*HP)      f32    b_ih + b_hh
    out_ref : (TS*BP, HP)    bf16   hidden outputs (lane-dense half of 2*HP slab)
    hfin_ref: (BP, HP)       f32    final hidden state of this direction
    h_sc/c_sc: (BP, HP)      f32    recurrent state, persists across time blocks
    gin_sc  : (TS*BP, 4*HP)  f32    per-block input projection (VMEM only)
    """
    d = pl.program_id(0)            # direction: 0 = forward, 1 = backward
    tb = pl.program_id(1)           # time block
    num_tb = pl.num_programs(1)

    @pl.when(tb == 0)
    def _():
        h_sc[...] = jnp.zeros_like(h_sc)
        c_sc[...] = jnp.zeros_like(c_sc)

    # Per-block input projection: ONE (TS*BP, IN) x (IN, 4HP) bf16 GEMM with f32
    # accumulation.  Replaces the old per-layer (2, T, BP, 4HP) g_in HBM slab.
    gin_sc[...] = jnp.dot(x_ref[...], wih_ref[...],
                          preferred_element_type=jnp.float32) + b_ref[...]

    whh = whh_ref[...]                                     # (HP, 4HP) bf16
    # Hoisted mask broadcast: one lane-broadcast per block, reused every step.
    lens_b = jnp.broadcast_to(len_ref[...], (BP, HP))      # (BP, HP) int32

    def step(s, carry):
        h, c = carry                                       # (BP, HP) f32
        # row inside this block and global timestep, per direction
        li = s + d * (TS - 1 - 2 * s)                      # fwd: s      bwd: TS-1-s
        base = tb * TS + s
        t = base + d * (T - 1 - 2 * base)                  # fwd: base   bwd: T-1-base
        row = pl.multiple_of(li * BP, BP)

        # Only the recurrent matmul stays on the serial path (bf16, f32 acc).
        gates = gin_sc[pl.ds(row, BP), :] + jnp.dot(
            h.astype(jnp.bfloat16), whh, preferred_element_type=jnp.float32)

        # lane-aligned gate slices (each gate occupies its own HP-lane block)
        # TODO(synk): on v6e/v7x the sigmoid/tanh could run in bf16 (bf16 EUP)
        # for ~2x transcendental throughput; kept f32 for v5e portability.
        i_g = jax.nn.sigmoid(gates[:, 0 * HP:1 * HP])
        f_g = jax.nn.sigmoid(gates[:, 1 * HP:2 * HP])
        g_g = jnp.tanh(gates[:, 2 * HP:3 * HP])
        o_g = jax.nn.sigmoid(gates[:, 3 * HP:4 * HP])

        c_new = f_g * c + i_g * g_g
        h_new = o_g * jnp.tanh(c_new)

        mask = lens_b > t                                  # (BP, HP), reused 3x
        out_ref[pl.ds(row, BP), :] = jnp.where(mask, h_new, 0.0).astype(out_ref.dtype)
        return jnp.where(mask, h_new, h), jnp.where(mask, c_new, c)

    # TODO(synk): at production H (>=512) check the bundle dump for vreg spills
    # and drop to partial unroll if the fully unrolled body spills.
    h_fin, c_fin = lax.fori_loop(0, TS, step, (h_sc[...], c_sc[...]), unroll=True)
    h_sc[...] = h_fin
    c_sc[...] = c_fin

    @pl.when(tb == num_tb - 1)                             # write final h only once
    def _():
        hfin_ref[...] = h_fin.astype(hfin_ref.dtype)


@functools.lru_cache(maxsize=None)
def _build_bilstm_call(T, BP, HP, TS, IN):
    """Build (and cache) the fused bidirectional-LSTM pallas_call."""
    num_tb = T // TS

    def time_map(d, tb):                       # block index along time per direction
        return tb + d * (num_tb - 1 - 2 * tb)  # fwd: tb      bwd: num_tb-1-tb

    kernel = functools.partial(_bilstm_kernel, TS, T, HP, BP)

    cp_kwargs = dict(dimension_semantics=("parallel", "arbitrary"))
    vmem_limit = _default_vmem_limit()
    if vmem_limit is not None:
        cp_kwargs["vmem_limit_bytes"] = vmem_limit

    return pl.pallas_call(
        kernel,
        out_shape=(
            jax.ShapeDtypeStruct((T * BP, 2 * HP), jnp.bfloat16),   # concat slab
            jax.ShapeDtypeStruct((2, BP, HP), jnp.float32),         # final h / dir
        ),
        grid_spec=pltpu.PrefetchScalarGridSpec(
            num_scalar_prefetch=0,
            grid=(2, num_tb),                                       # (dir, time blk)
            in_specs=[
                pl.BlockSpec((BP, 1), lambda d, tb: (0, 0)),                # lengths
                pl.BlockSpec((TS * BP, IN),
                             lambda d, tb: (time_map(d, tb), 0)),           # x rows
                pl.BlockSpec((None, IN, 4 * HP), lambda d, tb: (d, 0, 0)),  # W_ih^T
                pl.BlockSpec((None, HP, 4 * HP), lambda d, tb: (d, 0, 0)),  # W_hh^T
                pl.BlockSpec((None, 1, 4 * HP), lambda d, tb: (d, 0, 0)),   # bias
            ],
            out_specs=[
                pl.BlockSpec((TS * BP, HP),
                             lambda d, tb: (time_map(d, tb), d)),           # out slab
                pl.BlockSpec((None, BP, HP), lambda d, tb: (d, 0, 0)),      # final h
            ],
            scratch_shapes=[
                pltpu.VMEM((BP, HP), jnp.float32),            # h state
                pltpu.VMEM((BP, HP), jnp.float32),            # c state
                pltpu.VMEM((TS * BP, 4 * HP), jnp.float32),   # block input projection
            ],
        ),
        compiler_params=pltpu.CompilerParams(**cp_kwargs),
    )


def bilstm_layer(x2, lengths2d, w_ih_t, w_hh_t, bias, *, T_pad, BP, HP, TS):
    """One bidirectional LSTM layer on the flattened (T_pad*BP, IN) bf16 slab."""
    IN = x2.shape[-1]
    return _build_bilstm_call(T_pad, BP, HP, TS, IN)(
        lengths2d, x2, w_ih_t, w_hh_t, bias)


class Encoder:
    """JAX/Pallas port of the PyTorch Encoder module (inference semantics)."""

    def __init__(self, input_size, embed_size, hidden_size, num_layers,
                 dropout_prob=0.2, time_block=16, key=jax.random.PRNGKey(0)):
        self.input_size = input_size
        self.embed_size = embed_size
        self.hidden_size = hidden_size
        self.num_layers = num_layers
        self.dropout_prob = dropout_prob       # identity at inference
        self.time_block = time_block

        H = hidden_size
        HP = _round_up(H, 128)                 # lane-aligned hidden width
        EP = _round_up(embed_size, 128)        # lane-aligned embedding width
        self.HP, self.EP = HP, EP

        keys = jax.random.split(key, 1 + 8 * num_layers)
        self.embedding = jax.random.normal(
            keys[0], (input_size, embed_size), dtype=jnp.float32)

        k = 1.0 / (hidden_size ** 0.5)
        kidx = 1
        self.layers = []        # per layer: (w_ih_t (2,IN,4HP) bf16, w_hh_t bf16, bias (2,1,4HP) f32)
        self._raw_layers = []   # unpadded NumPy copies, used by the reference check
        for layer in range(num_layers):
            in_sz = embed_size if layer == 0 else 2 * H
            in_pad = EP if layer == 0 else 2 * HP
            wih_dirs, whh_dirs, b_dirs, raw_dirs = [], [], [], []
            for _ in range(2):                 # forward, backward
                w_ih = jax.random.uniform(keys[kidx], (4 * H, in_sz),
                                          minval=-k, maxval=k); kidx += 1
                w_hh = jax.random.uniform(keys[kidx], (4 * H, H),
                                          minval=-k, maxval=k); kidx += 1
                b_ih = jax.random.uniform(keys[kidx], (4 * H,),
                                          minval=-k, maxval=k); kidx += 1
                b_hh = jax.random.uniform(keys[kidx], (4 * H,),
                                          minval=-k, maxval=k); kidx += 1
                b = b_ih + b_hh                # PyTorch adds both biases
                wih_dirs.append(self._pad_w_ih(w_ih, layer, H, HP, in_pad))
                whh_dirs.append(self._pad_w_hh(w_hh, H, HP))
                b_dirs.append(self._pad_gate_cols(b[None, :], H, HP))
                raw_dirs.append((np.asarray(w_ih), np.asarray(w_hh), np.asarray(b)))
            # bf16 weights: single-pass MXU + half the resident VMEM / HBM read.
            self.layers.append((jnp.stack(wih_dirs).astype(jnp.bfloat16),
                                jnp.stack(whh_dirs).astype(jnp.bfloat16),
                                jnp.stack(b_dirs).astype(jnp.float32)))
            self._raw_layers.append(tuple(raw_dirs))

        self._forward = jax.jit(self._device_forward, static_argnames=("max_len",))

    @staticmethod
    def _pad_gate_cols(w_t, H, HP):
        # (rows, 4H) -> (rows, 4*HP): gate g's columns land lane-aligned at g*HP.
        rows = w_t.shape[0]
        out = jnp.zeros((rows, 4 * HP), jnp.float32)
        for g in range(4):
            out = out.at[:, g * HP:g * HP + H].set(w_t[:, g * H:(g + 1) * H])
        return out

    def _pad_w_hh(self, w_hh, H, HP):
        w_t = self._pad_gate_cols(w_hh.T, H, HP)             # (H, 4HP)
        return jnp.zeros((HP, 4 * HP), jnp.float32).at[:H].set(w_t)

    def _pad_w_ih(self, w_ih, layer, H, HP, in_pad):
        w_t = self._pad_gate_cols(w_ih.T, H, HP)             # (in_sz, 4HP)
        out = jnp.zeros((in_pad, 4 * HP), jnp.float32)
        if layer == 0:
            out = out.at[:w_t.shape[0]].set(w_t)              # dense embedding rows
        else:                                                 # input = padded concat slab
            out = out.at[0:H].set(w_t[0:H])                   # fwd half -> rows [0, H)
            out = out.at[HP:HP + H].set(w_t[H:2 * H])         # bwd half -> rows [HP, HP+H)
        return out

    def _device_forward(self, tokens, lengths, *, max_len):
        B, T = tokens.shape
        H, HP, EP, TS = self.hidden_size, self.HP, self.EP, self.time_block
        T_pad = _round_up(max(T, TS), TS)
        BP = _round_up(max(B, 8), 8)

        # Embedding lookup (glue) -> time-major, padded to hardware tile sizes,
        # then flattened so every kernel tensor is a 2-D (rows, lanes) slab.
        embed = jnp.take(self.embedding, tokens, axis=0)               # (B, T, E)
        x = jnp.transpose(embed, (1, 0, 2))                            # (T, B, E)
        x = jnp.pad(x, ((0, T_pad - T), (0, BP - B), (0, EP - self.embed_size)))
        x2 = x.reshape(T_pad * BP, EP).astype(jnp.bfloat16)
        lengths2d = jnp.zeros((BP, 1), jnp.int32).at[:B, 0].set(lengths)

        finals = []
        out2 = None
        for (w_ih_t, w_hh_t, bias) in self.layers:
            out2, h_fin = bilstm_layer(x2, lengths2d, w_ih_t, w_hh_t, bias,
                                       T_pad=T_pad, BP=BP, HP=HP, TS=TS)
            x2 = out2                                        # (T_pad*BP, 2*HP) bf16
            finals.append(h_fin[0, :B, :H])                  # forward final h
            finals.append(h_fin[1, :B, :H])                  # backward final h

        # pad_packed_sequence: batch_first output of length max(lengths), zero-padded.
        out_slab = out2.reshape(T_pad, BP, 2 * HP)
        out_fwd = out_slab[:max_len, :B, :H]
        out_bwd = out_slab[:max_len, :B, HP:HP + H]
        output = jnp.transpose(
            jnp.concatenate([out_fwd, out_bwd], axis=-1), (1, 0, 2)
        ).astype(jnp.float32)                                # (B, max_len, 2H)

        # Same split/concat as the reference module.
        final_hidden = jnp.stack(finals, axis=0)             # (2*num_layers, B, H)
        split = final_hidden.shape[0] // 2
        fwd_bkwd_cat = jnp.concatenate(
            [final_hidden[:split], final_hidden[split:]], axis=2)
        return output, fwd_bkwd_cat

    def __call__(self, input_, lengths):
        # lengths are host-side metadata (as with torch pack_padded_sequence);
        # taking the max on the host keeps the device hot path in one jit.
        lengths_np = np.asarray(lengths)
        max_len = int(lengths_np.max())
        return self._forward(jnp.asarray(input_),
                             jnp.asarray(lengths_np, dtype=jnp.int32),
                             max_len=max_len)


def _reference_forward(enc, tokens, lengths):
    """Plain NumPy f32 re-implementation of the PyTorch module (verification)."""
    x = np.asarray(enc.embedding)[np.asarray(tokens)]          # (B, T, E)
    lens = np.asarray(lengths)
    B, T, _ = x.shape
    H = enc.hidden_size

    def sigmoid(v):
        return 1.0 / (1.0 + np.exp(-v))

    def run_dir(x_in, w_ih, w_hh, b, reverse):
        h = np.zeros((B, H), np.float32)
        c = np.zeros((B, H), np.float32)
        out = np.zeros((B, T, H), np.float32)
        order = range(T - 1, -1, -1) if reverse else range(T)
        for t in order:
            g = x_in[:, t] @ w_ih.T + h @ w_hh.T + b
            i_g, f_g = sigmoid(g[:, :H]), sigmoid(g[:, H:2 * H])
            g_g, o_g = np.tanh(g[:, 2 * H:3 * H]), sigmoid(g[:, 3 * H:])
            c_n = f_g * c + i_g * g_g
            h_n = o_g * np.tanh(c_n)
            m = (lens > t)[:, None]
            out[:, t] = np.where(m, h_n, 0.0)
            c = np.where(m, c_n, c)
            h = np.where(m, h_n, h)
        return out, h

    finals = []
    for (fw, bw) in enc._raw_layers:
        of, hf = run_dir(x, *fw, reverse=False)
        ob, hb = run_dir(x, *bw, reverse=True)
        x = np.concatenate([of, ob], axis=-1)
        finals += [hf, hb]
    max_len = int(lens.max())
    output = x[:, :max_len]
    fh = np.stack(finals, axis=0)
    s = fh.shape[0] // 2
    return output, np.concatenate([fh[:s], fh[s:]], axis=2)


if __name__ == "__main__":
    key = jax.random.PRNGKey(0)
    k_tok, k_params = jax.random.split(key)

    vocab, embed_size, hidden_size, num_layers = 32, 16, 32, 2
    B, T = 4, 8

    tokens = jax.random.randint(k_tok, (B, T), 0, vocab, dtype=jnp.int32)
    # pack_padded_sequence requires lengths sorted descending
    lengths = jnp.array([8, 7, 5, 3], dtype=jnp.int32)

    # time_block=4 -> 2 time blocks per direction, exercising the blocked recurrence
    enc = Encoder(vocab, embed_size, hidden_size, num_layers,
                  time_block=4, key=k_params)
    output, fwd_bkwd_cat = enc(tokens, lengths)
    jax.block_until_ready((output, fwd_bkwd_cat))

    assert output.shape == (B, T, 2 * hidden_size)
    assert fwd_bkwd_cat.shape == (num_layers, B, 2 * hidden_size)

    # correctness check against a pure-NumPy f32 reference of the PyTorch module;
    # tolerance reflects bf16 weights/activations with f32 accumulation.
    ref_out, ref_hid = _reference_forward(enc, tokens, lengths)
    err_o = float(np.max(np.abs(np.asarray(output) - ref_out)))
    err_h = float(np.max(np.abs(np.asarray(fwd_bkwd_cat) - ref_hid)))
    assert err_o < 5e-2 and err_h < 5e-2, (err_o, err_h)

    print("KERNEL_OK")
</pallas_src>

<mosaic_0001>
module attributes {stable_mosaic.version = 11 : i64} {
  func.func @_bilstm_kernel(%arg0: i32, %arg1: i32, %arg2: memref<8x1xi32, #tpu.memory_space<vmem>>, %arg3: memref<32x128xbf16, #tpu.memory_space<vmem>>, %arg4: memref<1x128x512xbf16, #tpu.memory_space<vmem>>, %arg5: memref<1x128x512xbf16, #tpu.memory_space<vmem>>, %arg6: memref<1x1x512xf32, #tpu.memory_space<vmem>>, %arg7: memref<32x128xbf16, #tpu.memory_space<vmem>>, %arg8: memref<1x8x128xf32, #tpu.memory_space<vmem>>, %arg9: memref<8x128xf32, #tpu.memory_space<vmem>>, %arg10: memref<8x128xf32, #tpu.memory_space<vmem>>, %arg11: memref<32x512xf32, #tpu.memory_space<vmem>>) attributes {dimension_semantics = [#tpu.dimension_semantics<parallel>, #tpu.dimension_semantics<arbitrary>], iteration_bounds = array<i64: 2, 2>, scalar_prefetch = 0 : i64, scratch_operands = 3 : i64, tpu.core_type = #tpu.core_type<tc>, window_params = [{pipeline_mode = #tpu.pipeline_mode<synchronous>, transform_indices = @transform_0, window_bounds = array<i64: 8, 1>}, {transform_indices = @transform_1, window_bounds = array<i64: 32, 128>}, {transform_indices = @transform_2, window_bounds = array<i64: 1, 128, 512>}, {transform_indices = @transform_3, window_bounds = array<i64: 1, 128, 512>}, {transform_indices = @transform_4, window_bounds = array<i64: 1, 1, 512>}, {transform_indices = @transform_5, window_bounds = array<i64: 32, 128>}, {transform_indices = @transform_6, window_bounds = array<i64: 1, 8, 128>}]} {
    %c0_i32 = arith.constant 0 : i32
    %0 = arith.cmpi eq, %arg1, %c0_i32 : i32
    %1 = arith.extui %0 : i1 to i32
    %c0_i32_0 = arith.constant 0 : i32
    %2 = arith.cmpi ne, %1, %c0_i32_0 : i32
    scf.if %2 {
      %cst_76 = arith.constant 0.000000e+00 : f32
      %228 = vector.broadcast %cst_76 : f32 to vector<8x128xf32>
      %c0_77 = arith.constant 0 : index
      %c0_78 = arith.constant 0 : index
      %229 = vector.load %arg9[%c0_77, %c0_78] : memref<8x128xf32, #tpu.memory_space<vmem>>, vector<8x128xf32>
      tpu.vector_store %arg9[%c0_77, %c0_78], %228 {strides = array<i32>} : memref<8x128xf32, #tpu.memory_space<vmem>>, vector<8x128xf32>,
      %cst_79 = arith.constant 0.000000e+00 : f32
      %230 = vector.broadcast %cst_79 : f32 to vector<8x128xf32>
      %c0_80 = arith.constant 0 : index
      %c0_81 = arith.constant 0 : index
      %231 = vector.load %arg10[%c0_80, %c0_81] : memref<8x128xf32, #tpu.memory_space<vmem>>, vector<8x128xf32>
      tpu.vector_store %arg10[%c0_80, %c0_81], %230 {strides = array<i32>} : memref<8x128xf32, #tpu.memory_space<vmem>>, vector<8x128xf32>,
    } else {
    }
    %c0 = arith.constant 0 : index
    %c0_1 = arith.constant 0 : index
    %3 = vector.load %arg3[%c0, %c0_1] : memref<32x128xbf16, #tpu.memory_space<vmem>>, vector<32x128xbf16>
    %c0_2 = arith.constant 0 : index
    %c0_3 = arith.constant 0 : index
    %c0_4 = arith.constant 0 : index
    %4 = vector.load %arg4[%c0_2, %c0_3, %c0_4] : memref<1x128x512xbf16, #tpu.memory_space<vmem>>, vector<1x128x512xbf16>
    %5 = vector.shape_cast %4 : vector<1x128x512xbf16> to vector<128x512xbf16>
    %cst = arith.constant dense<0.000000e+00> : vector<32x512xf32>
    %6 = tpu.matmul %3, %5, %cst {dimension_numbers = #tpu.dot_dimension_numbers<[1], [0], [0], [1], [0, 0, 1, 1], [], []>} : vector<32x128xbf16>, vector<128x512xbf16>, vector<32x512xf32> -> vector<32x512xf32>
    %c0_5 = arith.constant 0 : index
    %c0_6 = arith.constant 0 : index
    %c0_7 = arith.constant 0 : index
    %7 = vector.load %arg6[%c0_5, %c0_6, %c0_7] : memref<1x1x512xf32, #tpu.memory_space<vmem>>, vector<1x1x512xf32>
    %8 = vector.shape_cast %7 : vector<1x1x512xf32> to vector<1x512xf32>
    %9 = vector.broadcast %8 : vector<1x512xf32> to vector<32x512xf32>
    %10 = arith.addf %6, %9 : vector<32x512xf32>
    %c0_8 = arith.constant 0 : index
    %c0_9 = arith.constant 0 : index
    %11 = vector.load %arg11[%c0_8, %c0_9] : memref<32x512xf32, #tpu.memory_space<vmem>>, vector<32x512xf32>
    tpu.vector_store %arg11[%c0_8, %c0_9], %10 {strides = array<i32>} : memref<32x512xf32, #tpu.memory_space<vmem>>, vector<32x512xf32>,
    %c0_10 = arith.constant 0 : index
    %c0_11 = arith.constant 0 : index
    %c0_12 = arith.constant 0 : index
    %12 = vector.load %arg5[%c0_10, %c0_11, %c0_12] : memref<1x128x512xbf16, #tpu.memory_space<vmem>>, vector<1x128x512xbf16>
    %13 = vector.shape_cast %12 : vector<1x128x512xbf16> to vector<128x512xbf16>
    %c0_13 = arith.constant 0 : index
    %c0_14 = arith.constant 0 : index
    %14 = vector.load %arg2[%c0_13, %c0_14] : memref<8x1xi32, #tpu.memory_space<vmem>>, vector<8x1xi32>
    %15 = vector.shape_cast %14 : vector<8x1xi32> to vector<8x1xi32>
    %16 = vector.broadcast %15 : vector<8x1xi32> to vector<8x128xi32>
    %c0_15 = arith.constant 0 : index
    %c0_16 = arith.constant 0 : index
    %17 = vector.load %arg9[%c0_15, %c0_16] : memref<8x128xf32, #tpu.memory_space<vmem>>, vector<8x128xf32>
    %c0_17 = arith.constant 0 : index
    %c0_18 = arith.constant 0 : index
    %18 = vector.load %arg10[%c0_17, %c0_18] : memref<8x128xf32, #tpu.memory_space<vmem>>, vector<8x128xf32>
    %c0_i32_19 = arith.constant 0 : i32
    %c2_i32 = arith.constant 2 : i32
    %19 = arith.muli %c2_i32, %c0_i32_19 : i32
    %c3_i32 = arith.constant 3 : i32
    %20 = arith.subi %c3_i32, %19 : i32
    %21 = arith.muli %arg0, %20 : i32
    %22 = arith.addi %c0_i32_19, %21 : i32
    %c4_i32 = arith.constant 4 : i32
    %23 = arith.muli %arg1, %c4_i32 : i32
    %24 = arith.addi %23, %c0_i32_19 : i32
    %c2_i32_20 = arith.constant 2 : i32
    %25 = arith.muli %c2_i32_20, %24 : i32
    %c7_i32 = arith.constant 7 : i32
    %26 = arith.subi %c7_i32, %25 : i32
    %27 = arith.muli %arg0, %26 : i32
    %28 = arith.addi %24, %27 : i32
    %c8_i32 = arith.constant 8 : i32
    %29 = arith.muli %22, %c8_i32 : i32
    %30 = tpu.assume_multiple %29, 8 : i32
    %31 = arith.index_cast %30 : i32 to index
    %c0_21 = arith.constant 0 : index
    %32 = vector.load %arg11[%31, %c0_21] : memref<32x512xf32, #tpu.memory_space<vmem>>, vector<8x512xf32>
    %33 = arith.truncf %17 : vector<8x128xf32> to vector<8x128xbf16>
    %cst_22 = arith.constant dense<0.000000e+00> : vector<8x512xf32>
    %34 = tpu.matmul %33, %13, %cst_22 {dimension_numbers = #tpu.dot_dimension_numbers<[1], [0], [0], [1], [0, 0, 1, 1], [], []>} : vector<8x128xbf16>, vector<128x512xbf16>, vector<8x512xf32> -> vector<8x512xf32>
    %35 = arith.addf %32, %34 : vector<8x512xf32>
    %36 = vector.extract_strided_slice %35 {offsets = [0, 0], sizes = [8, 128], strides = [1, 1]} : vector<8x512xf32> to vector<8x128xf32>
    %37 = arith.negf %36 : vector<8x128xf32>
    %38 = math.exp %37 : vector<8x128xf32>
    %cst_23 = arith.constant 1.000000e+00 : f32
    %39 = vector.broadcast %cst_23 : f32 to vector<8x128xf32>
    %40 = arith.addf %39, %38 : vector<8x128xf32>
    %41 = arith.divf %39, %40 : vector<8x128xf32>
    %42 = vector.extract_strided_slice %35 {offsets = [0, 128], sizes = [8, 128], strides = [1, 1]} : vector<8x512xf32> to vector<8x128xf32>
    %43 = arith.negf %42 : vector<8x128xf32>
    %44 = math.exp %43 : vector<8x128xf32>
    %cst_24 = arith.constant 1.000000e+00 : f32
    %45 = vector.broadcast %cst_24 : f32 to vector<8x128xf32>
    %46 = arith.addf %45, %44 : vector<8x128xf32>
    %47 = arith.divf %45, %46 : vector<8x128xf32>
    %48 = vector.extract_strided_slice %35 {offsets = [0, 256], sizes = [8, 128], strides = [1, 1]} : vector<8x512xf32> to vector<8x128xf32>
    %49 = math.tanh %48 : vector<8x128xf32>
    %50 = vector.extract_strided_slice %35 {offsets = [0, 384], sizes = [8, 128], strides = [1, 1]} : vector<8x512xf32> to vector<8x128xf32>
    %51 = arith.negf %50 : vector<8x128xf32>
    %52 = math.exp %51 : vector<8x128xf32>
    %cst_25 = arith.constant 1.000000e+00 : f32
    %53 = vector.broadcast %cst_25 : f32 to vector<8x128xf32>
    %54 = arith.addf %53, %52 : vector<8x128xf32>
    %55 = arith.divf %53, %54 : vector<8x128xf32>
    %56 = arith.mulf %47, %18 : vector<8x128xf32>
    %57 = arith.mulf %41, %49 : vector<8x128xf32>
    %58 = arith.addf %56, %57 : vector<8x128xf32>
    %59 = math.tanh %58 : vector<8x128xf32>
    %60 = arith.mulf %55, %59 : vector<8x128xf32>
    %61 = vector.broadcast %28 : i32 to vector<8x128xi32>
    %62 = arith.cmpi sgt, %16, %61 : vector<8x128xi32>
    %cst_26 = arith.constant 0.000000e+00 : f32
    %63 = vector.broadcast %cst_26 : f32 to vector<8x128xf32>
    %64 = arith.select %62, %60, %63 : vector<8x128xi1>, vector<8x128xf32>
    %65 = arith.truncf %64 : vector<8x128xf32> to vector<8x128xbf16>
    %66 = arith.index_cast %30 : i32 to index
    %c0_27 = arith.constant 0 : index
    %67 = vector.load %arg7[%66, %c0_27] : memref<32x128xbf16, #tpu.memory_space<vmem>>, vector<8x128xbf16>
    tpu.vector_store %arg7[%66, %c0_27], %65 {strides = array<i32>} : memref<32x128xbf16, #tpu.memory_space<vmem>>, vector<8x128xbf16>,
    %68 = arith.select %62, %60, %17 : vector<8x128xi1>, vector<8x128xf32>
    %69 = arith.select %62, %58, %18 : vector<8x128xi1>, vector<8x128xf32>
    %c1_i32 = arith.constant 1 : i32
    %c2_i32_28 = arith.constant 2 : i32
    %70 = arith.muli %c2_i32_28, %c1_i32 : i32
    %c3_i32_29 = arith.constant 3 : i32
    %71 = arith.subi %c3_i32_29, %70 : i32
    %72 = arith.muli %arg0, %71 : i32
    %73 = arith.addi %c1_i32, %72 : i32
    %c4_i32_30 = arith.constant 4 : i32
    %74 = arith.muli %arg1, %c4_i32_30 : i32
    %75 = arith.addi %74, %c1_i32 : i32
    %c2_i32_31 = arith.constant 2 : i32
    %76 = arith.muli %c2_i32_31, %75 : i32
    %c7_i32_32 = arith.constant 7 : i32
    %77 = arith.subi %c7_i32_32, %76 : i32
    %78 = arith.muli %arg0, %77 : i32
    %79 = arith.addi %75, %78 : i32
    %c8_i32_33 = arith.constant 8 : i32
    %80 = arith.muli %73, %c8_i32_33 : i32
    %81 = tpu.assume_multiple %80, 8 : i32
    %82 = arith.index_cast %81 : i32 to index
    %c0_34 = arith.constant 0 : index
    %83 = vector.load %arg11[%82, %c0_34] : memref<32x512xf32, #tpu.memory_space<vmem>>, vector<8x512xf32>
    %84 = arith.truncf %68 : vector<8x128xf32> to vector<8x128xbf16>
    %cst_35 = arith.constant dense<0.000000e+00> : vector<8x512xf32>
    %85 = tpu.matmul %84, %13, %cst_35 {dimension_numbers = #tpu.dot_dimension_numbers<[1], [0], [0], [1], [0, 0, 1, 1], [], []>} : vector<8x128xbf16>, vector<128x512xbf16>, vector<8x512xf32> -> vector<8x512xf32>
    %86 = arith.addf %83, %85 : vector<8x512xf32>
    %87 = vector.extract_strided_slice %86 {offsets = [0, 0], sizes = [8, 128], strides = [1, 1]} : vector<8x512xf32> to vector<8x128xf32>
    %88 = arith.negf %87 : vector<8x128xf32>
    %89 = math.exp %88 : vector<8x128xf32>
    %cst_36 = arith.constant 1.000000e+00 : f32
    %90 = vector.broadcast %cst_36 : f32 to vector<8x128xf32>
    %91 = arith.addf %90, %89 : vector<8x128xf32>
    %92 = arith.divf %90, %91 : vector<8x128xf32>
    %93 = vector.extract_strided_slice %86 {offsets = [0, 128], sizes = [8, 128], strides = [1, 1]} : vector<8x512xf32> to vector<8x128xf32>
    %94 = arith.negf %93 : vector<8x128xf32>
    %95 = math.exp %94 : vector<8x128xf32>
    %cst_37 = arith.constant 1.000000e+00 : f32
    %96 = vector.broadcast %cst_37 : f32 to vector<8x128xf32>
    %97 = arith.addf %96, %95 : vector<8x128xf32>
    %98 = arith.divf %96, %97 : vector<8x128xf32>
    %99 = vector.extract_strided_slice %86 {offsets = [0, 256], sizes = [8, 128], strides = [1, 1]} : vector<8x512xf32> to vector<8x128xf32>
    %100 = math.tanh %99 : vector<8x128xf32>
    %101 = vector.extract_strided_slice %86 {offsets = [0, 384], sizes = [8, 128], strides = [1, 1]} : vector<8x512xf32> to vector<8x128xf32>
    %102 = arith.negf %101 : vector<8x128xf32>
    %103 = math.exp %102 : vector<8x128xf32>
    %cst_38 = arith.constant 1.000000e+00 : f32
    %104 = vector.broadcast %cst_38 : f32 to vector<8x128xf32>
    %105 = arith.addf %104, %103 : vector<8x128xf32>
    %106 = arith.divf %104, %105 : vector<8x128xf32>
    %107 = arith.mulf %98, %69 : vector<8x128xf32>
    %108 = arith.mulf %92, %100 : vector<8x128xf32>
    %109 = arith.addf %107, %108 : vector<8x128xf32>
    %110 = math.tanh %109 : vector<8x128xf32>
    %111 = arith.mulf %106, %110 : vector<8x128xf32>
    %112 = vector.broadcast %79 : i32 to vector<8x128xi32>
    %113 = arith.cmpi sgt, %16, %112 : vector<8x128xi32>
    %cst_39 = arith.constant 0.000000e+00 : f32
    %114 = vector.broadcast %cst_39 : f32 to vector<8x128xf32>
    %115 = arith.select %113, %111, %114 : vector<8x128xi1>, vector<8x128xf32>
    %116 = arith.truncf %115 : vector<8x128xf32> to vector<8x128xbf16>
    %117 = arith.index_cast %81 : i32 to index
    %c0_40 = arith.constant 0 : index
    %118 = vector.load %arg7[%117, %c0_40] : memref<32x128xbf16, #tpu.memory_space<vmem>>, vector<8x128xbf16>
    tpu.vector_store %arg7[%117, %c0_40], %116 {strides = array<i32>} : memref<32x128xbf16, #tpu.memory_space<vmem>>, vector<8x128xbf16>,
    %119 = arith.select %113, %111, %68 : vector<8x128xi1>, vector<8x128xf32>
    %120 = arith.select %113, %109, %69 : vector<8x128xi1>, vector<8x128xf32>
    %c2_i32_41 = arith.constant 2 : i32
    %c2_i32_42 = arith.constant 2 : i32
    %121 = arith.muli %c2_i32_42, %c2_i32_41 : i32
    %c3_i32_43 = arith.constant 3 : i32
    %122 = arith.subi %c3_i32_43, %121 : i32
    %123 = arith.muli %arg0, %122 : i32
    %124 = arith.addi %c2_i32_41, %123 : i32
    %c4_i32_44 = arith.constant 4 : i32
    %125 = arith.muli %arg1, %c4_i32_44 : i32
    %126 = arith.addi %125, %c2_i32_41 : i32
    %c2_i32_45 = arith.constant 2 : i32
    %127 = arith.muli %c2_i32_45, %126 : i32
    %c7_i32_46 = arith.constant 7 : i32
    %128 = arith.subi %c7_i32_46, %127 : i32
    %129 = arith.muli %arg0, %128 : i32
    %130 = arith.addi %126, %129 : i32
    %c8_i32_47 = arith.constant 8 : i32
    %131 = arith.muli %124, %c8_i32_47 : i32
    %132 = tpu.assume_multiple %131, 8 : i32
    %133 = arith.index_cast %132 : i32 to index
    %c0_48 = arith.constant 0 : index
    %134 = vector.load %arg11[%133, %c0_48] : memref<32x512xf32, #tpu.memory_space<vmem>>, vector<8x512xf32>
    %135 = arith.truncf %119 : vector<8x128xf32> to vector<8x128xbf16>
    %cst_49 = arith.constant dense<0.000000e+00> : vector<8x512xf32>
    %136 = tpu.matmul %135, %13, %cst_49 {dimension_numbers = #tpu.dot_dimension_numbers<[1], [0], [0], [1], [0, 0, 1, 1], [], []>} : vector<8x128xbf16>, vector<128x512xbf16>, vector<8x512xf32> -> vector<8x512xf32>
    %137 = arith.addf %134, %136 : vector<8x512xf32>
    %138 = vector.extract_strided_slice %137 {offsets = [0, 0], sizes = [8, 128], strides = [1, 1]} : vector<8x512xf32> to vector<8x128xf32>
    %139 = arith.negf %138 : vector<8x128xf32>
    %140 = math.exp %139 : vector<8x128xf32>
    %cst_50 = arith.constant 1.000000e+00 : f32
    %141 = vector.broadcast %cst_50 : f32 to vector<8x128xf32>
    %142 = arith.addf %141, %140 : vector<8x128xf32>
    %143 = arith.divf %141, %142 : vector<8x128xf32>
    %144 = vector.extract_strided_slice %137 {offsets = [0, 128], sizes = [8, 128], strides = [1, 1]} : vector<8x512xf32> to vector<8x128xf32>
    %145 = arith.negf %144 : vector<8x128xf32>
    %146 = math.exp %145 : vector<8x128xf32>
    %cst_51 = arith.constant 1.000000e+00 : f32
    %147 = vector.broadcast %cst_51 : f32 to vector<8x128xf32>
    %148 = arith.addf %147, %146 : vector<8x128xf32>
    %149 = arith.divf %147, %148 : vector<8x128xf32>
    %150 = vector.extract_strided_slice %137 {offsets = [0, 256], sizes = [8, 128], strides = [1, 1]} : vector<8x512xf32> to vector<8x128xf32>
    %151 = math.tanh %150 : vector<8x128xf32>
    %152 = vector.extract_strided_slice %137 {offsets = [0, 384], sizes = [8, 128], strides = [1, 1]} : vector<8x512xf32> to vector<8x128xf32>
    %153 = arith.negf %152 : vector<8x128xf32>
    %154 = math.exp %153 : vector<8x128xf32>
    %cst_52 = arith.constant 1.000000e+00 : f32
    %155 = vector.broadcast %cst_52 : f32 to vector<8x128xf32>
    %156 = arith.addf %155, %154 : vector<8x128xf32>
    %157 = arith.divf %155, %156 : vector<8x128xf32>
    %158 = arith.mulf %149, %120 : vector<8x128xf32>
    %159 = arith.mulf %143, %151 : vector<8x128xf32>
    %160 = arith.addf %158, %159 : vector<8x128xf32>
    %161 = math.tanh %160 : vector<8x128xf32>
    %162 = arith.mulf %157, %161 : vector<8x128xf32>
    %163 = vector.broadcast %130 : i32 to vector<8x128xi32>
    %164 = arith.cmpi sgt, %16, %163 : vector<8x128xi32>
    %cst_53 = arith.constant 0.000000e+00 : f32
    %165 = vector.broadcast %cst_53 : f32 to vector<8x128xf32>
    %166 = arith.select %164, %162, %165 : vector<8x128xi1>, vector<8x128xf32>
    %167 = arith.truncf %166 : vector<8x128xf32> to vector<8x128xbf16>
    %168 = arith.index_cast %132 : i32 to index
    %c0_54 = arith.constant 0 : index
    %169 = vector.load %arg7[%168, %c0_54] : memref<32x128xbf16, #tpu.memory_space<vmem>>, vector<8x128xbf16>
    tpu.vector_store %arg7[%168, %c0_54], %167 {strides = array<i32>} : memref<32x128xbf16, #tpu.memory_space<vmem>>, vector<8x128xbf16>,
    %170 = arith.select %164, %162, %119 : vector<8x128xi1>, vector<8x128xf32>
    %171 = arith.select %164, %160, %120 : vector<8x128xi1>, vector<8x128xf32>
    %c3_i32_55 = arith.constant 3 : i32
    %c2_i32_56 = arith.constant 2 : i32
    %172 = arith.muli %c2_i32_56, %c3_i32_55 : i32
    %c3_i32_57 = arith.constant 3 : i32
    %173 = arith.subi %c3_i32_57, %172 : i32
    %174 = arith.muli %arg0, %173 : i32
    %175 = arith.addi %c3_i32_55, %174 : i32
    %c4_i32_58 = arith.constant 4 : i32
    %176 = arith.muli %arg1, %c4_i32_58 : i32
    %177 = arith.addi %176, %c3_i32_55 : i32
    %c2_i32_59 = arith.constant 2 : i32
    %178 = arith.muli %c2_i32_59, %177 : i32
    %c7_i32_60 = arith.constant 7 : i32
    %179 = arith.subi %c7_i32_60, %178 : i32
    %180 = arith.muli %arg0, %179 : i32
    %181 = arith.addi %177, %180 : i32
    %c8_i32_61 = arith.constant 8 : i32
    %182 = arith.muli %175, %c8_i32_61 : i32
    %183 = tpu.assume_multiple %182, 8 : i32
    %184 = arith.index_cast %183 : i32 to index
    %c0_62 = arith.constant 0 : index
    %185 = vector.load %arg11[%184, %c0_62] : memref<32x512xf32, #tpu.memory_space<vmem>>, vector<8x512xf32>
    %186 = arith.truncf %170 : vector<8x128xf32> to vector<8x128xbf16>
    %cst_63 = arith.constant dense<0.000000e+00> : vector<8x512xf32>
    %187 = tpu.matmul %186, %13, %cst_63 {dimension_numbers = #tpu.dot_dimension_numbers<[1], [0], [0], [1], [0, 0, 1, 1], [], []>} : vector<8x128xbf16>, vector<128x512xbf16>, vector<8x512xf32> -> vector<8x512xf32>
    %188 = arith.addf %185, %187 : vector<8x512xf32>
    %189 = vector.extract_strided_slice %188 {offsets = [0, 0], sizes = [8, 128], strides = [1, 1]} : vector<8x512xf32> to vector<8x128xf32>
    %190 = arith.negf %189 : vector<8x128xf32>
    %191 = math.exp %190 : vector<8x128xf32>
    %cst_64 = arith.constant 1.000000e+00 : f32
    %192 = vector.broadcast %cst_64 : f32 to vector<8x128xf32>
    %193 = arith.addf %192, %191 : vector<8x128xf32>
    %194 = arith.divf %192, %193 : vector<8x128xf32>
    %195 = vector.extract_strided_slice %188 {offsets = [0, 128], sizes = [8, 128], strides = [1, 1]} : vector<8x512xf32> to vector<8x128xf32>
    %196 = arith.negf %195 : vector<8x128xf32>
    %197 = math.exp %196 : vector<8x128xf32>
    %cst_65 = arith.constant 1.000000e+00 : f32
    %198 = vector.broadcast %cst_65 : f32 to vector<8x128xf32>
    %199 = arith.addf %198, %197 : vector<8x128xf32>
    %200 = arith.divf %198, %199 : vector<8x128xf32>
    %201 = vector.extract_strided_slice %188 {offsets = [0, 256], sizes = [8, 128], strides = [1, 1]} : vector<8x512xf32> to vector<8x128xf32>
    %202 = math.tanh %201 : vector<8x128xf32>
    %203 = vector.extract_strided_slice %188 {offsets = [0, 384], sizes = [8, 128], strides = [1, 1]} : vector<8x512xf32> to vector<8x128xf32>
    %204 = arith.negf %203 : vector<8x128xf32>
    %205 = math.exp %204 : vector<8x128xf32>
    %cst_66 = arith.constant 1.000000e+00 : f32
    %206 = vector.broadcast %cst_66 : f32 to vector<8x128xf32>
    %207 = arith.addf %206, %205 : vector<8x128xf32>
    %208 = arith.divf %206, %207 : vector<8x128xf32>
    %209 = arith.mulf %200, %171 : vector<8x128xf32>
    %210 = arith.mulf %194, %202 : vector<8x128xf32>
    %211 = arith.addf %209, %210 : vector<8x128xf32>
    %212 = math.tanh %211 : vector<8x128xf32>
    %213 = arith.mulf %208, %212 : vector<8x128xf32>
    %214 = vector.broadcast %181 : i32 to vector<8x128xi32>
    %215 = arith.cmpi sgt, %16, %214 : vector<8x128xi32>
    %cst_67 = arith.constant 0.000000e+00 : f32
    %216 = vector.broadcast %cst_67 : f32 to vector<8x128xf32>
    %217 = arith.select %215, %213, %216 : vector<8x128xi1>, vector<8x128xf32>
    %218 = arith.truncf %217 : vector<8x128xf32> to vector<8x128xbf16>
    %219 = arith.index_cast %183 : i32 to index
    %c0_68 = arith.constant 0 : index
    %220 = vector.load %arg7[%219, %c0_68] : memref<32x128xbf16, #tpu.memory_space<vmem>>, vector<8x128xbf16>
    tpu.vector_store %arg7[%219, %c0_68], %218 {strides = array<i32>} : memref<32x128xbf16, #tpu.memory_space<vmem>>, vector<8x128xbf16>,
    %221 = arith.select %215, %213, %170 : vector<8x128xi1>, vector<8x128xf32>
    %222 = arith.select %215, %211, %171 : vector<8x128xi1>, vector<8x128xf32>
    %c4_i32_69 = arith.constant 4 : i32
    %c0_70 = arith.constant 0 : index
    %c0_71 = arith.constant 0 : index
    %223 = vector.load %arg9[%c0_70, %c0_71] : memref<8x128xf32, #tpu.memory_space<vmem>>, vector<8x128xf32>
    tpu.vector_store %arg9[%c0_70, %c0_71], %221 {strides = array<i32>} : memref<8x128xf32, #tpu.memory_space<vmem>>, vector<8x128xf32>,
    %c0_72 = arith.constant 0 : index
    %c0_73 = arith.constant 0 : index
    %224 = vector.load %arg10[%c0_72, %c0_73] : memref<8x128xf32, #tpu.memory_space<vmem>>, vector<8x128xf32>
    tpu.vector_store %arg10[%c0_72, %c0_73], %222 {strides = array<i32>} : memref<8x128xf32, #tpu.memory_space<vmem>>, vector<8x128xf32>,
    %c1_i32_74 = arith.constant 1 : i32
    %225 = arith.cmpi eq, %arg1, %c1_i32_74 : i32
    %226 = arith.extui %225 : i1 to i32
    %c0_i32_75 = arith.constant 0 : i32
    %227 = arith.cmpi ne, %226, %c0_i32_75 : i32
    scf.if %227 {
      %c0_76 = arith.constant 0 : index
      %c0_77 = arith.constant 0 : index
      %c0_78 = arith.constant 0 : index
      %228 = vector.load %arg8[%c0_76, %c0_77, %c0_78] : memref<1x8x128xf32, #tpu.memory_space<vmem>>, vector<1x8x128xf32>
      %229 = vector.shape_cast %228 : vector<1x8x128xf32> to vector<8x128xf32>
      %230 = vector.shape_cast %221 : vector<8x128xf32> to vector<1x8x128xf32>
      tpu.vector_store %arg8[%c0_76, %c0_77, %c0_78], %230 {strides = array<i32>} : memref<1x8x128xf32, #tpu.memory_space<vmem>>, vector<1x8x128xf32>,
    } else {
    }
    return
  }
  func.func @transform_0(%arg0: i32, %arg1: i32) -> (i32, i32) {
    %c0_i32 = arith.constant 0 : i32
    %c0_i32_0 = arith.constant 0 : i32
    %c0_i32_1 = arith.constant 0 : i32
    return %c0_i32, %c0_i32_0 : i32, i32
  }
  func.func @transform_1(%arg0: i32, %arg1: i32) -> (i32, i32) {
    %c2_i32 = arith.constant 2 : i32
    %0 = arith.muli %c2_i32, %arg1 : i32
    %c1_i32 = arith.constant 1 : i32
    %1 = arith.subi %c1_i32, %0 : i32
    %2 = arith.muli %arg0, %1 : i32
    %3 = arith.addi %arg1, %2 : i32
    %c0_i32 = arith.constant 0 : i32
    %c0_i32_0 = arith.constant 0 : i32
    return %3, %c0_i32 : i32, i32
  }
  func.func @transform_2(%arg0: i32, %arg1: i32) -> (i32, i32, i32) {
    %c0_i32 = arith.constant 0 : i32
    %c0_i32_0 = arith.constant 0 : i32
    %c0_i32_1 = arith.constant 0 : i32
    return %arg0, %c0_i32, %c0_i32_0 : i32, i32, i32
  }
  func.func @transform_3(%arg0: i32, %arg1: i32) -> (i32, i32, i32) {
    %c0_i32 = arith.constant 0 : i32
    %c0_i32_0 = arith.constant 0 : i32
    %c0_i32_1 = arith.constant 0 : i32
    return %arg0, %c0_i32, %c0_i32_0 : i32, i32, i32
  }
  func.func @transform_4(%arg0: i32, %arg1: i32) -> (i32, i32, i32) {
    %c0_i32 = arith.constant 0 : i32
    %c0_i32_0 = arith.constant 0 : i32
    %c0_i32_1 = arith.constant 0 : i32
    return %arg0, %c0_i32, %c0_i32_0 : i32, i32, i32
  }
  func.func @transform_5(%arg0: i32, %arg1: i32) -> (i32, i32) {
    %c2_i32 = arith.constant 2 : i32
    %0 = arith.muli %c2_i32, %arg1 : i32
    %c1_i32 = arith.constant 1 : i32
    %1 = arith.subi %c1_i32, %0 : i32
    %2 = arith.muli %arg0, %1 : i32
    %3 = arith.addi %arg1, %2 : i32
    %c0_i32 = arith.constant 0 : i32
    return %3, %arg0 : i32, i32
  }
  func.func @transform_6(%arg0: i32, %arg1: i32) -> (i32, i32, i32) {
    %c0_i32 = arith.constant 0 : i32
    %c0_i32_0 = arith.constant 0 : i32
    %c0_i32_1 = arith.constant 0 : i32
    return %arg0, %c0_i32, %c0_i32_0 : i32, i32, i32
  }
}

module attributes {stable_mosaic.version = 11 : i64} {
  func.func @_bilstm_kernel(%arg0: i32, %arg1: i32, %arg2: memref<8x1xi32, #tpu.memory_space<vmem>>, %arg3: memref<32x256xbf16, #tpu.memory_space<vmem>>, %arg4: memref<1x256x512xbf16, #tpu.memory_space<vmem>>, %arg5: memref<1x128x512xbf16, #tpu.memory_space<vmem>>, %arg6: memref<1x1x512xf32, #tpu.memory_space<vmem>>, %arg7: memref<32x128xbf16, #tpu.memory_space<vmem>>, %arg8: memref<1x8x128xf32, #tpu.memory_space<vmem>>, %arg9: memref<8x128xf32, #tpu.memory_space<vmem>>, %arg10: memref<8x128xf32, #tpu.memory_space<vmem>>, %arg11: memref<32x512xf32, #tpu.memory_space<vmem>>) attributes {dimension_semantics = [#tpu.dimension_semantics<parallel>, #tpu.dimension_semantics<arbitrary>], iteration_bounds = array<i64: 2, 2>, scalar_prefetch = 0 : i64, scratch_operands = 3 : i64, tpu.core_type = #tpu.core_type<tc>, window_params = [{pipeline_mode = #tpu.pipeline_mode<synchronous>, transform_indices = @transform_0, window_bounds = array<i64: 8, 1>}, {transform_indices = @transform_1, window_bounds = array<i64: 32, 256>}, {transform_indices = @transform_2, window_bounds = array<i64: 1, 256, 512>}, {transform_indices = @transform_3, window_bounds = array<i64: 1, 128, 512>}, {transform_indices = @transform_4, window_bounds = array<i64: 1, 1, 512>}, {transform_indices = @transform_5, window_bounds = array<i64: 32, 128>}, {transform_indices = @transform_6, window_bounds = array<i64: 1, 8, 128>}]} {
    %c0_i32 = arith.constant 0 : i32
    %0 = arith.cmpi eq, %arg1, %c0_i32 : i32
    %1 = arith.extui %0 : i1 to i32
    %c0_i32_0 = arith.constant 0 : i32
    %2 = arith.cmpi ne, %1, %c0_i32_0 : i32
    scf.if %2 {
      %cst_76 = arith.constant 0.000000e+00 : f32
      %228 = vector.broadcast %cst_76 : f32 to vector<8x128xf32>
      %c0_77 = arith.constant 0 : index
      %c0_78 = arith.constant 0 : index
      %229 = vector.load %arg9[%c0_77, %c0_78] : memref<8x128xf32, #tpu.memory_space<vmem>>, vector<8x128xf32>
      tpu.vector_store %arg9[%c0_77, %c0_78], %228 {strides = array<i32>} : memref<8x128xf32, #tpu.memory_space<vmem>>, vector<8x128xf32>,
      %cst_79 = arith.constant 0.000000e+00 : f32
      %230 = vector.broadcast %cst_79 : f32 to vector<8x128xf32>
      %c0_80 = arith.constant 0 : index
      %c0_81 = arith.constant 0 : index
      %231 = vector.load %arg10[%c0_80, %c0_81] : memref<8x128xf32, #tpu.memory_space<vmem>>, vector<8x128xf32>
      tpu.vector_store %arg10[%c0_80, %c0_81], %230 {strides = array<i32>} : memref<8x128xf32, #tpu.memory_space<vmem>>, vector<8x128xf32>,
    } else {
    }
    %c0 = arith.constant 0 : index
    %c0_1 = arith.constant 0 : index
    %3 = vector.load %arg3[%c0, %c0_1] : memref<32x256xbf16, #tpu.memory_space<vmem>>, vector<32x256xbf16>
    %c0_2 = arith.constant 0 : index
    %c0_3 = arith.constant 0 : index
    %c0_4 = arith.constant 0 : index
    %4 = vector.load %arg4[%c0_2, %c0_3, %c0_4] : memref<1x256x512xbf16, #tpu.memory_space<vmem>>, vector<1x256x512xbf16>
    %5 = vector.shape_cast %4 : vector<1x256x512xbf16> to vector<256x512xbf16>
    %cst = arith.constant dense<0.000000e+00> : vector<32x512xf32>
    %6 = tpu.matmul %3, %5, %cst {dimension_numbers = #tpu.dot_dimension_numbers<[1], [0], [0], [1], [0, 0, 1, 1], [], []>} : vector<32x256xbf16>, vector<256x512xbf16>, vector<32x512xf32> -> vector<32x512xf32>
    %c0_5 = arith.constant 0 : index
    %c0_6 = arith.constant 0 : index
    %c0_7 = arith.constant 0 : index
    %7 = vector.load %arg6[%c0_5, %c0_6, %c0_7] : memref<1x1x512xf32, #tpu.memory_space<vmem>>, vector<1x1x512xf32>
    %8 = vector.shape_cast %7 : vector<1x1x512xf32> to vector<1x512xf32>
    %9 = vector.broadcast %8 : vector<1x512xf32> to vector<32x512xf32>
    %10 = arith.addf %6, %9 : vector<32x512xf32>
    %c0_8 = arith.constant 0 : index
    %c0_9 = arith.constant 0 : index
    %11 = vector.load %arg11[%c0_8, %c0_9] : memref<32x512xf32, #tpu.memory_space<vmem>>, vector<32x512xf32>
    tpu.vector_store %arg11[%c0_8, %c0_9], %10 {strides = array<i32>} : memref<32x512xf32, #tpu.memory_space<vmem>>, vector<32x512xf32>,
    %c0_10 = arith.constant 0 : index
    %c0_11 = arith.constant 0 : index
    %c0_12 = arith.constant 0 : index
    %12 = vector.load %arg5[%c0_10, %c0_11, %c0_12] : memref<1x128x512xbf16, #tpu.memory_space<vmem>>, vector<1x128x512xbf16>
    %13 = vector.shape_cast %12 : vector<1x128x512xbf16> to vector<128x512xbf16>
    %c0_13 = arith.constant 0 : index
    %c0_14 = arith.constant 0 : index
    %14 = vector.load %arg2[%c0_13, %c0_14] : memref<8x1xi32, #tpu.memory_space<vmem>>, vector<8x1xi32>
    %15 = vector.shape_cast %14 : vector<8x1xi32> to vector<8x1xi32>
    %16 = vector.broadcast %15 : vector<8x1xi32> to vector<8x128xi32>
    %c0_15 = arith.constant 0 : index
    %c0_16 = arith.constant 0 : index
    %17 = vector.load %arg9[%c0_15, %c0_16] : memref<8x128xf32, #tpu.memory_space<vmem>>, vector<8x128xf32>
    %c0_17 = arith.constant 0 : index
    %c0_18 = arith.constant 0 : index
    %18 = vector.load %arg10[%c0_17, %c0_18] : memref<8x128xf32, #tpu.memory_space<vmem>>, vector<8x128xf32>
    %c0_i32_19 = arith.constant 0 : i32
    %c2_i32 = arith.constant 2 : i32
    %19 = arith.muli %c2_i32, %c0_i32_19 : i32
    %c3_i32 = arith.constant 3 : i32
    %20 = arith.subi %c3_i32, %19 : i32
    %21 = arith.muli %arg0, %20 : i32
    %22 = arith.addi %c0_i32_19, %21 : i32
    %c4_i32 = arith.constant 4 : i32
    %23 = arith.muli %arg1, %c4_i32 : i32
    %24 = arith.addi %23, %c0_i32_19 : i32
    %c2_i32_20 = arith.constant 2 : i32
    %25 = arith.muli %c2_i32_20, %24 : i32
    %c7_i32 = arith.constant 7 : i32
    %26 = arith.subi %c7_i32, %25 : i32
    %27 = arith.muli %arg0, %26 : i32
    %28 = arith.addi %24, %27 : i32
    %c8_i32 = arith.constant 8 : i32
    %29 = arith.muli %22, %c8_i32 : i32
    %30 = tpu.assume_multiple %29, 8 : i32
    %31 = arith.index_cast %30 : i32 to index
    %c0_21 = arith.constant 0 : index
    %32 = vector.load %arg11[%31, %c0_21] : memref<32x512xf32, #tpu.memory_space<vmem>>, vector<8x512xf32>
    %33 = arith.truncf %17 : vector<8x128xf32> to vector<8x128xbf16>
    %cst_22 = arith.constant dense<0.000000e+00> : vector<8x512xf32>
    %34 = tpu.matmul %33, %13, %cst_22 {dimension_numbers = #tpu.dot_dimension_numbers<[1], [0], [0], [1], [0, 0, 1, 1], [], []>} : vector<8x128xbf16>, vector<128x512xbf16>, vector<8x512xf32> -> vector<8x512xf32>
    %35 = arith.addf %32, %34 : vector<8x512xf32>
    %36 = vector.extract_strided_slice %35 {offsets = [0, 0], sizes = [8, 128], strides = [1, 1]} : vector<8x512xf32> to vector<8x128xf32>
    %37 = arith.negf %36 : vector<8x128xf32>
    %38 = math.exp %37 : vector<8x128xf32>
    %cst_23 = arith.constant 1.000000e+00 : f32
    %39 = vector.broadcast %cst_23 : f32 to vector<8x128xf32>
    %40 = arith.addf %39, %38 : vector<8x128xf32>
    %41 = arith.divf %39, %40 : vector<8x128xf32>
    %42 = vector.extract_strided_slice %35 {offsets = [0, 128], sizes = [8, 128], strides = [1, 1]} : vector<8x512xf32> to vector<8x128xf32>
    %43 = arith.negf %42 : vector<8x128xf32>
    %44 = math.exp %43 : vector<8x128xf32>
    %cst_24 = arith.constant 1.000000e+00 : f32
    %45 = vector.broadcast %cst_24 : f32 to vector<8x128xf32>
    %46 = arith.addf %45, %44 : vector<8x128xf32>
    %47 = arith.divf %45, %46 : vector<8x128xf32>
    %48 = vector.extract_strided_slice %35 {offsets = [0, 256], sizes = [8, 128], strides = [1, 1]} : vector<8x512xf32> to vector<8x128xf32>
    %49 = math.tanh %48 : vector<8x128xf32>
    %50 = vector.extract_strided_slice %35 {offsets = [0, 384], sizes = [8, 128], strides = [1, 1]} : vector<8x512xf32> to vector<8x128xf32>
    %51 = arith.negf %50 : vector<8x128xf32>
    %52 = math.exp %51 : vector<8x128xf32>
    %cst_25 = arith.constant 1.000000e+00 : f32
    %53 = vector.broadcast %cst_25 : f32 to vector<8x128xf32>
    %54 = arith.addf %53, %52 : vector<8x128xf32>
    %55 = arith.divf %53, %54 : vector<8x128xf32>
    %56 = arith.mulf %47, %18 : vector<8x128xf32>
    %57 = arith.mulf %41, %49 : vector<8x128xf32>
    %58 = arith.addf %56, %57 : vector<8x128xf32>
    %59 = math.tanh %58 : vector<8x128xf32>
    %60 = arith.mulf %55, %59 : vector<8x128xf32>
    %61 = vector.broadcast %28 : i32 to vector<8x128xi32>
    %62 = arith.cmpi sgt, %16, %61 : vector<8x128xi32>
    %cst_26 = arith.constant 0.000000e+00 : f32
    %63 = vector.broadcast %cst_26 : f32 to vector<8x128xf32>
    %64 = arith.select %62, %60, %63 : vector<8x128xi1>, vector<8x128xf32>
    %65 = arith.truncf %64 : vector<8x128xf32> to vector<8x128xbf16>
    %66 = arith.index_cast %30 : i32 to index
    %c0_27 = arith.constant 0 : index
    %67 = vector.load %arg7[%66, %c0_27] : memref<32x128xbf16, #tpu.memory_space<vmem>>, vector<8x128xbf16>
    tpu.vector_store %arg7[%66, %c0_27], %65 {strides = array<i32>} : memref<32x128xbf16, #tpu.memory_space<vmem>>, vector<8x128xbf16>,
    %68 = arith.select %62, %60, %17 : vector<8x128xi1>, vector<8x128xf32>
    %69 = arith.select %62, %58, %18 : vector<8x128xi1>, vector<8x128xf32>
    %c1_i32 = arith.constant 1 : i32
    %c2_i32_28 = arith.constant 2 : i32
    %70 = arith.muli %c2_i32_28, %c1_i32 : i32
    %c3_i32_29 = arith.constant 3 : i32
    %71 = arith.subi %c3_i32_29, %70 : i32
    %72 = arith.muli %arg0, %71 : i32
    %73 = arith.addi %c1_i32, %72 : i32
    %c4_i32_30 = arith.constant 4 : i32
    %74 = arith.muli %arg1, %c4_i32_30 : i32
    %75 = arith.addi %74, %c1_i32 : i32
    %c2_i32_31 = arith.constant 2 : i32
    %76 = arith.muli %c2_i32_31, %75 : i32
    %c7_i32_32 = arith.constant 7 : i32
    %77 = arith.subi %c7_i32_32, %76 : i32
    %78 = arith.muli %arg0, %77 : i32
    %79 = arith.addi %75, %78 : i32
    %c8_i32_33 = arith.constant 8 : i32
    %80 = arith.muli %73, %c8_i32_33 : i32
    %81 = tpu.assume_multiple %80, 8 : i32
    %82 = arith.index_cast %81 : i32 to index
    %c0_34 = arith.constant 0 : index
    %83 = vector.load %arg11[%82, %c0_34] : memref<32x512xf32, #tpu.memory_space<vmem>>, vector<8x512xf32>
    %84 = arith.truncf %68 : vector<8x128xf32> to vector<8x128xbf16>
    %cst_35 = arith.constant dense<0.000000e+00> : vector<8x512xf32>
    %85 = tpu.matmul %84, %13, %cst_35 {dimension_numbers = #tpu.dot_dimension_numbers<[1], [0], [0], [1], [0, 0, 1, 1], [], []>} : vector<8x128xbf16>, vector<128x512xbf16>, vector<8x512xf32> -> vector<8x512xf32>
    %86 = arith.addf %83, %85 : vector<8x512xf32>
    %87 = vector.extract_strided_slice %86 {offsets = [0, 0], sizes = [8, 128], strides = [1, 1]} : vector<8x512xf32> to vector<8x128xf32>
    %88 = arith.negf %87 : vector<8x128xf32>
    %89 = math.exp %88 : vector<8x128xf32>
    %cst_36 = arith.constant 1.000000e+00 : f32
    %90 = vector.broadcast %cst_36 : f32 to vector<8x128xf32>
    %91 = arith.addf %90, %89 : vector<8x128xf32>
    %92 = arith.divf %90, %91 : vector<8x128xf32>
    %93 = vector.extract_strided_slice %86 {offsets = [0, 128], sizes = [8, 128], strides = [1, 1]} : vector<8x512xf32> to vector<8x128xf32>
    %94 = arith.negf %93 : vector<8x128xf32>
    %95 = math.exp %94 : vector<8x128xf32>
    %cst_37 = arith.constant 1.000000e+00 : f32
    %96 = vector.broadcast %cst_37 : f32 to vector<8x128xf32>
    %97 = arith.addf %96, %95 : vector<8x128xf32>
    %98 = arith.divf %96, %97 : vector<8x128xf32>
    %99 = vector.extract_strided_slice %86 {offsets = [0, 256], sizes = [8, 128], strides = [1, 1]} : vector<8x512xf32> to vector<8x128xf32>
    %100 = math.tanh %99 : vector<8x128xf32>
    %101 = vector.extract_strided_slice %86 {offsets = [0, 384], sizes = [8, 128], strides = [1, 1]} : vector<8x512xf32> to vector<8x128xf32>
    %102 = arith.negf %101 : vector<8x128xf32>
    %103 = math.exp %102 : vector<8x128xf32>
    %cst_38 = arith.constant 1.000000e+00 : f32
    %104 = vector.broadcast %cst_38 : f32 to vector<8x128xf32>
    %105 = arith.addf %104, %103 : vector<8x128xf32>
    %106 = arith.divf %104, %105 : vector<8x128xf32>
    %107 = arith.mulf %98, %69 : vector<8x128xf32>
    %108 = arith.mulf %92, %100 : vector<8x128xf32>
    %109 = arith.addf %107, %108 : vector<8x128xf32>
    %110 = math.tanh %109 : vector<8x128xf32>
    %111 = arith.mulf %106, %110 : vector<8x128xf32>
    %112 = vector.broadcast %79 : i32 to vector<8x128xi32>
    %113 = arith.cmpi sgt, %16, %112 : vector<8x128xi32>
    %cst_39 = arith.constant 0.000000e+00 : f32
    %114 = vector.broadcast %cst_39 : f32 to vector<8x128xf32>
    %115 = arith.select %113, %111, %114 : vector<8x128xi1>, vector<8x128xf32>
    %116 = arith.truncf %115 : vector<8x128xf32> to vector<8x128xbf16>
    %117 = arith.index_cast %81 : i32 to index
    %c0_40 = arith.constant 0 : index
    %118 = vector.load %arg7[%117, %c0_40] : memref<32x128xbf16, #tpu.memory_space<vmem>>, vector<8x128xbf16>
    tpu.vector_store %arg7[%117, %c0_40], %116 {strides = array<i32>} : memref<32x128xbf16, #tpu.memory_space<vmem>>, vector<8x128xbf16>,
    %119 = arith.select %113, %111, %68 : vector<8x128xi1>, vector<8x128xf32>
    %120 = arith.select %113, %109, %69 : vector<8x128xi1>, vector<8x128xf32>
    %c2_i32_41 = arith.constant 2 : i32
    %c2_i32_42 = arith.constant 2 : i32
    %121 = arith.muli %c2_i32_42, %c2_i32_41 : i32
    %c3_i32_43 = arith.constant 3 : i32
    %122 = arith.subi %c3_i32_43, %121 : i32
    %123 = arith.muli %arg0, %122 : i32
    %124 = arith.addi %c2_i32_41, %123 : i32
    %c4_i32_44 = arith.constant 4 : i32
    %125 = arith.muli %arg1, %c4_i32_44 : i32
    %126 = arith.addi %125, %c2_i32_41 : i32
    %c2_i32_45 = arith.constant 2 : i32
    %127 = arith.muli %c2_i32_45, %126 : i32
    %c7_i32_46 = arith.constant 7 : i32
    %128 = arith.subi %c7_i32_46, %127 : i32
    %129 = arith.muli %arg0, %128 : i32
    %130 = arith.addi %126, %129 : i32
    %c8_i32_47 = arith.constant 8 : i32
    %131 = arith.muli %124, %c8_i32_47 : i32
    %132 = tpu.assume_multiple %131, 8 : i32
    %133 = arith.index_cast %132 : i32 to index
    %c0_48 = arith.constant 0 : index
    %134 = vector.load %arg11[%133, %c0_48] : memref<32x512xf32, #tpu.memory_space<vmem>>, vector<8x512xf32>
    %135 = arith.truncf %119 : vector<8x128xf32> to vector<8x128xbf16>
    %cst_49 = arith.constant dense<0.000000e+00> : vector<8x512xf32>
    %136 = tpu.matmul %135, %13, %cst_49 {dimension_numbers = #tpu.dot_dimension_numbers<[1], [0], [0], [1], [0, 0, 1, 1], [], []>} : vector<8x128xbf16>, vector<128x512xbf16>, vector<8x512xf32> -> vector<8x512xf32>
    %137 = arith.addf %134, %136 : vector<8x512xf32>
    %138 = vector.extract_strided_slice %137 {offsets = [0, 0], sizes = [8, 128], strides = [1, 1]} : vector<8x512xf32> to vector<8x128xf32>
    %139 = arith.negf %138 : vector<8x128xf32>
    %140 = math.exp %139 : vector<8x128xf32>
    %cst_50 = arith.constant 1.000000e+00 : f32
    %141 = vector.broadcast %cst_50 : f32 to vector<8x128xf32>
    %142 = arith.addf %141, %140 : vector<8x128xf32>
    %143 = arith.divf %141, %142 : vector<8x128xf32>
    %144 = vector.extract_strided_slice %137 {offsets = [0, 128], sizes = [8, 128], strides = [1, 1]} : vector<8x512xf32> to vector<8x128xf32>
    %145 = arith.negf %144 : vector<8x128xf32>
    %146 = math.exp %145 : vector<8x128xf32>
    %cst_51 = arith.constant 1.000000e+00 : f32
    %147 = vector.broadcast %cst_51 : f32 to vector<8x128xf32>
    %148 = arith.addf %147, %146 : vector<8x128xf32>
    %149 = arith.divf %147, %148 : vector<8x128xf32>
    %150 = vector.extract_strided_slice %137 {offsets = [0, 256], sizes = [8, 128], strides = [1, 1]} : vector<8x512xf32> to vector<8x128xf32>
    %151 = math.tanh %150 : vector<8x128xf32>
    %152 = vector.extract_strided_slice %137 {offsets = [0, 384], sizes = [8, 128], strides = [1, 1]} : vector<8x512xf32> to vector<8x128xf32>
    %153 = arith.negf %152 : vector<8x128xf32>
    %154 = math.exp %153 : vector<8x128xf32>
    %cst_52 = arith.constant 1.000000e+00 : f32
    %155 = vector.broadcast %cst_52 : f32 to vector<8x128xf32>
    %156 = arith.addf %155, %154 : vector<8x128xf32>
    %157 = arith.divf %155, %156 : vector<8x128xf32>
    %158 = arith.mulf %149, %120 : vector<8x128xf32>
    %159 = arith.mulf %143, %151 : vector<8x128xf32>
    %160 = arith.addf %158, %159 : vector<8x128xf32>
    %161 = math.tanh %160 : vector<8x128xf32>
    %162 = arith.mulf %157, %161 : vector<8x128xf32>
    %163 = vector.broadcast %130 : i32 to vector<8x128xi32>
    %164 = arith.cmpi sgt, %16, %163 : vector<8x128xi32>
    %cst_53 = arith.constant 0.000000e+00 : f32
    %165 = vector.broadcast %cst_53 : f32 to vector<8x128xf32>
    %166 = arith.select %164, %162, %165 : vector<8x128xi1>, vector<8x128xf32>
    %167 = arith.truncf %166 : vector<8x128xf32> to vector<8x128xbf16>
    %168 = arith.index_cast %132 : i32 to index
    %c0_54 = arith.constant 0 : index
    %169 = vector.load %arg7[%168, %c0_54] : memref<32x128xbf16, #tpu.memory_space<vmem>>, vector<8x128xbf16>
    tpu.vector_store %arg7[%168, %c0_54], %167 {strides = array<i32>} : memref<32x128xbf16, #tpu.memory_space<vmem>>, vector<8x128xbf16>,
    %170 = arith.select %164, %162, %119 : vector<8x128xi1>, vector<8x128xf32>
    %171 = arith.select %164, %160, %120 : vector<8x128xi1>, vector<8x128xf32>
    %c3_i32_55 = arith.constant 3 : i32
    %c2_i32_56 = arith.constant 2 : i32
    %172 = arith.muli %c2_i32_56, %c3_i32_55 : i32
    %c3_i32_57 = arith.constant 3 : i32
    %173 = arith.subi %c3_i32_57, %172 : i32
    %174 = arith.muli %arg0, %173 : i32
    %175 = arith.addi %c3_i32_55, %174 : i32
    %c4_i32_58 = arith.constant 4 : i32
    %176 = arith.muli %arg1, %c4_i32_58 : i32
    %177 = arith.addi %176, %c3_i32_55 : i32
    %c2_i32_59 = arith.constant 2 : i32
    %178 = arith.muli %c2_i32_59, %177 : i32
    %c7_i32_60 = arith.constant 7 : i32
    %179 = arith.subi %c7_i32_60, %178 : i32
    %180 = arith.muli %arg0, %179 : i32
    %181 = arith.addi %177, %180 : i32
    %c8_i32_61 = arith.constant 8 : i32
    %182 = arith.muli %175, %c8_i32_61 : i32
    %183 = tpu.assume_multiple %182, 8 : i32
    %184 = arith.index_cast %183 : i32 to index
    %c0_62 = arith.constant 0 : index
    %185 = vector.load %arg11[%184, %c0_62] : memref<32x512xf32, #tpu.memory_space<vmem>>, vector<8x512xf32>
    %186 = arith.truncf %170 : vector<8x128xf32> to vector<8x128xbf16>
    %cst_63 = arith.constant dense<0.000000e+00> : vector<8x512xf32>
    %187 = tpu.matmul %186, %13, %cst_63 {dimension_numbers = #tpu.dot_dimension_numbers<[1], [0], [0], [1], [0, 0, 1, 1], [], []>} : vector<8x128xbf16>, vector<128x512xbf16>, vector<8x512xf32> -> vector<8x512xf32>
    %188 = arith.addf %185, %187 : vector<8x512xf32>
    %189 = vector.extract_strided_slice %188 {offsets = [0, 0], sizes = [8, 128], strides = [1, 1]} : vector<8x512xf32> to vector<8x128xf32>
    %190 = arith.negf %189 : vector<8x128xf32>
    %191 = math.exp %190 : vector<8x128xf32>
    %cst_64 = arith.constant 1.000000e+00 : f32
    %192 = vector.broadcast %cst_64 : f32 to vector<8x128xf32>
    %193 = arith.addf %192, %191 : vector<8x128xf32>
    %194 = arith.divf %192, %193 : vector<8x128xf32>
    %195 = vector.extract_strided_slice %188 {offsets = [0, 128], sizes = [8, 128], strides = [1, 1]} : vector<8x512xf32> to vector<8x128xf32>
    %196 = arith.negf %195 : vector<8x128xf32>
    %197 = math.exp %196 : vector<8x128xf32>
    %cst_65 = arith.constant 1.000000e+00 : f32
    %198 = vector.broadcast %cst_65 : f32 to vector<8x128xf32>
    %199 = arith.addf %198, %197 : vector<8x128xf32>
    %200 = arith.divf %198, %199 : vector<8x128xf32>
    %201 = vector.extract_strided_slice %188 {offsets = [0, 256], sizes = [8, 128], strides = [1, 1]} : vector<8x512xf32> to vector<8x128xf32>
    %202 = math.tanh %201 : vector<8x128xf32>
    %203 = vector.extract_strided_slice %188 {offsets = [0, 384], sizes = [8, 128], strides = [1, 1]} : vector<8x512xf32> to vector<8x128xf32>
    %204 = arith.negf %203 : vector<8x128xf32>
    %205 = math.exp %204 : vector<8x128xf32>
    %cst_66 = arith.constant 1.000000e+00 : f32
    %206 = vector.broadcast %cst_66 : f32 to vector<8x128xf32>
    %207 = arith.addf %206, %205 : vector<8x128xf32>
    %208 = arith.divf %206, %207 : vector<8x128xf32>
    %209 = arith.mulf %200, %171 : vector<8x128xf32>
    %210 = arith.mulf %194, %202 : vector<8x128xf32>
    %211 = arith.addf %209, %210 : vector<8x128xf32>
    %212 = math.tanh %211 : vector<8x128xf32>
    %213 = arith.mulf %208, %212 : vector<8x128xf32>
    %214 = vector.broadcast %181 : i32 to vector<8x128xi32>
    %215 = arith.cmpi sgt, %16, %214 : vector<8x128xi32>
    %cst_67 = arith.constant 0.000000e+00 : f32
    %216 = vector.broadcast %cst_67 : f32 to vector<8x128xf32>
    %217 = arith.select %215, %213, %216 : vector<8x128xi1>, vector<8x128xf32>
    %218 = arith.truncf %217 : vector<8x128xf32> to vector<8x128xbf16>
    %219 = arith.index_cast %183 : i32 to index
    %c0_68 = arith.constant 0 : index
    %220 = vector.load %arg7[%219, %c0_68] : memref<32x128xbf16, #tpu.memory_space<vmem>>, vector<8x128xbf16>
    tpu.vector_store %arg7[%219, %c0_68], %218 {strides = array<i32>} : memref<32x128xbf16, #tpu.memory_space<vmem>>, vector<8x128xbf16>,
    %221 = arith.select %215, %213, %170 : vector<8x128xi1>, vector<8x128xf32>
    %222 = arith.select %215, %211, %171 : vector<8x128xi1>, vector<8x128xf32>
    %c4_i32_69 = arith.constant 4 : i32
    %c0_70 = arith.constant 0 : index
    %c0_71 = arith.constant 0 : index
    %223 = vector.load %arg9[%c0_70, %c0_71] : memref<8x128xf32, #tpu.memory_space<vmem>>, vector<8x128xf32>
    tpu.vector_store %arg9[%c0_70, %c0_71], %221 {strides = array<i32>} : memref<8x128xf32, #tpu.memory_space<vmem>>, vector<8x128xf32>,
    %c0_72 = arith.constant 0 : index
    %c0_73 = arith.constant 0 : index
    %224 = vector.load %arg10[%c0_72, %c0_73] : memref<8x128xf32, #tpu.memory_space<vmem>>, vector<8x128xf32>
    tpu.vector_store %arg10[%c0_72, %c0_73], %222 {strides = array<i32>} : memref<8x128xf32, #tpu.memory_space<vmem>>, vector<8x128xf32>,
    %c1_i32_74 = arith.constant 1 : i32
    %225 = arith.cmpi eq, %arg1, %c1_i32_74 : i32
    %226 = arith.extui %225 : i1 to i32
    %c0_i32_75 = arith.constant 0 : i32
    %227 = arith.cmpi ne, %226, %c0_i32_75 : i32
    scf.if %227 {
      %c0_76 = arith.constant 0 : index
      %c0_77 = arith.constant 0 : index
      %c0_78 = arith.constant 0 : index
      %228 = vector.load %arg8[%c0_76, %c0_77, %c0_78] : memref<1x8x128xf32, #tpu.memory_space<vmem>>, vector<1x8x128xf32>
      %229 = vector.shape_cast %228 : vector<1x8x128xf32> to vector<8x128xf32>
      %230 = vector.shape_cast %221 : vector<8x128xf32> to vector<1x8x128xf32>
      tpu.vector_store %arg8[%c0_76, %c0_77, %c0_78], %230 {strides = array<i32>} : memref<1x8x128xf32, #tpu.memory_space<vmem>>, vector<1x8x128xf32>,
    } else {
    }
    return
  }
  func.func @transform_0(%arg0: i32, %arg1: i32) -> (i32, i32) {
    %c0_i32 = arith.constant 0 : i32
    %c0_i32_0 = arith.constant 0 : i32
    %c0_i32_1 = arith.constant 0 : i32
    return %c0_i32, %c0_i32_0 : i32, i32
  }
  func.func @transform_1(%arg0: i32, %arg1: i32) -> (i32, i32) {
    %c2_i32 = arith.constant 2 : i32
    %0 = arith.muli %c2_i32, %arg1 : i32
    %c1_i32 = arith.constant 1 : i32
    %1 = arith.subi %c1_i32, %0 : i32
    %2 = arith.muli %arg0, %1 : i32
    %3 = arith.addi %arg1, %2 : i32
    %c0_i32 = arith.constant 0 : i32
    %c0_i32_0 = arith.constant 0 : i32
    return %3, %c0_i32 : i32, i32
  }
  func.func @transform_2(%arg0: i32, %arg1: i32) -> (i32, i32, i32) {
    %c0_i32 = arith.constant 0 : i32
    %c0_i32_0 = arith.constant 0 : i32
    %c0_i32_1 = arith.constant 0 : i32
    return %arg0, %c0_i32, %c0_i32_0 : i32, i32, i32
  }
  func.func @transform_3(%arg0: i32, %arg1: i32) -> (i32, i32, i32) {
    %c0_i32 = arith.constant 0 : i32
    %c0_i32_0 = arith.constant 0 : i32
    %c0_i32_1 = arith.constant 0 : i32
    return %arg0, %c0_i32, %c0_i32_0 : i32, i32, i32
  }
  func.func @transform_4(%arg0: i32, %arg1: i32) -> (i32, i32, i32) {
    %c0_i32 = arith.constant 0 : i32
    %c0_i32_0 = arith.constant 0 : i32
    %c0_i32_1 = arith.constant 0 : i32
    return %arg0, %c0_i32, %c0_i32_0 : i32, i32, i32
  }
  func.func @transform_5(%arg0: i32, %arg1: i32) -> (i32, i32) {
    %c2_i32 = arith.constant 2 : i32
    %0 = arith.muli %c2_i32, %arg1 : i32
    %c1_i32 = arith.constant 1 : i32
    %1 = arith.subi %c1_i32, %0 : i32
    %2 = arith.muli %arg0, %1 : i32
    %3 = arith.addi %arg1, %2 : i32
    %c0_i32 = arith.constant 0 : i32
    return %3, %arg0 : i32, i32
  }
  func.func @transform_6(%arg0: i32, %arg1: i32) -> (i32, i32, i32) {
    %c0_i32 = arith.constant 0 : i32
    %c0_i32_0 = arith.constant 0 : i32
    %c0_i32_1 = arith.constant 0 : i32
    return %arg0, %c0_i32, %c0_i32_0 : i32, i32, i32
  }
}

</mosaic_0001>

<llo_original>
// kernel: _device_forward.2
$region0: #{_device_forward.2}
  #allocation0 [shape = 'u32[]', space=smem, size = 0x4, offset = 0x4, fixed_abs, tag = 'smem constant byte address 0x4 - core index']
  #allocation1 [shape = 'u32[144,128]{1,0:T(1,128)}', space=vmem, size = 0x12000, scoped, tag = 'internal scratch']
  #allocation2 [shape = 'f32[8,128]{1,0:T(8,128)}', space=vmem, size = 0x1000, scoped, tag = 'scratch operand']
  #allocation3 [shape = 'f32[8,128]{1,0:T(8,128)}', space=vmem, size = 0x1000, scoped, tag = 'scratch operand']
  #allocation4 [shape = 'f32[32,512]{1,0:T(8,128)}', space=vmem, size = 0x10000, scoped, tag = 'scratch operand']
  %s0 = inlined_call_operand.vmem [shape: s32[8,1], index: 0, kind: input, shape index: {}]
  %s1 = inlined_call_operand.vmem [shape: bf16[64,128], index: 1, kind: input, shape index: {}]
  %s2 = inlined_call_operand.vmem [shape: bf16[2,128,512], index: 2, kind: input, shape index: {}]
  %s3 = inlined_call_operand.vmem [shape: bf16[2,128,512], index: 3, kind: input, shape index: {}]
  %s4 = inlined_call_operand.vmem [shape: f32[2,1,512], index: 4, kind: input, shape index: {}]
  %s5 = inlined_call_operand.vmem [shape: bf16[64,256], index: 5, kind: output, shape index: {0}]
  %s6 = inlined_call_operand.vmem [shape: f32[2,8,128], index: 6, kind: output, shape index: {1}]
  %7 = xla_tuple %s5, %s6
  %s8 = sld [smem:[#allocation0]]
  $region106: #{_device_forward.2} parent=0
    _
  %s10 = ssub.s32 1, %s8
  %s11 = scalar_select 0, %s10, %s8
  $region1: #{_device_forward.2} parent=0
    #allocation5 [shape = 'u8[16384]{0}', space=vmem, size = 0x4000, scoped, tag = 'output window, operand 0']
    loop: start=0, step=1, limit=6
    $region2: #{_device_forward.2} parent=1 // loop_pre_header
      _
    $region3: #{_device_forward.2} parent=1 // loop_header
      %s13 = sphi 0, %s17
      %p14 = scmp.ge.s32.totalorder %s13, 6
      %s20 = sphi 0, %s32
      %s21 = sphi 0, %s28
      %s22 = sphi 0, %s20
      %s23 = sphi 0, %s21
      %s24 = sphi 0, %s22
      %s25 = sphi 0, %s23
      %s33 = sphi 0, %s33
      %s35 = sphi 0, %s33
      %s36 = sphi 0, %s35
      %s50 = sphi 0, %s36
      %s64 = sphi 0, %s66
      %s67 = sphi 0, %s64
      %s68 = sphi 0, %s67
      %s84 = sphi 0, %s68
      %s90 = sphi 0, %s92
      %s93 = sphi 0, %s90
      %s94 = sphi 0, %s93
      %s110 = sphi 0, %s94
      %s116 = sphi 0, %s118
      %s119 = sphi 0, %s116
      %s120 = sphi 0, %s119
      %s136 = sphi 0, %s120
      %s142 = sphi 0, %s144
      %s145 = sphi 0, %s142
      %s146 = sphi 0, %s145
      %s162 = sphi 0, %s146
      %s178 = sphi 0, %s180
      %s181 = sphi 0, %s178
      %s182 = sphi 0, %s181
      %s198 = sphi 0, %s182
      %s204 = sphi 0, %s206
      %s207 = sphi 0, %s204
      %s208 = sphi 0, %s207
      %s224 = sphi 0, %s208
    $region4: #{_device_forward.2} parent=1 // loop_header_branch
      %16 = sbr.rel (%p14) target = $region8
    $region5: #{_device_forward.2} parent=1 // loop_body
      %s18 = ssub.s32 %s13, 1
      %s19 = ssub.s32 %s13, 2
      %s26 = sadd.s32 1, %s21
      %p27 = scmp.ge.s32.totalorder %s26, 2
      %s28 = scalar_select %p27, 0, %s26
      %s29 = sadd.s32 1, %s20
      %s30 = scalar_select %p27, %s29, %s20
      %p31 = scmp.ge.s32.totalorder %s30, 2
      %s32 = scalar_select %p31, 0, %s30
      %s34 = sadd.s32 %s33, 1
      %p37 = scmp.eq.s32.totalorder %s13, 3
      %p38 = scmp.ne.s32.totalorder %s33, %s35
      %p39 = scmp.eq.s32.totalorder %s13, 0
      %p40 = por %p38, %p39
      %p41 = scmp.ne.s32.totalorder %s33, %s35
      %p42 = scmp.eq.s32.totalorder %s18, 3
      %p43 = por %p41, %p42
      %p44 = scmp.ne.s32.totalorder %s35, %s36
      %p45 = scmp.eq.s32.totalorder %s18, 0
      %p46 = por %p44, %p45
      %p47 = scmp.ne.s32.totalorder %s35, %s36
      %p48 = scmp.eq.s32.totalorder %s19, 3
      %p49 = por %p47, %p48
      %p51 = scmp.ne.s32.totalorder %s36, %s50
      %p52 = scmp.eq.s32.totalorder %s19, 0
      %p53 = por %p51, %p52
      %s54 = smul.u32 %s21, 2
      %s55 = ssub.s32 1, %s54
      %s56 = smul.u32 %s20, %s55
      %s57 = sadd.s32 %s21, %s56
      %s58 = smul.u32 %s28, 2
      %s59 = ssub.s32 1, %s58
      %s60 = smul.u32 %s32, %s59
      %s61 = sadd.s32 %s28, %s60
      %s62 = ssub.s32 %s57, %s61
      %p63 = scmp.eq.s32.totalorder %s62, 0
      %s65 = sadd.s32 %s64, 1
      %s66 = scalar_select %p63, %s64, %s65
      %p69 = pneg %p63
      %p70 = scmp.eq.s32.totalorder %s13, 3
      %p71 = por %p69, %p70
      %p72 = scmp.ne.s32.totalorder %s64, %s67
      %p73 = scmp.eq.s32.totalorder %s13, 0
      %p74 = por %p72, %p73
      %p75 = scmp.ne.s32.totalorder %s64, %s67
      %p76 = scmp.eq.s32.totalorder %s18, 3
      %p77 = por %p75, %p76
      %p78 = scmp.ne.s32.totalorder %s67, %s68
      %p79 = scmp.eq.s32.totalorder %s18, 0
      %p80 = por %p78, %p79
      %p81 = scmp.ne.s32.totalorder %s67, %s68
      %p82 = scmp.eq.s32.totalorder %s19, 3
      %p83 = por %p81, %p82
      %p85 = scmp.ne.s32.totalorder %s68, %s84
      %p86 = scmp.eq.s32.totalorder %s19, 0
      %p87 = por %p85, %p86
      %s88 = ssub.s32 %s20, %s32
      %p89 = scmp.eq.s32.totalorder %s88, 0
      %s91 = sadd.s32 %s90, 1
      %s92 = scalar_select %p89, %s90, %s91
      %p95 = pneg %p89
      %p96 = scmp.eq.s32.totalorder %s13, 3
      %p97 = por %p95, %p96
      %p98 = scmp.ne.s32.totalorder %s90, %s93
      %p99 = scmp.eq.s32.totalorder %s13, 0
      %p100 = por %p98, %p99
      %p101 = scmp.ne.s32.totalorder %s90, %s93
      %p102 = scmp.eq.s32.totalorder %s18, 3
      %p103 = por %p101, %p102
      %p104 = scmp.ne.s32.totalorder %s93, %s94
      %p105 = scmp.eq.s32.totalorder %s18, 0
      %p106 = por %p104, %p105
      %p107 = scmp.ne.s32.totalorder %s93, %s94
      %p108 = scmp.eq.s32.totalorder %s19, 3
      %p109 = por %p107, %p108
      %p111 = scmp.ne.s32.totalorder %s94, %s110
      %p112 = scmp.eq.s32.totalorder %s19, 0
      %p113 = por %p111, %p112
      %s114 = ssub.s32 %s20, %s32
      %p115 = scmp.eq.s32.totalorder %s114, 0
      %s117 = sadd.s32 %s116, 1
      %s118 = scalar_select %p115, %s116, %s117
      %p121 = pneg %p115
      %p122 = scmp.eq.s32.totalorder %s13, 3
      %p123 = por %p121, %p122
      %p124 = scmp.ne.s32.totalorder %s116, %s119
      %p125 = scmp.eq.s32.totalorder %s13, 0
      %p126 = por %p124, %p125
      %p127 = scmp.ne.s32.totalorder %s116, %s119
      %p128 = scmp.eq.s32.totalorder %s18, 3
      %p129 = por %p127, %p128
      %p130 = scmp.ne.s32.totalorder %s119, %s120
      %p131 = scmp.eq.s32.totalorder %s18, 0
      %p132 = por %p130, %p131
      %p133 = scmp.ne.s32.totalorder %s119, %s120
      %p134 = scmp.eq.s32.totalorder %s19, 3
      %p135 = por %p133, %p134
      %p137 = scmp.ne.s32.totalorder %s120, %s136
      %p138 = scmp.eq.s32.totalorder %s19, 0
      %p139 = por %p137, %p138
      %s140 = ssub.s32 %s20, %s32
      %p141 = scmp.eq.s32.totalorder %s140, 0
      %s143 = sadd.s32 %s142, 1
      %s144 = scalar_select %p141, %s142, %s143
      %p147 = pneg %p141
      %p148 = scmp.eq.s32.totalorder %s13, 3
      %p149 = por %p147, %p148
      %p150 = scmp.ne.s32.totalorder %s142, %s145
      %p151 = scmp.eq.s32.totalorder %s13, 0
      %p152 = por %p150, %p151
      %p153 = scmp.ne.s32.totalorder %s142, %s145
      %p154 = scmp.eq.s32.totalorder %s18, 3
      %p155 = por %p153, %p154
      %p156 = scmp.ne.s32.totalorder %s145, %s146
      %p157 = scmp.eq.s32.totalorder %s18, 0
      %p158 = por %p156, %p157
      %p159 = scmp.ne.s32.totalorder %s145, %s146
      %p160 = scmp.eq.s32.totalorder %s19, 3
      %p161 = por %p159, %p160
      %p163 = scmp.ne.s32.totalorder %s146, %s162
      %p164 = scmp.eq.s32.totalorder %s19, 0
      %p165 = por %p163, %p164
      %s166 = smul.u32 %s21, 2
      %s167 = ssub.s32 1, %s166
      %s168 = smul.u32 %s20, %s167
      %s169 = sadd.s32 %s21, %s168
      %s170 = smul.u32 %s28, 2
      %s171 = ssub.s32 1, %s170
      %s172 = smul.u32 %s32, %s171
      %s173 = sadd.s32 %s28, %s172
      %s174 = ssub.s32 %s169, %s173
      %s175 = ssub.s32 %s20, %s32
      %s176 = sor.u32 %s174, %s175
      %p177 = scmp.eq.s32.totalorder %s176, 0
      %s179 = sadd.s32 %s178, 1
      %s180 = scalar_select %p177, %s178, %s179
      %p183 = pneg %p177
      %p184 = scmp.eq.s32.totalorder %s13, 3
      %p185 = por %p183, %p184
      %p186 = scmp.ne.s32.totalorder %s178, %s181
      %p187 = scmp.eq.s32.totalorder %s13, 0
      %p188 = por %p186, %p187
      %p189 = scmp.ne.s32.totalorder %s178, %s181
      %p190 = scmp.eq.s32.totalorder %s18, 3
      %p191 = por %p189, %p190
      %p192 = scmp.ne.s32.totalorder %s181, %s182
      %p193 = scmp.eq.s32.totalorder %s18, 0
      %p194 = por %p192, %p193
      %p195 = scmp.ne.s32.totalorder %s181, %s182
      %p196 = scmp.eq.s32.totalorder %s19, 3
      %p197 = por %p195, %p196
      %p199 = scmp.ne.s32.totalorder %s182, %s198
      %p200 = scmp.eq.s32.totalorder %s19, 0
      %p201 = por %p199, %p200
      %s202 = ssub.s32 %s20, %s32
      %p203 = scmp.eq.s32.totalorder %s202, 0
      %s205 = sadd.s32 %s204, 1
      %s206 = scalar_select %p203, %s204, %s205
      %p209 = pneg %p203
      %p210 = scmp.eq.s32.totalorder %s13, 3
      %p211 = por %p209, %p210
      %p212 = scmp.ne.s32.totalorder %s204, %s207
      %p213 = scmp.eq.s32.totalorder %s13, 0
      %p214 = por %p212, %p213
      %p215 = scmp.ne.s32.totalorder %s204, %s207
      %p216 = scmp.eq.s32.totalorder %s18, 3
      %p217 = por %p215, %p216
      %p218 = scmp.ne.s32.totalorder %s207, %s208
      %p219 = scmp.eq.s32.totalorder %s18, 0
      %p220 = por %p218, %p219
      %p221 = scmp.ne.s32.totalorder %s207, %s208
      %p222 = scmp.eq.s32.totalorder %s19, 3
      %p223 = por %p221, %p222
      %p225 = scmp.ne.s32.totalorder %s208, %s224
      %p226 = scmp.eq.s32.totalorder %s19, 0
      %p227 = por %p225, %p226
      %p228 = scmp.le.s32.totalorder 1, %s13
      %p229 = scmp.lt.s32.totalorder %s13, 5
      %p230 = pnand %p228, %p229
      %p231 = pneg %p230
      // Predicated region
      $region9: #{_device_forward.2} parent=5 // pred_check
        _
      $region10: #{_device_forward.2} parent=5 // pred_check_branch
        %233 = sbr.rel (%p230) target = $region12
      $region11: #{_device_forward.2} parent=5 // pred_region
        %s234 = ssub.s32 %s13, 1
        // Predicated region
        $region13: #{_device_forward.2} parent=11 // pred_check
          %p235 = pneg %p46
        $region14: #{_device_forward.2} parent=11 // pred_check_branch
          %237 = sbr.rel (%p235) target = $region16
        $region15: #{_device_forward.2} parent=11 // pred_region
          _
        $region16: #{_device_forward.2} parent=11 // pred_fallthru
          _
      $region12: #{_device_forward.2} parent=5 // pred_fallthru
        _
      %p238 = scmp.lt.s32.totalorder %s13, 4
      // Predicated region
      $region17: #{_device_forward.2} parent=5 // pred_check
        %p239 = pneg %p238
      $region18: #{_device_forward.2} parent=5 // pred_check_branch
        %241 = sbr.rel (%p239) target = $region20
      $region19: #{_device_forward.2} parent=5 // pred_region
        // Predicated region
        $region21: #{_device_forward.2} parent=19 // pred_check
          %p242 = pneg %p74
        $region22: #{_device_forward.2} parent=19 // pred_check_branch
          %244 = sbr.rel (%p242) target = $region24
        $region23: #{_device_forward.2} parent=19 // pred_region
          %s245 = smul.u32 %s21, 2
          %s246 = ssub.s32 1, %s245
          %s247 = smul.u32 %s20, %s246
          %s248 = sadd.s32 %s21, %s247
          %s249 = smul.u32 4, %s248
          %p250 = scmp.lt.s32.totalorder %s249, 7
          %s251 = scalar_select %p250, %s249, 7
          %s252 = smul.addr %s251, 4
          %s253 = scalar_lea.vmem %s1, %s252
          %s254 = smul.u32 %s21, 2
          %s255 = ssub.s32 1, %s254
          %s256 = smul.u32 %s20, %s255
          %s257 = sadd.s32 %s21, %s256
          %s258 = smul.u32 4, %s257
        $region24: #{_device_forward.2} parent=19 // pred_fallthru
          _
        // Predicated region
        $region25: #{_device_forward.2} parent=19 // pred_check
          %p259 = pneg %p100
        $region26: #{_device_forward.2} parent=19 // pred_check_branch
          %261 = sbr.rel (%p259) target = $region28
        $region27: #{_device_forward.2} parent=19 // pred_region
          %p262 = scmp.lt.s32.totalorder %s20, 1
          %s263 = scalar_select %p262, %s20, 1
          %s264 = smul.addr %s263, 64
          %s265 = smul.addr %s264, 4
          %s266 = scalar_lea.vmem %s2, %s265
        $region28: #{_device_forward.2} parent=19 // pred_fallthru
          _
        // Predicated region
        $region29: #{_device_forward.2} parent=19 // pred_check
          %p267 = pneg %p126
        $region30: #{_device_forward.2} parent=19 // pred_check_branch
          %269 = sbr.rel (%p267) target = $region32
        $region31: #{_device_forward.2} parent=19 // pred_region
          %p270 = scmp.lt.s32.totalorder %s20, 1
          %s271 = scalar_select %p270, %s20, 1
          %s272 = smul.addr %s271, 64
          %s273 = smul.addr %s272, 4
          %s274 = scalar_lea.vmem %s3, %s273
        $region32: #{_device_forward.2} parent=19 // pred_fallthru
          _
        // Predicated region
        $region33: #{_device_forward.2} parent=19 // pred_check
          %p275 = pneg %p152
        $region34: #{_device_forward.2} parent=19 // pred_check_branch
          %277 = sbr.rel (%p275) target = $region36
        $region35: #{_device_forward.2} parent=19 // pred_region
          %p278 = scmp.lt.s32.totalorder %s20, 1
          %s279 = scalar_select %p278, %s20, 1
          %s280 = smul.addr %s279, 4
          %s281 = scalar_lea.vmem %s4, %s280
        $region36: #{_device_forward.2} parent=19 // pred_fallthru
          _
      $region20: #{_device_forward.2} parent=5 // pred_fallthru
        _
      %p282 = scmp.le.s32.totalorder 1, %s13
      %p283 = scmp.lt.s32.totalorder %s13, 5
      %p284 = pnand %p282, %p283
      %p285 = pneg %p284
      // Predicated region
      $region37: #{_device_forward.2} parent=5 // pred_check
        _
      $region38: #{_device_forward.2} parent=5 // pred_check_branch
        %287 = sbr.rel (%p284) target = $region40
      $region39: #{_device_forward.2} parent=5 // pred_region
        %s288 = ssub.s32 %s13, 1
        %p289 = pneg %p46
        %p290 = pneg %p43
        %s291 = smul.u32 %s23, 2
        %s292 = ssub.s32 1, %s291
        %s293 = smul.u32 %s22, %s292
        %s294 = sadd.s32 %s23, %s293
        %s295 = smul.u32 4, %s294
        %p296 = scmp.lt.s32.totalorder %s295, 7
        %s297 = scalar_select %p296, %s295, 7
        %s298 = smul.addr %s297, 4
        %s299 = scalar_lea.vmem %s1, %s298
        %p300 = pneg %p80
        %p301 = pneg %p77
        %p302 = scmp.lt.s32.totalorder %s22, 1
        %s303 = scalar_select %p302, %s22, 1
        %s304 = smul.addr %s303, 64
        %s305 = smul.addr %s304, 4
        %s306 = scalar_lea.vmem %s2, %s305
        %p307 = pneg %p106
        %p308 = pneg %p103
        %p309 = scmp.lt.s32.totalorder %s22, 1
        %s310 = scalar_select %p309, %s22, 1
        %s311 = smul.addr %s310, 64
        %s312 = smul.addr %s311, 4
        %s313 = scalar_lea.vmem %s3, %s312
        %p314 = pneg %p132
        %p315 = pneg %p129
        %p316 = scmp.lt.s32.totalorder %s22, 1
        %s317 = scalar_select %p316, %s22, 1
        %s318 = smul.addr %s317, 4
        %s319 = scalar_lea.vmem %s4, %s318
        %p320 = pneg %p158
        %p321 = pneg %p155
        %p322 = pneg %p194
        %p323 = pneg %p191
        %s324 = sand.u32 %s181, 1
        %s325 = sand.u32 %s181, 1
        %s326 = smul.addr %s325, 16
        %s327 = scalar_lea.vmem [#allocation5], %s326
        %p328 = pneg %p220
        %p329 = pneg %p217
        %p330 = scmp.lt.s32.totalorder %s22, 1
        %s331 = scalar_select %p330, %s22, 1
        %s332 = smul.addr %s331, 8
        %s333 = scalar_lea.vmem %s6, %s332
        %s334 = smul.u32 %s23, 2
        %s335 = ssub.s32 1, %s334
        %s336 = smul.u32 %s22, %s335
        %s337 = sadd.s32 %s23, %s336
        %s338 = smul.u32 4, %s337
        %p339 = scmp.lt.s32.totalorder %s338, 7
        %s340 = scalar_select %p339, %s338, 7
        %s341 = smul.addr %s340, 4
        %s342 = scalar_lea.vmem %s1, %s341
        %s343 = smul.u32 %s23, 2
        %s344 = ssub.s32 1, %s343
        %s345 = smul.u32 %s22, %s344
        %s346 = sadd.s32 %s23, %s345
        %s347 = smul.u32 4, %s346
        %p348 = scmp.lt.s32.totalorder %s22, 1
        %s349 = scalar_select %p348, %s22, 1
        %s350 = smul.addr %s349, 64
        %s351 = smul.addr %s350, 4
        %s352 = scalar_lea.vmem %s2, %s351
        %p353 = scmp.lt.s32.totalorder %s22, 1
        %s354 = scalar_select %p353, %s22, 1
        %s355 = smul.addr %s354, 64
        %s356 = smul.addr %s355, 4
        %s357 = scalar_lea.vmem %s3, %s356
        %p358 = scmp.lt.s32.totalorder %s22, 1
        %s359 = scalar_select %p358, %s22, 1
        %s360 = smul.addr %s359, 4
        %s361 = scalar_lea.vmem %s4, %s360
        %s362 = smul.u32 %s23, 2
        %s363 = ssub.s32 1, %s362
        %s364 = smul.u32 %s22, %s363
        %s365 = sadd.s32 %s23, %s364
        %s366 = smul.u32 4, %s365
        %p367 = scmp.lt.s32.totalorder %s22, 1
        %s368 = scalar_select %p367, %s22, 1
        %s369 = smul.addr %s368, 8
        %s370 = scalar_lea.vmem %s6, %s369
        %p372 = scmp.eq.s32.totalorder %s23, 0
        // Predicated region
        $region41: #{_device_forward.2} parent=39 // pred_check
          %p373 = pneg %p372
        $region42: #{_device_forward.2} parent=39 // pred_check_branch
          %375 = sbr.rel (%p373) target = $region44
        $region43: #{_device_forward.2} parent=39 // pred_region
          %376 = vst [vmem:[#allocation2] sm:$0xff] 0.0
          %377 = vst [vmem:[#allocation3] sm:$0xff] 0.0
        $region44: #{_device_forward.2} parent=39 // pred_fallthru
          _
        %v378 = vld [vmem:[%s342] sm:$0xf]
        %v379 = vld [vmem:[%s342 + $0x4] sm:$0xf]
        %v380 = vld [vmem:[%s342 + $0x8] sm:$0xf]
        %v381 = vld [vmem:[%s342 + $0xc] sm:$0xf]
        %v382 = vld [vmem:[%s352] sm:$0xff]
        %v383 = vld [vmem:[%s352 + $0x8] sm:$0xff]
        %v384 = vld [vmem:[%s352 + $0x10] sm:$0xff]
        %v385 = vld [vmem:[%s352 + $0x18] sm:$0xff]
        %v386 = vld [vmem:[%s352 + $0x20] sm:$0xff]
        %v387 = vld [vmem:[%s352 + $0x28] sm:$0xff]
        %v388 = vld [vmem:[%s352 + $0x30] sm:$0xff]
        %v389 = vld [vmem:[%s352 + $0x38] sm:$0xff]
        %v390 = vld [vmem:[%s352 + $0x40] sm:$0xff]
        %v391 = vld [vmem:[%s352 + $0x48] sm:$0xff]
        %v392 = vld [vmem:[%s352 + $0x50] sm:$0xff]
        %v393 = vld [vmem:[%s352 + $0x58] sm:$0xff]
        %v394 = vld [vmem:[%s352 + $0x60] sm:$0xff]
        %v395 = vld [vmem:[%s352 + $0x68] sm:$0xff]
        %v396 = vld [vmem:[%s352 + $0x70] sm:$0xff]
        %v397 = vld [vmem:[%s352 + $0x78] sm:$0xff]
        %v398 = vld [vmem:[%s352 + $0x80] sm:$0xff]
        %v399 = vld [vmem:[%s352 + $0x88] sm:$0xff]
        %v400 = vld [vmem:[%s352 + $0x90] sm:$0xff]
        %v401 = vld [vmem:[%s352 + $0x98] sm:$0xff]
        %v402 = vld [vmem:[%s352 + $0xa0] sm:$0xff]
        %v403 = vld [vmem:[%s352 + $0xa8] sm:$0xff]
        %v404 = vld [vmem:[%s352 + $0xb0] sm:$0xff]
        %v405 = vld [vmem:[%s352 + $0xb8] sm:$0xff]
        %v406 = vld [vmem:[%s352 + $0xc0] sm:$0xff]
        %v407 = vld [vmem:[%s352 + $0xc8] sm:$0xff]
        %v408 = vld [vmem:[%s352 + $0xd0] sm:$0xff]
        %v409 = vld [vmem:[%s352 + $0xd8] sm:$0xff]
        %v410 = vld [vmem:[%s352 + $0xe0] sm:$0xff]
        %v411 = vld [vmem:[%s352 + $0xe8] sm:$0xff]
        %v412 = vld [vmem:[%s352 + $0xf0] sm:$0xff]
        %v413 = vld [vmem:[%s352 + $0xf8] sm:$0xff]
        %v414 = vld [vmem:[%s361] sm:$0xf]
        %v416 = vlaneseq
        %v417 = vshrl.u32 %v416, 7
        %v418 = vsub.s32 0, %v417
        %v419 = vrot.slane %v414, %v418
        %v420 = vlaneseq
        %v421 = vshrl.u32 %v420, 7
        %v422 = vsub.s32 1, %v421
        %v423 = vrot.slane %v414, %v422
        %v424 = vlaneseq
        %v425 = vshrl.u32 %v424, 7
        %v426 = vsub.s32 2, %v425
        %v427 = vrot.slane %v414, %v426
        %v428 = vlaneseq
        %v429 = vshrl.u32 %v428, 7
        %v430 = vsub.s32 3, %v429
        %v431 = vrot.slane %v414, %v430
        %v440 = vunpack.c.l.b16 %v378
        %v441 = vunpack.c.l.b16 %v379
        %v442 = vunpack.c.l.b16 %v380
        %v443 = vunpack.c.l.b16 %v381
        %v444 = vpack.c.b16 %v441, %v440
        %v445 = vpack.c.b16 %v443, %v442
        %v480 = vunpack.c.l.b16 %v382
        %v481 = vunpack.c.h.b16 %v382
        %v482 = vunpack.c.l.b16 %v383
        %v483 = vunpack.c.h.b16 %v383
        %v484 = vunpack.c.l.b16 %v384
        %v485 = vunpack.c.h.b16 %v384
        %v486 = vunpack.c.l.b16 %v385
        %v487 = vunpack.c.h.b16 %v385
        %v488 = vunpack.c.l.b16 %v386
        %v489 = vunpack.c.h.b16 %v386
        %v490 = vunpack.c.l.b16 %v387
        %v491 = vunpack.c.h.b16 %v387
        %v492 = vunpack.c.l.b16 %v388
        %v493 = vunpack.c.h.b16 %v388
        %v494 = vunpack.c.l.b16 %v389
        %v495 = vunpack.c.h.b16 %v389
        %v496 = vunpack.c.l.b16 %v390
        %v497 = vunpack.c.h.b16 %v390
        %v498 = vunpack.c.l.b16 %v391
        %v499 = vunpack.c.h.b16 %v391
        %v500 = vunpack.c.l.b16 %v392
        %v501 = vunpack.c.h.b16 %v392
        %v502 = vunpack.c.l.b16 %v393
        %v503 = vunpack.c.h.b16 %v393
        %v504 = vunpack.c.l.b16 %v394
        %v505 = vunpack.c.h.b16 %v394
        %v506 = vunpack.c.l.b16 %v395
        %v507 = vunpack.c.h.b16 %v395
        %v508 = vunpack.c.l.b16 %v396
        %v509 = vunpack.c.h.b16 %v396
        %v510 = vunpack.c.l.b16 %v397
        %v511 = vunpack.c.h.b16 %v397
        %v512 = vunpack.c.l.b16 %v398
        %v513 = vunpack.c.h.b16 %v398
        %v514 = vunpack.c.l.b16 %v399
        %v515 = vunpack.c.h.b16 %v399
        %v516 = vunpack.c.l.b16 %v400
        %v517 = vunpack.c.h.b16 %v400
        %v518 = vunpack.c.l.b16 %v401
        %v519 = vunpack.c.h.b16 %v401
        %v520 = vunpack.c.l.b16 %v402
        %v521 = vunpack.c.h.b16 %v402
        %v522 = vunpack.c.l.b16 %v403
        %v523 = vunpack.c.h.b16 %v403
        %v524 = vunpack.c.l.b16 %v404
        %v525 = vunpack.c.h.b16 %v404
        %v526 = vunpack.c.l.b16 %v405
        %v527 = vunpack.c.h.b16 %v405
        %v528 = vunpack.c.l.b16 %v406
        %v529 = vunpack.c.h.b16 %v406
        %v530 = vunpack.c.l.b16 %v407
        %v531 = vunpack.c.h.b16 %v407
        %v532 = vunpack.c.l.b16 %v408
        %v533 = vunpack.c.h.b16 %v408
        %v534 = vunpack.c.l.b16 %v409
        %v535 = vunpack.c.h.b16 %v409
        %v536 = vunpack.c.l.b16 %v410
        %v537 = vunpack.c.h.b16 %v410
        %v538 = vunpack.c.l.b16 %v411
        %v539 = vunpack.c.h.b16 %v411
        %v540 = vunpack.c.l.b16 %v412
        %v541 = vunpack.c.h.b16 %v412
        %v542 = vunpack.c.l.b16 %v413
        %v543 = vunpack.c.h.b16 %v413
        %v544 = vpack.c.b16 %v484, %v480
        %v545 = vpack.c.b16 %v485, %v481
        %v546 = vpack.c.b16 %v486, %v482
        %v547 = vpack.c.b16 %v487, %v483
        %v548 = vpack.c.b16 %v492, %v488
        %v549 = vpack.c.b16 %v493, %v489
        %v550 = vpack.c.b16 %v494, %v490
        %v551 = vpack.c.b16 %v495, %v491
        %v552 = vpack.c.b16 %v500, %v496
        %v553 = vpack.c.b16 %v501, %v497
        %v554 = vpack.c.b16 %v502, %v498
        %v555 = vpack.c.b16 %v503, %v499
        %v556 = vpack.c.b16 %v508, %v504
        %v557 = vpack.c.b16 %v509, %v505
        %v558 = vpack.c.b16 %v510, %v506
        %v559 = vpack.c.b16 %v511, %v507
        %v560 = vpack.c.b16 %v516, %v512
        %v561 = vpack.c.b16 %v517, %v513
        %v562 = vpack.c.b16 %v518, %v514
        %v563 = vpack.c.b16 %v519, %v515
        %v564 = vpack.c.b16 %v524, %v520
        %v565 = vpack.c.b16 %v525, %v521
        %v566 = vpack.c.b16 %v526, %v522
        %v567 = vpack.c.b16 %v527, %v523
        %v568 = vpack.c.b16 %v532, %v528
        %v569 = vpack.c.b16 %v533, %v529
        %v570 = vpack.c.b16 %v534, %v530
        %v571 = vpack.c.b16 %v535, %v531
        %v572 = vpack.c.b16 %v540, %v536
        %v573 = vpack.c.b16 %v541, %v537
        %v574 = vpack.c.b16 %v542, %v538
        %v575 = vpack.c.b16 %v543, %v539
        %608 = vmatprep.subr.bf16.mxu0 %v545
        %609 = vmatpush1.bf16.msra.mxu0 %v544
        %610 = vmatprep.subr.bf16.mxu0 %v549
        %611 = vmatpush1.bf16.msra.mxu0 %v548
        %612 = vmatprep.subr.bf16.mxu0 %v553
        %613 = vmatpush1.bf16.msra.mxu0 %v552
        %614 = vmatprep.subr.bf16.mxu0 %v557
        %615 = vmatpush1.bf16.msra.mxu0 %v556
        %616 = vmatprep.subr.bf16.mxu0 %v561
        %617 = vmatpush1.bf16.msra.mxu0 %v560
        %618 = vmatprep.subr.bf16.mxu0 %v565
        %619 = vmatpush1.bf16.msra.mxu0 %v564
        %620 = vmatprep.subr.bf16.mxu0 %v569
        %621 = vmatpush1.bf16.msra.mxu0 %v568
        %622 = vmatprep.subr.bf16.mxu0 %v573
        %623 = vmatpush1.bf16.msra.mxu0 %v572
        %624 = vmatprep.subr.bf16.mxu0 0
        %625 = vmatpush1.bf16.msra.mxu0 0
        %626 = vmatprep.subr.bf16.mxu0 0
        %627 = vmatpush1.bf16.msra.mxu0 0
        %628 = vmatprep.subr.bf16.mxu0 0
        %629 = vmatpush1.bf16.msra.mxu0 0
        %630 = vmatprep.subr.bf16.mxu0 0
        %631 = vmatpush1.bf16.msra.mxu0 0
        %632 = vmatprep.subr.bf16.mxu0 0
        %633 = vmatpush1.bf16.msra.mxu0 0
        %634 = vmatprep.subr.bf16.mxu0 0
        %635 = vmatpush1.bf16.msra.mxu0 0
        %636 = vmatprep.subr.bf16.mxu0 0
        %637 = vmatpush1.bf16.msra.mxu0 0
        %638 = vmatprep.subr.bf16.mxu0 0
        %639 = vmatpush1.bf16.msra.mxu0 0
        %640 = vmatprep.mubr.bf16.mxu0 0
        %641 = vmatmul.mubr.bf16.gmra.mrb[0].mxu0 %v444
        %v642 = vpop.f32.mrb[0].mxu0
        %v643 = vadd.f32 %v419, %v642
        %v644 = vpop.f32.mrb[0].mxu0
        %v645 = vadd.f32 %v423, %v644
        %v646 = vpop.f32.mrb[0].mxu0
        %v647 = vadd.f32 %v419, %v646
        %v648 = vpop.f32.mrb[0].mxu0
        %v649 = vadd.f32 %v423, %v648
        %650 = vmatprep.mubr.bf16.mxu0 0
        %651 = vmatmul.mubr.bf16.gmra.mrb[0].mxu0 %v445
        %v652 = vpop.f32.mrb[0].mxu0
        %v653 = vadd.f32 %v419, %v652
        %v654 = vpop.f32.mrb[0].mxu0
        %v655 = vadd.f32 %v423, %v654
        %v656 = vpop.f32.mrb[0].mxu0
        %v657 = vadd.f32 %v419, %v656
        %v658 = vpop.f32.mrb[0].mxu0
        %v659 = vadd.f32 %v423, %v658
        %660 = vdwg.mxu0
        %661 = vmatprep.subr.bf16.mxu0 %v547
        %662 = vmatpush1.bf16.msra.mxu0 %v546
        %663 = vmatprep.subr.bf16.mxu0 %v551
        %664 = vmatpush1.bf16.msra.mxu0 %v550
        %665 = vmatprep.subr.bf16.mxu0 %v555
        %666 = vmatpush1.bf16.msra.mxu0 %v554
        %667 = vmatprep.subr.bf16.mxu0 %v559
        %668 = vmatpush1.bf16.msra.mxu0 %v558
        %669 = vmatprep.subr.bf16.mxu0 %v563
        %670 = vmatpush1.bf16.msra.mxu0 %v562
        %671 = vmatprep.subr.bf16.mxu0 %v567
        %672 = vmatpush1.bf16.msra.mxu0 %v566
        %673 = vmatprep.subr.bf16.mxu0 %v571
        %674 = vmatpush1.bf16.msra.mxu0 %v570
        %675 = vmatprep.subr.bf16.mxu0 %v575
        %676 = vmatpush1.bf16.msra.mxu0 %v574
        %677 = vmatprep.subr.bf16.mxu0 0
        %678 = vmatpush1.bf16.msra.mxu0 0
        %679 = vmatprep.subr.bf16.mxu0 0
        %680 = vmatpush1.bf16.msra.mxu0 0
        %681 = vmatprep.subr.bf16.mxu0 0
        %682 = vmatpush1.bf16.msra.mxu0 0
        %683 = vmatprep.subr.bf16.mxu0 0
        %684 = vmatpush1.bf16.msra.mxu0 0
        %685 = vmatprep.subr.bf16.mxu0 0
        %686 = vmatpush1.bf16.msra.mxu0 0
        %687 = vmatprep.subr.bf16.mxu0 0
        %688 = vmatpush1.bf16.msra.mxu0 0
        %689 = vmatprep.subr.bf16.mxu0 0
        %690 = vmatpush1.bf16.msra.mxu0 0
        %691 = vmatprep.subr.bf16.mxu0 0
        %692 = vmatpush1.bf16.msra.mxu0 0
        %693 = vmatprep.mubr.bf16.mxu0 0
        %694 = vmatmul.mubr.bf16.gmra.mrb[0].mxu0 %v444
        %v695 = vpop.f32.mrb[0].mxu0
        %v696 = vadd.f32 %v427, %v695
        %v697 = vpop.f32.mrb[0].mxu0
        %v698 = vadd.f32 %v431, %v697
        %v699 = vpop.f32.mrb[0].mxu0
        %v700 = vadd.f32 %v427, %v699
        %v701 = vpop.f32.mrb[0].mxu0
        %v702 = vadd.f32 %v431, %v701
        %703 = vmatprep.mubr.bf16.mxu0 0
        %704 = vmatmul.mubr.bf16.gmra.mrb[0].mxu0 %v445
        %v705 = vpop.f32.mrb[0].mxu0
        %v706 = vadd.f32 %v427, %v705
        %v707 = vpop.f32.mrb[0].mxu0
        %v708 = vadd.f32 %v431, %v707
        %v709 = vpop.f32.mrb[0].mxu0
        %v710 = vadd.f32 %v427, %v709
        %v711 = vpop.f32.mrb[0].mxu0
        %v712 = vadd.f32 %v431, %v711
        %713 = vdwg.mxu0
        %714 = vst [vmem:[#allocation4] sm:$0xff] %v643
        %715 = vst [vmem:[#allocation4 + $0x8] sm:$0xff] %v645
        %716 = vst [vmem:[#allocation4 + $0x10] sm:$0xff] %v696
        %717 = vst [vmem:[#allocation4 + $0x18] sm:$0xff] %v698
        %718 = vst [vmem:[#allocation4 + $0x20] sm:$0xff] %v647
        %719 = vst [vmem:[#allocation4 + $0x28] sm:$0xff] %v649
        %720 = vst [vmem:[#allocation4 + $0x30] sm:$0xff] %v700
        %721 = vst [vmem:[#allocation4 + $0x38] sm:$0xff] %v702
        %722 = vst [vmem:[#allocation4 + $0x40] sm:$0xff] %v653
        %723 = vst [vmem:[#allocation4 + $0x48] sm:$0xff] %v655
        %724 = vst [vmem:[#allocation4 + $0x50] sm:$0xff] %v706
        %725 = vst [vmem:[#allocation4 + $0x58] sm:$0xff] %v708
        %726 = vst [vmem:[#allocation4 + $0x60] sm:$0xff] %v657
        %727 = vst [vmem:[#allocation4 + $0x68] sm:$0xff] %v659
        %728 = vst [vmem:[#allocation4 + $0x70] sm:$0xff] %v710
        %729 = vst [vmem:[#allocation4 + $0x78] sm:$0xff] %v712
        %v730 = vld [vmem:[%s357] sm:$0xff]
        %v731 = vld [vmem:[%s357 + $0x8] sm:$0xff]
        %v732 = vld [vmem:[%s357 + $0x10] sm:$0xff]
        %v733 = vld [vmem:[%s357 + $0x18] sm:$0xff]
        %v734 = vld [vmem:[%s357 + $0x20] sm:$0xff]
        %v735 = vld [vmem:[%s357 + $0x28] sm:$0xff]
        %v736 = vld [vmem:[%s357 + $0x30] sm:$0xff]
        %v737 = vld [vmem:[%s357 + $0x38] sm:$0xff]
        %v738 = vld [vmem:[%s357 + $0x40] sm:$0xff]
        %v739 = vld [vmem:[%s357 + $0x48] sm:$0xff]
        %v740 = vld [vmem:[%s357 + $0x50] sm:$0xff]
        %v741 = vld [vmem:[%s357 + $0x58] sm:$0xff]
        %v742 = vld [vmem:[%s357 + $0x60] sm:$0xff]
        %v743 = vld [vmem:[%s357 + $0x68] sm:$0xff]
        %v744 = vld [vmem:[%s357 + $0x70] sm:$0xff]
        %v745 = vld [vmem:[%s357 + $0x78] sm:$0xff]
        %v746 = vld [vmem:[%s357 + $0x80] sm:$0xff]
        %v747 = vld [vmem:[%s357 + $0x88] sm:$0xff]
        %v748 = vld [vmem:[%s357 + $0x90] sm:$0xff]
        %v749 = vld [vmem:[%s357 + $0x98] sm:$0xff]
        %v750 = vld [vmem:[%s357 + $0xa0] sm:$0xff]
        %v751 = vld [vmem:[%s357 + $0xa8] sm:$0xff]
        %v752 = vld [vmem:[%s357 + $0xb0] sm:$0xff]
        %v753 = vld [vmem:[%s357 + $0xb8] sm:$0xff]
        %v754 = vld [vmem:[%s357 + $0xc0] sm:$0xff]
        %v755 = vld [vmem:[%s357 + $0xc8] sm:$0xff]
        %v756 = vld [vmem:[%s357 + $0xd0] sm:$0xff]
        %v757 = vld [vmem:[%s357 + $0xd8] sm:$0xff]
        %v758 = vld [vmem:[%s357 + $0xe0] sm:$0xff]
        %v759 = vld [vmem:[%s357 + $0xe8] sm:$0xff]
        %v760 = vld [vmem:[%s357 + $0xf0] sm:$0xff]
        %v761 = vld [vmem:[%s357 + $0xf8] sm:$0xff]
        %v762 = vld [vmem:[%s0] sm:$0xff]
        %763 = vset.pattern.permute.xlu0 0
        %764 = vperm.xlu0 %763, %v762
        %v765 = vpop.permute.xlu0 %764
        %v766 = vld [vmem:[#allocation2] sm:$0xff]
        %v767 = vld [vmem:[#allocation3] sm:$0xff]
        %s768 = smul.u32 %s23, 4
        %s769 = smul.u32 %s23, 8
        %s770 = ssub.s32 7, %s769
        %s771 = smul.u32 %s22, %s770
        %s772 = sadd.s32 %s768, %s771
        %s773 = smul.u32 %s22, 24
        %s774 = sshra.s32 %s773, 3
        %s775 = sand.u32 %s773, 7
        %s776 = smul.u32 %s774, 4
        %s777 = smul.addr %s776, 8
        %s778 = scalar_lea.vmem [#allocation4], %s777
        %v779 = vld [vmem:[%s778] sm:$0xff]
        %v780 = vld [vmem:[%s778 + $0x8] sm:$0xff]
        %v781 = vld [vmem:[%s778 + $0x10] sm:$0xff]
        %v782 = vld [vmem:[%s778 + $0x18] sm:$0xff]
        %v783 = vpack.c.bf16 %v766, %v766
        %v816 = vunpack.c.l.b16 %v730
        %v817 = vunpack.c.h.b16 %v730
        %v818 = vunpack.c.l.b16 %v731
        %v819 = vunpack.c.h.b16 %v731
        %v820 = vunpack.c.l.b16 %v732
        %v821 = vunpack.c.h.b16 %v732
        %v822 = vunpack.c.l.b16 %v733
        %v823 = vunpack.c.h.b16 %v733
        %v824 = vunpack.c.l.b16 %v734
        %v825 = vunpack.c.h.b16 %v734
        %v826 = vunpack.c.l.b16 %v735
        %v827 = vunpack.c.h.b16 %v735
        %v828 = vunpack.c.l.b16 %v736
        %v829 = vunpack.c.h.b16 %v736
        %v830 = vunpack.c.l.b16 %v737
        %v831 = vunpack.c.h.b16 %v737
        %v832 = vunpack.c.l.b16 %v738
        %v833 = vunpack.c.h.b16 %v738
        %v834 = vunpack.c.l.b16 %v739
        %v835 = vunpack.c.h.b16 %v739
        %v836 = vunpack.c.l.b16 %v740
        %v837 = vunpack.c.h.b16 %v740
        %v838 = vunpack.c.l.b16 %v741
        %v839 = vunpack.c.h.b16 %v741
        %v840 = vunpack.c.l.b16 %v742
        %v841 = vunpack.c.h.b16 %v742
        %v842 = vunpack.c.l.b16 %v743
        %v843 = vunpack.c.h.b16 %v743
        %v844 = vunpack.c.l.b16 %v744
        %v845 = vunpack.c.h.b16 %v744
        %v846 = vunpack.c.l.b16 %v745
        %v847 = vunpack.c.h.b16 %v745
        %v848 = vunpack.c.l.b16 %v746
        %v849 = vunpack.c.h.b16 %v746
        %v850 = vunpack.c.l.b16 %v747
        %v851 = vunpack.c.h.b16 %v747
        %v852 = vunpack.c.l.b16 %v748
        %v853 = vunpack.c.h.b16 %v748
        %v854 = vunpack.c.l.b16 %v749
        %v855 = vunpack.c.h.b16 %v749
        %v856 = vunpack.c.l.b16 %v750
        %v857 = vunpack.c.h.b16 %v750
        %v858 = vunpack.c.l.b16 %v751
        %v859 = vunpack.c.h.b16 %v751
        %v860 = vunpack.c.l.b16 %v752
        %v861 = vunpack.c.h.b16 %v752
        %v862 = vunpack.c.l.b16 %v753
        %v863 = vunpack.c.h.b16 %v753
        %v864 = vunpack.c.l.b16 %v754
        %v865 = vunpack.c.h.b16 %v754
        %v866 = vunpack.c.l.b16 %v755
        %v867 = vunpack.c.h.b16 %v755
        %v868 = vunpack.c.l.b16 %v756
        %v869 = vunpack.c.h.b16 %v756
        %v870 = vunpack.c.l.b16 %v757
        %v871 = vunpack.c.h.b16 %v757
        %v872 = vunpack.c.l.b16 %v758
        %v873 = vunpack.c.h.b16 %v758
        %v874 = vunpack.c.l.b16 %v759
        %v875 = vunpack.c.h.b16 %v759
        %v876 = vunpack.c.l.b16 %v760
        %v877 = vunpack.c.h.b16 %v760
        %v878 = vunpack.c.l.b16 %v761
        %v879 = vunpack.c.h.b16 %v761
        %v880 = vpack.c.b16 %v820, %v816
        %v881 = vpack.c.b16 %v821, %v817
        %v882 = vpack.c.b16 %v822, %v818
        %v883 = vpack.c.b16 %v823, %v819
        %v884 = vpack.c.b16 %v828, %v824
        %v885 = vpack.c.b16 %v829, %v825
        %v886 = vpack.c.b16 %v830, %v826
        %v887 = vpack.c.b16 %v831, %v827
        %v888 = vpack.c.b16 %v836, %v832
        %v889 = vpack.c.b16 %v837, %v833
        %v890 = vpack.c.b16 %v838, %v834
        %v891 = vpack.c.b16 %v839, %v835
        %v892 = vpack.c.b16 %v844, %v840
        %v893 = vpack.c.b16 %v845, %v841
        %v894 = vpack.c.b16 %v846, %v842
        %v895 = vpack.c.b16 %v847, %v843
        %v896 = vpack.c.b16 %v852, %v848
        %v897 = vpack.c.b16 %v853, %v849
        %v898 = vpack.c.b16 %v854, %v850
        %v899 = vpack.c.b16 %v855, %v851
        %v900 = vpack.c.b16 %v860, %v856
        %v901 = vpack.c.b16 %v861, %v857
        %v902 = vpack.c.b16 %v862, %v858
        %v903 = vpack.c.b16 %v863, %v859
        %v904 = vpack.c.b16 %v868, %v864
        %v905 = vpack.c.b16 %v869, %v865
        %v906 = vpack.c.b16 %v870, %v866
        %v907 = vpack.c.b16 %v871, %v867
        %v908 = vpack.c.b16 %v876, %v872
        %v909 = vpack.c.b16 %v877, %v873
        %v910 = vpack.c.b16 %v878, %v874
        %v911 = vpack.c.b16 %v879, %v875
        %944 = vmatprep.subr.bf16.mxu0 %v881
        %945 = vmatpush1.bf16.msra.mxu0 %v880
        %946 = vmatprep.subr.bf16.mxu0 %v885
        %947 = vmatpush1.bf16.msra.mxu0 %v884
        %948 = vmatprep.subr.bf16.mxu0 %v889
        %949 = vmatpush1.bf16.msra.mxu0 %v888
        %950 = vmatprep.subr.bf16.mxu0 %v893
        %951 = vmatpush1.bf16.msra.mxu0 %v892
        %952 = vmatprep.subr.bf16.mxu0 %v897
        %953 = vmatpush1.bf16.msra.mxu0 %v896
        %954 = vmatprep.subr.bf16.mxu0 %v901
        %955 = vmatpush1.bf16.msra.mxu0 %v900
        %956 = vmatprep.subr.bf16.mxu0 %v905
        %957 = vmatpush1.bf16.msra.mxu0 %v904
        %958 = vmatprep.subr.bf16.mxu0 %v909
        %959 = vmatpush1.bf16.msra.mxu0 %v908
        %960 = vmatprep.subr.bf16.mxu0 0
        %961 = vmatpush1.bf16.msra.mxu0 0
        %962 = vmatprep.subr.bf16.mxu0 0
        %963 = vmatpush1.bf16.msra.mxu0 0
        %964 = vmatprep.subr.bf16.mxu0 0
        %965 = vmatpush1.bf16.msra.mxu0 0
        %966 = vmatprep.subr.bf16.mxu0 0
        %967 = vmatpush1.bf16.msra.mxu0 0
        %968 = vmatprep.subr.bf16.mxu0 0
        %969 = vmatpush1.bf16.msra.mxu0 0
        %970 = vmatprep.subr.bf16.mxu0 0
        %971 = vmatpush1.bf16.msra.mxu0 0
        %972 = vmatprep.subr.bf16.mxu0 0
        %973 = vmatpush1.bf16.msra.mxu0 0
        %974 = vmatprep.subr.bf16.mxu0 0
        %975 = vmatpush1.bf16.msra.mxu0 0
        %976 = vmatprep.mubr.bf16.mxu0 0
        %977 = vmatmul.mubr.bf16.gmra.mrb[0].mxu0 %v783
        %v978 = vpop.f32.mrb[0].mxu0
        %v979 = vadd.f32 0.0, %v978
        %v980 = vpop.f32.mrb[0].mxu0
        %v981 = vadd.f32 0.0, %v980
        %v982 = vpop.f32.mrb[0].mxu0
        %v983 = vpop.f32.mrb[0].mxu0
        %984 = vdwg.mxu0
        %985 = vmatprep.subr.bf16.mxu0 %v883
        %986 = vmatpush1.bf16.msra.mxu0 %v882
        %987 = vmatprep.subr.bf16.mxu0 %v887
        %988 = vmatpush1.bf16.msra.mxu0 %v886
        %989 = vmatprep.subr.bf16.mxu0 %v891
        %990 = vmatpush1.bf16.msra.mxu0 %v890
        %991 = vmatprep.subr.bf16.mxu0 %v895
        %992 = vmatpush1.bf16.msra.mxu0 %v894
        %993 = vmatprep.subr.bf16.mxu0 %v899
        %994 = vmatpush1.bf16.msra.mxu0 %v898
        %995 = vmatprep.subr.bf16.mxu0 %v903
        %996 = vmatpush1.bf16.msra.mxu0 %v902
        %997 = vmatprep.subr.bf16.mxu0 %v907
        %998 = vmatpush1.bf16.msra.mxu0 %v906
        %999 = vmatprep.subr.bf16.mxu0 %v911
        %1000 = vmatpush1.bf16.msra.mxu0 %v910
        %1001 = vmatprep.subr.bf16.mxu0 0
        %1002 = vmatpush1.bf16.msra.mxu0 0
        %1003 = vmatprep.subr.bf16.mxu0 0
        %1004 = vmatpush1.bf16.msra.mxu0 0
        %1005 = vmatprep.subr.bf16.mxu0 0
        %1006 = vmatpush1.bf16.msra.mxu0 0
        %1007 = vmatprep.subr.bf16.mxu0 0
        %1008 = vmatpush1.bf16.msra.mxu0 0
        %1009 = vmatprep.subr.bf16.mxu0 0
        %1010 = vmatpush1.bf16.msra.mxu0 0
        %1011 = vmatprep.subr.bf16.mxu0 0
        %1012 = vmatpush1.bf16.msra.mxu0 0
        %1013 = vmatprep.subr.bf16.mxu0 0
        %1014 = vmatpush1.bf16.msra.mxu0 0
        %1015 = vmatprep.subr.bf16.mxu0 0
        %1016 = vmatpush1.bf16.msra.mxu0 0
        %1017 = vmatprep.mubr.bf16.mxu0 0
        %1018 = vmatmul.mubr.bf16.gmra.mrb[0].mxu0 %v783
        %v1019 = vpop.f32.mrb[0].mxu0
        %v1020 = vadd.f32 0.0, %v1019
        %v1021 = vpop.f32.mrb[0].mxu0
        %v1022 = vadd.f32 0.0, %v1021
        %v1023 = vpop.f32.mrb[0].mxu0
        %v1024 = vpop.f32.mrb[0].mxu0
        %1025 = vdwg.mxu0
        %v1026 = vadd.f32 %v779, %v979
        %v1027 = vadd.f32 %v780, %v981
        %v1028 = vadd.f32 %v781, %v1020
        %v1029 = vadd.f32 %v782, %v1022
        %v1030 = vxor.u32 %v1026, 2147483648
        %v1031 = vmul.f32 %v1030, 1.442695
        %v1032 = vpow.pop %v1031
        %v1033 = vadd.f32 %v1032, 1.0
        %v1034 = vrcp.pop %v1033
        %v1035 = vmul.f32 1.0, %v1034
        %v1036 = vxor.u32 %v1027, 2147483648
        %v1037 = vmul.f32 %v1036, 1.442695
        %v1038 = vpow.pop %v1037
        %v1039 = vadd.f32 %v1038, 1.0
        %v1040 = vrcp.pop %v1039
        %v1041 = vmul.f32 1.0, %v1040
        %v1042 = vtanh.pop %v1028
        %v1043 = vxor.u32 %v1029, 2147483648
        %v1044 = vmul.f32 %v1043, 1.442695
        %v1045 = vpow.pop %v1044
        %v1046 = vadd.f32 %v1045, 1.0
        %v1047 = vrcp.pop %v1046
        %v1048 = vmul.f32 1.0, %v1047
        %v1049 = vmul.f32 %v1041, %v767
        %v1050 = vmul.f32 %v1035, %v1042
        %v1051 = vadd.f32 %v1049, %v1050
        %v1052 = vtanh.pop %v1051
        %v1053 = vmul.f32 %v1048, %v1052
        %v1054 = vstv %s772
        %vm1055 = vcmp.gt.s32.totalorder %v765, %v1054
        %v1056 = vsel %vm1055, %v1053, 0.0
        %v1057 = vpack.c.bf16 %v1056, %v1056
        %s1058 = smul.addr %s774, 4
        %s1059 = scalar_lea.vmem %s327, %s1058 [#allocation5]
        %1060 = vst [vmem:[%s1059] sm:$0xf] %v1057
        %v1061 = vsel %vm1055, %v1053, %v766
        %v1062 = vsel %vm1055, %v1051, %v767
        %s1063 = sadd.s32 %s22, 1
        %s1064 = sadd.s32 %s768, 1
        %s1065 = smul.u32 %s1064, 2
        %s1066 = ssub.s32 7, %s1065
        %s1067 = smul.u32 %s22, %s1066
        %s1068 = sadd.s32 %s1064, %s1067
        %s1069 = smul.u32 %s1063, 8
        %s1070 = sshra.s32 %s1069, 3
        %s1071 = sand.u32 %s1069, 7
        %s1072 = smul.u32 %s1070, 4
        %s1073 = smul.addr %s1072, 8
        %s1074 = scalar_lea.vmem [#allocation4], %s1073
        %v1075 = vld [vmem:[%s1074] sm:$0xff]
        %v1076 = vld [vmem:[%s1074 + $0x8] sm:$0xff]
        %v1077 = vld [vmem:[%s1074 + $0x10] sm:$0xff]
        %v1078 = vld [vmem:[%s1074 + $0x18] sm:$0xff]
        %v1079 = vpack.c.bf16 %v1061, %v1061
        %1080 = vmatprep.subr.bf16.mxu0 %v881
        %1081 = vmatpush1.bf16.msra.mxu0 %v880
        %1082 = vmatprep.subr.bf16.mxu0 %v885
        %1083 = vmatpush1.bf16.msra.mxu0 %v884
        %1084 = vmatprep.subr.bf16.mxu0 %v889
        %1085 = vmatpush1.bf16.msra.mxu0 %v888
        %1086 = vmatprep.subr.bf16.mxu0 %v893
        %1087 = vmatpush1.bf16.msra.mxu0 %v892
        %1088 = vmatprep.subr.bf16.mxu0 %v897
        %1089 = vmatpush1.bf16.msra.mxu0 %v896
        %1090 = vmatprep.subr.bf16.mxu0 %v901
        %1091 = vmatpush1.bf16.msra.mxu0 %v900
        %1092 = vmatprep.subr.bf16.mxu0 %v905
        %1093 = vmatpush1.bf16.msra.mxu0 %v904
        %1094 = vmatprep.subr.bf16.mxu0 %v909
        %1095 = vmatpush1.bf16.msra.mxu0 %v908
        %1096 = vmatprep.subr.bf16.mxu0 0
        %1097 = vmatpush1.bf16.msra.mxu0 0
        %1098 = vmatprep.subr.bf16.mxu0 0
        %1099 = vmatpush1.bf16.msra.mxu0 0
        %1100 = vmatprep.subr.bf16.mxu0 0
        %1101 = vmatpush1.bf16.msra.mxu0 0
        %1102 = vmatprep.subr.bf16.mxu0 0
        %1103 = vmatpush1.bf16.msra.mxu0 0
        %1104 = vmatprep.subr.bf16.mxu0 0
        %1105 = vmatpush1.bf16.msra.mxu0 0
        %1106 = vmatprep.subr.bf16.mxu0 0
        %1107 = vmatpush1.bf16.msra.mxu0 0
        %1108 = vmatprep.subr.bf16.mxu0 0
        %1109 = vmatpush1.bf16.msra.mxu0 0
        %1110 = vmatprep.subr.bf16.mxu0 0
        %1111 = vmatpush1.bf16.msra.mxu0 0
        %1112 = vmatprep.mubr.bf16.mxu0 0
        %1113 = vmatmul.mubr.bf16.gmra.mrb[0].mxu0 %v1079
        %v1114 = vpop.f32.mrb[0].mxu0
        %v1115 = vadd.f32 0.0, %v1114
        %v1116 = vpop.f32.mrb[0].mxu0
        %v1117 = vadd.f32 0.0, %v1116
        %v1118 = vpop.f32.mrb[0].mxu0
        %v1119 = vpop.f32.mrb[0].mxu0
        %1120 = vdwg.mxu0
        %1121 = vmatprep.subr.bf16.mxu0 %v883
        %1122 = vmatpush1.bf16.msra.mxu0 %v882
        %1123 = vmatprep.subr.bf16.mxu0 %v887
        %1124 = vmatpush1.bf16.msra.mxu0 %v886
        %1125 = vmatprep.subr.bf16.mxu0 %v891
        %1126 = vmatpush1.bf16.msra.mxu0 %v890
        %1127 = vmatprep.subr.bf16.mxu0 %v895
        %1128 = vmatpush1.bf16.msra.mxu0 %v894
        %1129 = vmatprep.subr.bf16.mxu0 %v899
        %1130 = vmatpush1.bf16.msra.mxu0 %v898
        %1131 = vmatprep.subr.bf16.mxu0 %v903
        %1132 = vmatpush1.bf16.msra.mxu0 %v902
        %1133 = vmatprep.subr.bf16.mxu0 %v907
        %1134 = vmatpush1.bf16.msra.mxu0 %v906
        %1135 = vmatprep.subr.bf16.mxu0 %v911
        %1136 = vmatpush1.bf16.msra.mxu0 %v910
        %1137 = vmatprep.subr.bf16.mxu0 0
        %1138 = vmatpush1.bf16.msra.mxu0 0
        %1139 = vmatprep.subr.bf16.mxu0 0
        %1140 = vmatpush1.bf16.msra.mxu0 0
        %1141 = vmatprep.subr.bf16.mxu0 0
        %1142 = vmatpush1.bf16.msra.mxu0 0
        %1143 = vmatprep.subr.bf16.mxu0 0
        %1144 = vmatpush1.bf16.msra.mxu0 0
        %1145 = vmatprep.subr.bf16.mxu0 0
        %1146 = vmatpush1.bf16.msra.mxu0 0
        %1147 = vmatprep.subr.bf16.mxu0 0
        %1148 = vmatpush1.bf16.msra.mxu0 0
        %1149 = vmatprep.subr.bf16.mxu0 0
        %1150 = vmatpush1.bf16.msra.mxu0 0
        %1151 = vmatprep.subr.bf16.mxu0 0
        %1152 = vmatpush1.bf16.msra.mxu0 0
        %1153 = vmatprep.mubr.bf16.mxu0 0
        %1154 = vmatmul.mubr.bf16.gmra.mrb[0].mxu0 %v1079
        %v1155 = vpop.f32.mrb[0].mxu0
        %v1156 = vadd.f32 0.0, %v1155
        %v1157 = vpop.f32.mrb[0].mxu0
        %v1158 = vadd.f32 0.0, %v1157
        %v1159 = vpop.f32.mrb[0].mxu0
        %v1160 = vpop.f32.mrb[0].mxu0
        %1161 = vdwg.mxu0
        %v1162 = vadd.f32 %v1075, %v1115
        %v1163 = vadd.f32 %v1076, %v1117
        %v1164 = vadd.f32 %v1077, %v1156
        %v1165 = vadd.f32 %v1078, %v1158
        %v1166 = vxor.u32 %v1162, 2147483648
        %v1167 = vmul.f32 %v1166, 1.442695
        %v1168 = vpow.pop %v1167
        %v1169 = vadd.f32 %v1168, 1.0
        %v1170 = vrcp.pop %v1169
        %v1171 = vmul.f32 1.0, %v1170
        %v1172 = vxor.u32 %v1163, 2147483648
        %v1173 = vmul.f32 %v1172, 1.442695
        %v1174 = vpow.pop %v1173
        %v1175 = vadd.f32 %v1174, 1.0
        %v1176 = vrcp.pop %v1175
        %v1177 = vmul.f32 1.0, %v1176
        %v1178 = vtanh.pop %v1164
        %v1179 = vxor.u32 %v1165, 2147483648
        %v1180 = vmul.f32 %v1179, 1.442695
        %v1181 = vpow.pop %v1180
        %v1182 = vadd.f32 %v1181, 1.0
        %v1183 = vrcp.pop %v1182
        %v1184 = vmul.f32 1.0, %v1183
        %v1185 = vmul.f32 %v1177, %v1062
        %v1186 = vmul.f32 %v1171, %v1178
        %v1187 = vadd.f32 %v1185, %v1186
        %v1188 = vtanh.pop %v1187
        %v1189 = vmul.f32 %v1184, %v1188
        %v1190 = vstv %s1068
        %vm1191 = vcmp.gt.s32.totalorder %v765, %v1190
        %v1192 = vsel %vm1191, %v1189, 0.0
        %v1193 = vpack.c.bf16 %v1192, %v1192
        %s1194 = smul.addr %s1070, 4
        %s1195 = scalar_lea.vmem %s327, %s1194 [#allocation5]
        %1196 = vst [vmem:[%s1195] sm:$0xf] %v1193
        %v1197 = vsel %vm1191, %v1189, %v1061
        %v1198 = vsel %vm1191, %v1187, %v1062
        %s1199 = ssub.s32 2, %s22
        %s1200 = sadd.s32 %s768, 2
        %s1201 = smul.u32 %s1200, 2
        %s1202 = ssub.s32 7, %s1201
        %s1203 = smul.u32 %s22, %s1202
        %s1204 = sadd.s32 %s1200, %s1203
        %s1205 = smul.u32 %s1199, 8
        %s1206 = sshra.s32 %s1205, 3
        %s1207 = sand.u32 %s1205, 7
        %s1208 = smul.u32 %s1206, 4
        %s1209 = smul.addr %s1208, 8
        %s1210 = scalar_lea.vmem [#allocation4], %s1209
        %v1211 = vld [vmem:[%s1210] sm:$0xff]
        %v1212 = vld [vmem:[%s1210 + $0x8] sm:$0xff]
        %v1213 = vld [vmem:[%s1210 + $0x10] sm:$0xff]
        %v1214 = vld [vmem:[%s1210 + $0x18] sm:$0xff]
        %v1215 = vpack.c.bf16 %v1197, %v1197
        %1216 = vmatprep.subr.bf16.mxu0 %v881
        %1217 = vmatpush1.bf16.msra.mxu0 %v880
        %1218 = vmatprep.subr.bf16.mxu0 %v885
        %1219 = vmatpush1.bf16.msra.mxu0 %v884
        %1220 = vmatprep.subr.bf16.mxu0 %v889
        %1221 = vmatpush1.bf16.msra.mxu0 %v888
        %1222 = vmatprep.subr.bf16.mxu0 %v893
        %1223 = vmatpush1.bf16.msra.mxu0 %v892
        %1224 = vmatprep.subr.bf16.mxu0 %v897
        %1225 = vmatpush1.bf16.msra.mxu0 %v896
        %1226 = vmatprep.subr.bf16.mxu0 %v901
        %1227 = vmatpush1.bf16.msra.mxu0 %v900
        %1228 = vmatprep.subr.bf16.mxu0 %v905
        %1229 = vmatpush1.bf16.msra.mxu0 %v904
        %1230 = vmatprep.subr.bf16.mxu0 %v909
        %1231 = vmatpush1.bf16.msra.mxu0 %v908
        %1232 = vmatprep.subr.bf16.mxu0 0
        %1233 = vmatpush1.bf16.msra.mxu0 0
        %1234 = vmatprep.subr.bf16.mxu0 0
        %1235 = vmatpush1.bf16.msra.mxu0 0
        %1236 = vmatprep.subr.bf16.mxu0 0
        %1237 = vmatpush1.bf16.msra.mxu0 0
        %1238 = vmatprep.subr.bf16.mxu0 0
        %1239 = vmatpush1.bf16.msra.mxu0 0
        %1240 = vmatprep.subr.bf16.mxu0 0
        %1241 = vmatpush1.bf16.msra.mxu0 0
        %1242 = vmatprep.subr.bf16.mxu0 0
        %1243 = vmatpush1.bf16.msra.mxu0 0
        %1244 = vmatprep.subr.bf16.mxu0 0
        %1245 = vmatpush1.bf16.msra.mxu0 0
        %1246 = vmatprep.subr.bf16.mxu0 0
        %1247 = vmatpush1.bf16.msra.mxu0 0
        %1248 = vmatprep.mubr.bf16.mxu0 0
        %1249 = vmatmul.mubr.bf16.gmra.mrb[0].mxu0 %v1215
        %v1250 = vpop.f32.mrb[0].mxu0
        %v1251 = vadd.f32 0.0, %v1250
        %v1252 = vpop.f32.mrb[0].mxu0
        %v1253 = vadd.f32 0.0, %v1252
        %v1254 = vpop.f32.mrb[0].mxu0
        %v1255 = vpop.f32.mrb[0].mxu0
        %1256 = vdwg.mxu0
        %1257 = vmatprep.subr.bf16.mxu0 %v883
        %1258 = vmatpush1.bf16.msra.mxu0 %v882
        %1259 = vmatprep.subr.bf16.mxu0 %v887
        %1260 = vmatpush1.bf16.msra.mxu0 %v886
        %1261 = vmatprep.subr.bf16.mxu0 %v891
        %1262 = vmatpush1.bf16.msra.mxu0 %v890
        %1263 = vmatprep.subr.bf16.mxu0 %v895
        %1264 = vmatpush1.bf16.msra.mxu0 %v894
        %1265 = vmatprep.subr.bf16.mxu0 %v899
        %1266 = vmatpush1.bf16.msra.mxu0 %v898
        %1267 = vmatprep.subr.bf16.mxu0 %v903
        %1268 = vmatpush1.bf16.msra.mxu0 %v902
        %1269 = vmatprep.subr.bf16.mxu0 %v907
        %1270 = vmatpush1.bf16.msra.mxu0 %v906
        %1271 = vmatprep.subr.bf16.mxu0 %v911
        %1272 = vmatpush1.bf16.msra.mxu0 %v910
        %1273 = vmatprep.subr.bf16.mxu0 0
        %1274 = vmatpush1.bf16.msra.mxu0 0
        %1275 = vmatprep.subr.bf16.mxu0 0
        %1276 = vmatpush1.bf16.msra.mxu0 0
        %1277 = vmatprep.subr.bf16.mxu0 0
        %1278 = vmatpush1.bf16.msra.mxu0 0
        %1279 = vmatprep.subr.bf16.mxu0 0
        %1280 = vmatpush1.bf16.msra.mxu0 0
        %1281 = vmatprep.subr.bf16.mxu0 0
        %1282 = vmatpush1.bf16.msra.mxu0 0
        %1283 = vmatprep.subr.bf16.mxu0 0
        %1284 = vmatpush1.bf16.msra.mxu0 0
        %1285 = vmatprep.subr.bf16.mxu0 0
        %1286 = vmatpush1.bf16.msra.mxu0 0
        %1287 = vmatprep.subr.bf16.mxu0 0
        %1288 = vmatpush1.bf16.msra.mxu0 0
        %1289 = vmatprep.mubr.bf16.mxu0 0
        %1290 = vmatmul.mubr.bf16.gmra.mrb[0].mxu0 %v1215
        %v1291 = vpop.f32.mrb[0].mxu0
        %v1292 = vadd.f32 0.0, %v1291
        %v1293 = vpop.f32.mrb[0].mxu0
        %v1294 = vadd.f32 0.0, %v1293
        %v1295 = vpop.f32.mrb[0].mxu0
        %v1296 = vpop.f32.mrb[0].mxu0
        %1297 = vdwg.mxu0
        %v1298 = vadd.f32 %v1211, %v1251
        %v1299 = vadd.f32 %v1212, %v1253
        %v1300 = vadd.f32 %v1213, %v1292
        %v1301 = vadd.f32 %v1214, %v1294
        %v1302 = vxor.u32 %v1298, 2147483648
        %v1303 = vmul.f32 %v1302, 1.442695
        %v1304 = vpow.pop %v1303
        %v1305 = vadd.f32 %v1304, 1.0
        %v1306 = vrcp.pop %v1305
        %v1307 = vmul.f32 1.0, %v1306
        %v1308 = vxor.u32 %v1299, 2147483648
        %v1309 = vmul.f32 %v1308, 1.442695
        %v1310 = vpow.pop %v1309
        %v1311 = vadd.f32 %v1310, 1.0
        %v1312 = vrcp.pop %v1311
        %v1313 = vmul.f32 1.0, %v1312
        %v1314 = vtanh.pop %v1300
        %v1315 = vxor.u32 %v1301, 2147483648
        %v1316 = vmul.f32 %v1315, 1.442695
        %v1317 = vpow.pop %v1316
        %v1318 = vadd.f32 %v1317, 1.0
        %v1319 = vrcp.pop %v1318
        %v1320 = vmul.f32 1.0, %v1319
        %v1321 = vmul.f32 %v1313, %v1198
        %v1322 = vmul.f32 %v1307, %v1314
        %v1323 = vadd.f32 %v1321, %v1322
        %v1324 = vtanh.pop %v1323
        %v1325 = vmul.f32 %v1320, %v1324
        %v1326 = vstv %s1204
        %vm1327 = vcmp.gt.s32.totalorder %v765, %v1326
        %v1328 = vsel %vm1327, %v1325, 0.0
        %v1329 = vpack.c.bf16 %v1328, %v1328
        %s1330 = smul.addr %s1206, 4
        %s1331 = scalar_lea.vmem %s327, %s1330 [#allocation5]
        %1332 = vst [vmem:[%s1331] sm:$0xf] %v1329
        %v1333 = vsel %vm1327, %v1325, %v1197
        %v1334 = vsel %vm1327, %v1323, %v1198
        %s1335 = smul.u32 %s22, 4294967293
        %s1336 = sadd.s32 %s1335, 3
        %s1337 = sadd.s32 %s768, 3
        %s1338 = smul.u32 %s1337, 2
        %s1339 = ssub.s32 7, %s1338
        %s1340 = smul.u32 %s22, %s1339
        %s1341 = sadd.s32 %s1337, %s1340
        %s1342 = smul.u32 %s1336, 8
        %s1343 = sshra.s32 %s1342, 3
        %s1344 = sand.u32 %s1342, 7
        %s1345 = smul.u32 %s1343, 4
        %s1346 = smul.addr %s1345, 8
        %s1347 = scalar_lea.vmem [#allocation4], %s1346
        %v1348 = vld [vmem:[%s1347] sm:$0xff]
        %v1349 = vld [vmem:[%s1347 + $0x8] sm:$0xff]
        %v1350 = vld [vmem:[%s1347 + $0x10] sm:$0xff]
        %v1351 = vld [vmem:[%s1347 + $0x18] sm:$0xff]
        %v1352 = vpack.c.bf16 %v1333, %v1333
        %1353 = vmatprep.subr.bf16.mxu0 %v881
        %1354 = vmatpush1.bf16.msra.mxu0 %v880
        %1355 = vmatprep.subr.bf16.mxu0 %v885
        %1356 = vmatpush1.bf16.msra.mxu0 %v884
        %1357 = vmatprep.subr.bf16.mxu0 %v889
        %1358 = vmatpush1.bf16.msra.mxu0 %v888
        %1359 = vmatprep.subr.bf16.mxu0 %v893
        %1360 = vmatpush1.bf16.msra.mxu0 %v892
        %1361 = vmatprep.subr.bf16.mxu0 %v897
        %1362 = vmatpush1.bf16.msra.mxu0 %v896
        %1363 = vmatprep.subr.bf16.mxu0 %v901
        %1364 = vmatpush1.bf16.msra.mxu0 %v900
        %1365 = vmatprep.subr.bf16.mxu0 %v905
        %1366 = vmatpush1.bf16.msra.mxu0 %v904
        %1367 = vmatprep.subr.bf16.mxu0 %v909
        %1368 = vmatpush1.bf16.msra.mxu0 %v908
        %1369 = vmatprep.subr.bf16.mxu0 0
        %1370 = vmatpush1.bf16.msra.mxu0 0
        %1371 = vmatprep.subr.bf16.mxu0 0
        %1372 = vmatpush1.bf16.msra.mxu0 0
        %1373 = vmatprep.subr.bf16.mxu0 0
        %1374 = vmatpush1.bf16.msra.mxu0 0
        %1375 = vmatprep.subr.bf16.mxu0 0
        %1376 = vmatpush1.bf16.msra.mxu0 0
        %1377 = vmatprep.subr.bf16.mxu0 0
        %1378 = vmatpush1.bf16.msra.mxu0 0
        %1379 = vmatprep.subr.bf16.mxu0 0
        %1380 = vmatpush1.bf16.msra.mxu0 0
        %1381 = vmatprep.subr.bf16.mxu0 0
        %1382 = vmatpush1.bf16.msra.mxu0 0
        %1383 = vmatprep.subr.bf16.mxu0 0
        %1384 = vmatpush1.bf16.msra.mxu0 0
        %1385 = vmatprep.mubr.bf16.mxu0 0
        %1386 = vmatmul.mubr.bf16.gmra.mrb[0].mxu0 %v1352
        %v1387 = vpop.f32.mrb[0].mxu0
        %v1388 = vadd.f32 0.0, %v1387
        %v1389 = vpop.f32.mrb[0].mxu0
        %v1390 = vadd.f32 0.0, %v1389
        %v1391 = vpop.f32.mrb[0].mxu0
        %v1392 = vpop.f32.mrb[0].mxu0
        %1393 = vdwg.mxu0
        %1394 = vmatprep.subr.bf16.mxu0 %v883
        %1395 = vmatpush1.bf16.msra.mxu0 %v882
        %1396 = vmatprep.subr.bf16.mxu0 %v887
        %1397 = vmatpush1.bf16.msra.mxu0 %v886
        %1398 = vmatprep.subr.bf16.mxu0 %v891
        %1399 = vmatpush1.bf16.msra.mxu0 %v890
        %1400 = vmatprep.subr.bf16.mxu0 %v895
        %1401 = vmatpush1.bf16.msra.mxu0 %v894
        %1402 = vmatprep.subr.bf16.mxu0 %v899
        %1403 = vmatpush1.bf16.msra.mxu0 %v898
        %1404 = vmatprep.subr.bf16.mxu0 %v903
        %1405 = vmatpush1.bf16.msra.mxu0 %v902
        %1406 = vmatprep.subr.bf16.mxu0 %v907
        %1407 = vmatpush1.bf16.msra.mxu0 %v906
        %1408 = vmatprep.subr.bf16.mxu0 %v911
        %1409 = vmatpush1.bf16.msra.mxu0 %v910
        %1410 = vmatprep.subr.bf16.mxu0 0
        %1411 = vmatpush1.bf16.msra.mxu0 0
        %1412 = vmatprep.subr.bf16.mxu0 0
        %1413 = vmatpush1.bf16.msra.mxu0 0
        %1414 = vmatprep.subr.bf16.mxu0 0
        %1415 = vmatpush1.bf16.msra.mxu0 0
        %1416 = vmatprep.subr.bf16.mxu0 0
        %1417 = vmatpush1.bf16.msra.mxu0 0
        %1418 = vmatprep.subr.bf16.mxu0 0
        %1419 = vmatpush1.bf16.msra.mxu0 0
        %1420 = vmatprep.subr.bf16.mxu0 0
        %1421 = vmatpush1.bf16.msra.mxu0 0
        %1422 = vmatprep.subr.bf16.mxu0 0
        %1423 = vmatpush1.bf16.msra.mxu0 0
        %1424 = vmatprep.subr.bf16.mxu0 0
        %1425 = vmatpush1.bf16.msra.mxu0 0
        %1426 = vmatprep.mubr.bf16.mxu0 0
        %1427 = vmatmul.mubr.bf16.gmra.mrb[0].mxu0 %v1352
        %v1428 = vpop.f32.mrb[0].mxu0
        %v1429 = vadd.f32 0.0, %v1428
        %v1430 = vpop.f32.mrb[0].mxu0
        %v1431 = vadd.f32 0.0, %v1430
        %v1432 = vpop.f32.mrb[0].mxu0
        %v1433 = vpop.f32.mrb[0].mxu0
        %1434 = vdwg.mxu0
        %v1435 = vadd.f32 %v1348, %v1388
        %v1436 = vadd.f32 %v1349, %v1390
        %v1437 = vadd.f32 %v1350, %v1429
        %v1438 = vadd.f32 %v1351, %v1431
        %v1439 = vxor.u32 %v1435, 2147483648
        %v1440 = vmul.f32 %v1439, 1.442695
        %v1441 = vpow.pop %v1440
        %v1442 = vadd.f32 %v1441, 1.0
        %v1443 = vrcp.pop %v1442
        %v1444 = vmul.f32 1.0, %v1443
        %v1445 = vxor.u32 %v1436, 2147483648
        %v1446 = vmul.f32 %v1445, 1.442695
        %v1447 = vpow.pop %v1446
        %v1448 = vadd.f32 %v1447, 1.0
        %v1449 = vrcp.pop %v1448
        %v1450 = vmul.f32 1.0, %v1449
        %v1451 = vtanh.pop %v1437
        %v1452 = vxor.u32 %v1438, 2147483648
        %v1453 = vmul.f32 %v1452, 1.442695
        %v1454 = vpow.pop %v1453
        %v1455 = vadd.f32 %v1454, 1.0
        %v1456 = vrcp.pop %v1455
        %v1457 = vmul.f32 1.0, %v1456
        %v1458 = vmul.f32 %v1450, %v1334
        %v1459 = vmul.f32 %v1444, %v1451
        %v1460 = vadd.f32 %v1458, %v1459
        %v1461 = vtanh.pop %v1460
        %v1462 = vmul.f32 %v1457, %v1461
        %v1463 = vstv %s1341
        %vm1464 = vcmp.gt.s32.totalorder %v765, %v1463
        %v1465 = vsel %vm1464, %v1462, 0.0
        %v1466 = vpack.c.bf16 %v1465, %v1465
        %s1467 = smul.addr %s1343, 4
        %s1468 = scalar_lea.vmem %s327, %s1467 [#allocation5]
        %1469 = vst [vmem:[%s1468] sm:$0xf] %v1466
        %v1470 = vsel %vm1464, %v1462, %v1333
        %v1471 = vsel %vm1464, %v1460, %v1334
        %1472 = vst [vmem:[#allocation2] sm:$0xff] %v1470
        %1473 = vst [vmem:[#allocation3] sm:$0xff] %v1471
        %p1474 = scmp.eq.s32.totalorder %s23, 1
        // Predicated region
        $region45: #{_device_forward.2} parent=39 // pred_check
          %p1475 = pneg %p1474
        $region46: #{_device_forward.2} parent=39 // pred_check_branch
          %1477 = sbr.rel (%p1475) target = $region48
        $region47: #{_device_forward.2} parent=39 // pred_region
          %1478 = vst [vmem:[%s370] sm:$0xff] %v1470
        $region48: #{_device_forward.2} parent=39 // pred_fallthru
          _
        %s1479 = sand.u32 %s181, 1
        %s1480 = sand.u32 %s181, 1
        %s1481 = smul.addr %s1480, 16
        %s1482 = scalar_lea.vmem [#allocation5], %s1481
        %p1483 = scmp.lt.s32.totalorder %s22, 1
        %s1484 = scalar_select %p1483, %s22, 1
        %s1485 = smul.addr %s1484, 8
        %s1486 = scalar_lea.vmem %s6, %s1485
        // Predicated region
        $region49: #{_device_forward.2} parent=39 // pred_check
          %p1487 = pneg %p191
        $region50: #{_device_forward.2} parent=39 // pred_check_branch
          %1489 = sbr.rel (%p1487) target = $region52
        $region51: #{_device_forward.2} parent=39 // pred_region
          %s1490 = smul.u32 %s23, 2
          %s1491 = ssub.s32 1, %s1490
          %s1492 = smul.u32 %s22, %s1491
          %s1493 = sadd.s32 %s23, %s1492
          %s1494 = smul.u32 4, %s1493
          %s1495 = smul.addr %s1494, 2
          %s1496 = sadd.s32 %s22, %s1495
          %s1497 = smul.addr %s1496, 4
          %s1498 = scalar_lea.vmem %s5, %s1497
          // Predicated region
          $region53: #{_device_forward.2} parent=51 // pred_check
            _
          $region54: #{_device_forward.2} parent=51 // pred_check_branch
            %1500 = sbr.rel (0) target = $region56
          $region55: #{_device_forward.2} parent=51 // pred_region
            // Predicated region
            $region57: #{_device_forward.2} parent=55 // pred_check
              _
            $region58: #{_device_forward.2} parent=55 // pred_check_branch
              %1502 = sbr.rel target = $region60
            $region59: #{_device_forward.2} parent=55 // pred_region
              // Predicated region
              $region72: #{_device_forward.2} parent=59 // pred_check
                _
              $region73: #{_device_forward.2} parent=59 // pred_check_branch
                %1523 = sbr.rel (0) target = $region75
              $region74: #{_device_forward.2} parent=59 // pred_region
                loop: start=0, step=1, limit=1
                $region76: #{_device_forward.2} parent=74 // loop_pre_header
                  _
                $region77: #{_device_forward.2} parent=74 // loop_header
                  %s1525 = sphi 0, %s1529
                  %p1526 = scmp.ge.s32.totalorder %s1525, 1
                  %s1530 = sphi %s1482, %s1482
                  %s1531 = sphi %s1498, %s1498
                $region78: #{_device_forward.2} parent=74 // loop_header_branch
                  %1528 = sbr.rel (%p1526) target = $region82
                $region79: #{_device_forward.2} parent=74 // loop_body
                  _
                $region80: #{_device_forward.2} parent=74 // loop_footer
                  %s1529 = sadd.s32 1, %s1525
                $region81: #{_device_forward.2} parent=74 // loop_footer_branch
                  %1524 = sbr.rel target = $region77
                $region82: #{_device_forward.2} parent=74 // loop_exit
                  _
                loop: start=0, step=1, limit=1
                $region83: #{_device_forward.2} parent=74 // loop_pre_header
                  _
                $region84: #{_device_forward.2} parent=74 // loop_header
                  %s1534 = sphi 0, %s1538
                  %p1535 = scmp.ge.s32.totalorder %s1534, 1
                  %s1539 = sphi %s1482, %s1482
                  %s1540 = sphi %s1498, %s1498
                $region85: #{_device_forward.2} parent=74 // loop_header_branch
                  %1537 = sbr.rel (%p1535) target = $region89
                $region86: #{_device_forward.2} parent=74 // loop_body
                  %v1541 = vld [vmem:[%s1539] sm:$0xf]
                  %1542 = vst [vmem:[%s1540] sm:$0xf] %v1541
                  %v1543 = vld [vmem:[%s1539 + $0x4] sm:$0xf]
                  %1544 = vst [vmem:[%s1540 + $0x8] sm:$0xf] %v1543
                  %v1545 = vld [vmem:[%s1539 + $0x8] sm:$0xf]
                  %1546 = vst [vmem:[%s1540 + $0x10] sm:$0xf] %v1545
                  %v1547 = vld [vmem:[%s1539 + $0xc] sm:$0xf]
                  %1548 = vst [vmem:[%s1540 + $0x18] sm:$0xf] %v1547
                $region87: #{_device_forward.2} parent=74 // loop_footer
                  %s1538 = sadd.s32 1, %s1534
                $region88: #{_device_forward.2} parent=74 // loop_footer_branch
                  %1533 = sbr.rel target = $region84
                $region89: #{_device_forward.2} parent=74 // loop_exit
                  _
              $region75: #{_device_forward.2} parent=59 // pred_fallthru
                _
            $region60: #{_device_forward.2} parent=55 // pred_fallthru
              _
            // Predicated region
            $region61: #{_device_forward.2} parent=55 // pred_check
              _
            $region62: #{_device_forward.2} parent=55 // pred_check_branch
              %1504 = sbr.rel (0) target = $region64
            $region63: #{_device_forward.2} parent=55 // pred_region
              loop: start=0, step=1, limit=1
              $region65: #{_device_forward.2} parent=63 // loop_pre_header
                _
              $region66: #{_device_forward.2} parent=63 // loop_header
                %s1507 = sphi 0, %s1511
                %p1508 = scmp.ge.s32.totalorder %s1507, 1
                %s1512 = sphi %s1482, %s1482
                %s1513 = sphi %s1498, %s1498
              $region67: #{_device_forward.2} parent=63 // loop_header_branch
                %1510 = sbr.rel (%p1508) target = $region71
              $region68: #{_device_forward.2} parent=63 // loop_body
                %v1514 = vld [vmem:[%s1512] sm:$0xf]
                %1515 = vst [vmem:[%s1513] sm:$0xf] %v1514
                %v1516 = vld [vmem:[%s1512 + $0x4] sm:$0xf]
                %1517 = vst [vmem:[%s1513 + $0x8] sm:$0xf] %v1516
                %v1518 = vld [vmem:[%s1512 + $0x8] sm:$0xf]
                %1519 = vst [vmem:[%s1513 + $0x10] sm:$0xf] %v1518
                %v1520 = vld [vmem:[%s1512 + $0xc] sm:$0xf]
                %1521 = vst [vmem:[%s1513 + $0x18] sm:$0xf] %v1520
              $region69: #{_device_forward.2} parent=63 // loop_footer
                %s1511 = sadd.s32 1, %s1507
              $region70: #{_device_forward.2} parent=63 // loop_footer_branch
                %1506 = sbr.rel target = $region66
              $region71: #{_device_forward.2} parent=63 // loop_exit
                _
            $region64: #{_device_forward.2} parent=55 // pred_fallthru
              _
          $region56: #{_device_forward.2} parent=51 // pred_fallthru
            _
          %1549 = vnop
        $region52: #{_device_forward.2} parent=39 // pred_fallthru
          _
        // Predicated region
        $region90: #{_device_forward.2} parent=39 // pred_check
          %p1550 = pneg %p217
        $region91: #{_device_forward.2} parent=39 // pred_check_branch
          %1552 = sbr.rel (%p1550) target = $region93
        $region92: #{_device_forward.2} parent=39 // pred_region
          _
        $region93: #{_device_forward.2} parent=39 // pred_fallthru
          _
      $region40: #{_device_forward.2} parent=5 // pred_fallthru
        _
      %p1553 = scmp.le.s32.totalorder 2, %s13
      // Predicated region
      $region94: #{_device_forward.2} parent=5 // pred_check
        %p1554 = pneg %p1553
      $region95: #{_device_forward.2} parent=5 // pred_check_branch
        %1556 = sbr.rel (%p1554) target = $region97
      $region96: #{_device_forward.2} parent=5 // pred_region
        %s1557 = ssub.s32 %s13, 2
        // Predicated region
        $region98: #{_device_forward.2} parent=96 // pred_check
          %p1558 = pneg %p197
        $region99: #{_device_forward.2} parent=96 // pred_check_branch
          %1560 = sbr.rel (%p1558) target = $region101
        $region100: #{_device_forward.2} parent=96 // pred_region
          %s1561 = sand.u32 %s182, 1
          %s1562 = sand.u32 %s182, 1
          %s1563 = smul.addr %s1562, 16
          %s1564 = scalar_lea.vmem [#allocation5], %s1563
        $region101: #{_device_forward.2} parent=96 // pred_fallthru
          _
        // Predicated region
        $region102: #{_device_forward.2} parent=96 // pred_check
          %p1565 = pneg %p223
        $region103: #{_device_forward.2} parent=96 // pred_check_branch
          %1567 = sbr.rel (%p1565) target = $region105
        $region104: #{_device_forward.2} parent=96 // pred_region
          %p1568 = scmp.lt.s32.totalorder %s24, 1
          %s1569 = scalar_select %p1568, %s24, 1
          %s1570 = smul.addr %s1569, 8
          %s1571 = scalar_lea.vmem %s6, %s1570
        $region105: #{_device_forward.2} parent=96 // pred_fallthru
          _
      $region97: #{_device_forward.2} parent=5 // pred_fallthru
        _
    $region6: #{_device_forward.2} parent=1 // loop_footer
      %s17 = sadd.s32 1, %s13
    $region7: #{_device_forward.2} parent=1 // loop_footer_branch
      %12 = sbr.rel target = $region3
    $region8: #{_device_forward.2} parent=1 // loop_exit
      _

// kernel: _device_forward.3
$region0: #{_device_forward.3}
  #allocation0 [shape = 'u32[]', space=smem, size = 0x4, offset = 0x4, fixed_abs, tag = 'smem constant byte address 0x4 - core index']
  #allocation1 [shape = 'u32[144,128]{1,0:T(1,128)}', space=vmem, size = 0x12000, scoped, tag = 'internal scratch']
  #allocation2 [shape = 'f32[8,128]{1,0:T(8,128)}', space=vmem, size = 0x1000, scoped, tag = 'scratch operand']
  #allocation3 [shape = 'f32[8,128]{1,0:T(8,128)}', space=vmem, size = 0x1000, scoped, tag = 'scratch operand']
  #allocation4 [shape = 'f32[32,512]{1,0:T(8,128)}', space=vmem, size = 0x10000, scoped, tag = 'scratch operand']
  %s0 = inlined_call_operand.vmem [shape: s32[8,1], index: 0, kind: input, shape index: {}]
  %s1 = inlined_call_operand.vmem [shape: bf16[64,256], index: 1, kind: input, shape index: {}]
  %s2 = inlined_call_operand.vmem [shape: bf16[2,256,512], index: 2, kind: input, shape index: {}]
  %s3 = inlined_call_operand.vmem [shape: bf16[2,128,512], index: 3, kind: input, shape index: {}]
  %s4 = inlined_call_operand.vmem [shape: f32[2,1,512], index: 4, kind: input, shape index: {}]
  %s5 = inlined_call_operand.vmem [shape: bf16[64,256], index: 5, kind: output, shape index: {0}]
  %s6 = inlined_call_operand.vmem [shape: f32[2,8,128], index: 6, kind: output, shape index: {1}]
  %7 = xla_tuple %s5, %s6
  %s8 = sld [smem:[#allocation0]]
  $region106: #{_device_forward.3} parent=0
    _
  %s10 = ssub.s32 1, %s8
  %s11 = scalar_select 0, %s10, %s8
  $region1: #{_device_forward.3} parent=0
    #allocation5 [shape = 'u8[16384]{0}', space=vmem, size = 0x4000, scoped, tag = 'output window, operand 0']
    loop: start=0, step=1, limit=6
    $region2: #{_device_forward.3} parent=1 // loop_pre_header
      _
    $region3: #{_device_forward.3} parent=1 // loop_header
      %s13 = sphi 0, %s17
      %p14 = scmp.ge.s32.totalorder %s13, 6
      %s20 = sphi 0, %s32
      %s21 = sphi 0, %s28
      %s22 = sphi 0, %s20
      %s23 = sphi 0, %s21
      %s24 = sphi 0, %s22
      %s25 = sphi 0, %s23
      %s33 = sphi 0, %s33
      %s35 = sphi 0, %s33
      %s36 = sphi 0, %s35
      %s50 = sphi 0, %s36
      %s64 = sphi 0, %s66
      %s67 = sphi 0, %s64
      %s68 = sphi 0, %s67
      %s84 = sphi 0, %s68
      %s90 = sphi 0, %s92
      %s93 = sphi 0, %s90
      %s94 = sphi 0, %s93
      %s110 = sphi 0, %s94
      %s116 = sphi 0, %s118
      %s119 = sphi 0, %s116
      %s120 = sphi 0, %s119
      %s136 = sphi 0, %s120
      %s142 = sphi 0, %s144
      %s145 = sphi 0, %s142
      %s146 = sphi 0, %s145
      %s162 = sphi 0, %s146
      %s178 = sphi 0, %s180
      %s181 = sphi 0, %s178
      %s182 = sphi 0, %s181
      %s198 = sphi 0, %s182
      %s204 = sphi 0, %s206
      %s207 = sphi 0, %s204
      %s208 = sphi 0, %s207
      %s224 = sphi 0, %s208
    $region4: #{_device_forward.3} parent=1 // loop_header_branch
      %16 = sbr.rel (%p14) target = $region8
    $region5: #{_device_forward.3} parent=1 // loop_body
      %s18 = ssub.s32 %s13, 1
      %s19 = ssub.s32 %s13, 2
      %s26 = sadd.s32 1, %s21
      %p27 = scmp.ge.s32.totalorder %s26, 2
      %s28 = scalar_select %p27, 0, %s26
      %s29 = sadd.s32 1, %s20
      %s30 = scalar_select %p27, %s29, %s20
      %p31 = scmp.ge.s32.totalorder %s30, 2
      %s32 = scalar_select %p31, 0, %s30
      %s34 = sadd.s32 %s33, 1
      %p37 = scmp.eq.s32.totalorder %s13, 3
      %p38 = scmp.ne.s32.totalorder %s33, %s35
      %p39 = scmp.eq.s32.totalorder %s13, 0
      %p40 = por %p38, %p39
      %p41 = scmp.ne.s32.totalorder %s33, %s35
      %p42 = scmp.eq.s32.totalorder %s18, 3
      %p43 = por %p41, %p42
      %p44 = scmp.ne.s32.totalorder %s35, %s36
      %p45 = scmp.eq.s32.totalorder %s18, 0
      %p46 = por %p44, %p45
      %p47 = scmp.ne.s32.totalorder %s35, %s36
      %p48 = scmp.eq.s32.totalorder %s19, 3
      %p49 = por %p47, %p48
      %p51 = scmp.ne.s32.totalorder %s36, %s50
      %p52 = scmp.eq.s32.totalorder %s19, 0
      %p53 = por %p51, %p52
      %s54 = smul.u32 %s21, 2
      %s55 = ssub.s32 1, %s54
      %s56 = smul.u32 %s20, %s55
      %s57 = sadd.s32 %s21, %s56
      %s58 = smul.u32 %s28, 2
      %s59 = ssub.s32 1, %s58
      %s60 = smul.u32 %s32, %s59
      %s61 = sadd.s32 %s28, %s60
      %s62 = ssub.s32 %s57, %s61
      %p63 = scmp.eq.s32.totalorder %s62, 0
      %s65 = sadd.s32 %s64, 1
      %s66 = scalar_select %p63, %s64, %s65
      %p69 = pneg %p63
      %p70 = scmp.eq.s32.totalorder %s13, 3
      %p71 = por %p69, %p70
      %p72 = scmp.ne.s32.totalorder %s64, %s67
      %p73 = scmp.eq.s32.totalorder %s13, 0
      %p74 = por %p72, %p73
      %p75 = scmp.ne.s32.totalorder %s64, %s67
      %p76 = scmp.eq.s32.totalorder %s18, 3
      %p77 = por %p75, %p76
      %p78 = scmp.ne.s32.totalorder %s67, %s68
      %p79 = scmp.eq.s32.totalorder %s18, 0
      %p80 = por %p78, %p79
      %p81 = scmp.ne.s32.totalorder %s67, %s68
      %p82 = scmp.eq.s32.totalorder %s19, 3
      %p83 = por %p81, %p82
      %p85 = scmp.ne.s32.totalorder %s68, %s84
      %p86 = scmp.eq.s32.totalorder %s19, 0
      %p87 = por %p85, %p86
      %s88 = ssub.s32 %s20, %s32
      %p89 = scmp.eq.s32.totalorder %s88, 0
      %s91 = sadd.s32 %s90, 1
      %s92 = scalar_select %p89, %s90, %s91
      %p95 = pneg %p89
      %p96 = scmp.eq.s32.totalorder %s13, 3
      %p97 = por %p95, %p96
      %p98 = scmp.ne.s32.totalorder %s90, %s93
      %p99 = scmp.eq.s32.totalorder %s13, 0
      %p100 = por %p98, %p99
      %p101 = scmp.ne.s32.totalorder %s90, %s93
      %p102 = scmp.eq.s32.totalorder %s18, 3
      %p103 = por %p101, %p102
      %p104 = scmp.ne.s32.totalorder %s93, %s94
      %p105 = scmp.eq.s32.totalorder %s18, 0
      %p106 = por %p104, %p105
      %p107 = scmp.ne.s32.totalorder %s93, %s94
      %p108 = scmp.eq.s32.totalorder %s19, 3
      %p109 = por %p107, %p108
      %p111 = scmp.ne.s32.totalorder %s94, %s110
      %p112 = scmp.eq.s32.totalorder %s19, 0
      %p113 = por %p111, %p112
      %s114 = ssub.s32 %s20, %s32
      %p115 = scmp.eq.s32.totalorder %s114, 0
      %s117 = sadd.s32 %s116, 1
      %s118 = scalar_select %p115, %s116, %s117
      %p121 = pneg %p115
      %p122 = scmp.eq.s32.totalorder %s13, 3
      %p123 = por %p121, %p122
      %p124 = scmp.ne.s32.totalorder %s116, %s119
      %p125 = scmp.eq.s32.totalorder %s13, 0
      %p126 = por %p124, %p125
      %p127 = scmp.ne.s32.totalorder %s116, %s119
      %p128 = scmp.eq.s32.totalorder %s18, 3
      %p129 = por %p127, %p128
      %p130 = scmp.ne.s32.totalorder %s119, %s120
      %p131 = scmp.eq.s32.totalorder %s18, 0
      %p132 = por %p130, %p131
      %p133 = scmp.ne.s32.totalorder %s119, %s120
      %p134 = scmp.eq.s32.totalorder %s19, 3
      %p135 = por %p133, %p134
      %p137 = scmp.ne.s32.totalorder %s120, %s136
      %p138 = scmp.eq.s32.totalorder %s19, 0
      %p139 = por %p137, %p138
      %s140 = ssub.s32 %s20, %s32
      %p141 = scmp.eq.s32.totalorder %s140, 0
      %s143 = sadd.s32 %s142, 1
      %s144 = scalar_select %p141, %s142, %s143
      %p147 = pneg %p141
      %p148 = scmp.eq.s32.totalorder %s13, 3
      %p149 = por %p147, %p148
      %p150 = scmp.ne.s32.totalorder %s142, %s145
      %p151 = scmp.eq.s32.totalorder %s13, 0
      %p152 = por %p150, %p151
      %p153 = scmp.ne.s32.totalorder %s142, %s145
      %p154 = scmp.eq.s32.totalorder %s18, 3
      %p155 = por %p153, %p154
      %p156 = scmp.ne.s32.totalorder %s145, %s146
      %p157 = scmp.eq.s32.totalorder %s18, 0
      %p158 = por %p156, %p157
      %p159 = scmp.ne.s32.totalorder %s145, %s146
      %p160 = scmp.eq.s32.totalorder %s19, 3
      %p161 = por %p159, %p160
      %p163 = scmp.ne.s32.totalorder %s146, %s162
      %p164 = scmp.eq.s32.totalorder %s19, 0
      %p165 = por %p163, %p164
      %s166 = smul.u32 %s21, 2
      %s167 = ssub.s32 1, %s166
      %s168 = smul.u32 %s20, %s167
      %s169 = sadd.s32 %s21, %s168
      %s170 = smul.u32 %s28, 2
      %s171 = ssub.s32 1, %s170
      %s172 = smul.u32 %s32, %s171
      %s173 = sadd.s32 %s28, %s172
      %s174 = ssub.s32 %s169, %s173
      %s175 = ssub.s32 %s20, %s32
      %s176 = sor.u32 %s174, %s175
      %p177 = scmp.eq.s32.totalorder %s176, 0
      %s179 = sadd.s32 %s178, 1
      %s180 = scalar_select %p177, %s178, %s179
      %p183 = pneg %p177
      %p184 = scmp.eq.s32.totalorder %s13, 3
      %p185 = por %p183, %p184
      %p186 = scmp.ne.s32.totalorder %s178, %s181
      %p187 = scmp.eq.s32.totalorder %s13, 0
      %p188 = por %p186, %p187
      %p189 = scmp.ne.s32.totalorder %s178, %s181
      %p190 = scmp.eq.s32.totalorder %s18, 3
      %p191 = por %p189, %p190
      %p192 = scmp.ne.s32.totalorder %s181, %s182
      %p193 = scmp.eq.s32.totalorder %s18, 0
      %p194 = por %p192, %p193
      %p195 = scmp.ne.s32.totalorder %s181, %s182
      %p196 = scmp.eq.s32.totalorder %s19, 3
      %p197 = por %p195, %p196
      %p199 = scmp.ne.s32.totalorder %s182, %s198
      %p200 = scmp.eq.s32.totalorder %s19, 0
      %p201 = por %p199, %p200
      %s202 = ssub.s32 %s20, %s32
      %p203 = scmp.eq.s32.totalorder %s202, 0
      %s205 = sadd.s32 %s204, 1
      %s206 = scalar_select %p203, %s204, %s205
      %p209 = pneg %p203
      %p210 = scmp.eq.s32.totalorder %s13, 3
      %p211 = por %p209, %p210
      %p212 = scmp.ne.s32.totalorder %s204, %s207
      %p213 = scmp.eq.s32.totalorder %s13, 0
      %p214 = por %p212, %p213
      %p215 = scmp.ne.s32.totalorder %s204, %s207
      %p216 = scmp.eq.s32.totalorder %s18, 3
      %p217 = por %p215, %p216
      %p218 = scmp.ne.s32.totalorder %s207, %s208
      %p219 = scmp.eq.s32.totalorder %s18, 0
      %p220 = por %p218, %p219
      %p221 = scmp.ne.s32.totalorder %s207, %s208
      %p222 = scmp.eq.s32.totalorder %s19, 3
      %p223 = por %p221, %p222
      %p225 = scmp.ne.s32.totalorder %s208, %s224
      %p226 = scmp.eq.s32.totalorder %s19, 0
      %p227 = por %p225, %p226
      %p228 = scmp.le.s32.totalorder 1, %s13
      %p229 = scmp.lt.s32.totalorder %s13, 5
      %p230 = pnand %p228, %p229
      %p231 = pneg %p230
      // Predicated region
      $region9: #{_device_forward.3} parent=5 // pred_check
        _
      $region10: #{_device_forward.3} parent=5 // pred_check_branch
        %233 = sbr.rel (%p230) target = $region12
      $region11: #{_device_forward.3} parent=5 // pred_region
        %s234 = ssub.s32 %s13, 1
        // Predicated region
        $region13: #{_device_forward.3} parent=11 // pred_check
          %p235 = pneg %p46
        $region14: #{_device_forward.3} parent=11 // pred_check_branch
          %237 = sbr.rel (%p235) target = $region16
        $region15: #{_device_forward.3} parent=11 // pred_region
          _
        $region16: #{_device_forward.3} parent=11 // pred_fallthru
          _
      $region12: #{_device_forward.3} parent=5 // pred_fallthru
        _
      %p238 = scmp.lt.s32.totalorder %s13, 4
      // Predicated region
      $region17: #{_device_forward.3} parent=5 // pred_check
        %p239 = pneg %p238
      $region18: #{_device_forward.3} parent=5 // pred_check_branch
        %241 = sbr.rel (%p239) target = $region20
      $region19: #{_device_forward.3} parent=5 // pred_region
        // Predicated region
        $region21: #{_device_forward.3} parent=19 // pred_check
          %p242 = pneg %p74
        $region22: #{_device_forward.3} parent=19 // pred_check_branch
          %244 = sbr.rel (%p242) target = $region24
        $region23: #{_device_forward.3} parent=19 // pred_region
          %s245 = smul.u32 %s21, 2
          %s246 = ssub.s32 1, %s245
          %s247 = smul.u32 %s20, %s246
          %s248 = sadd.s32 %s21, %s247
          %s249 = smul.u32 4, %s248
          %p250 = scmp.lt.s32.totalorder %s249, 7
          %s251 = scalar_select %p250, %s249, 7
          %s252 = smul.addr %s251, 2
          %s253 = smul.addr %s252, 4
          %s254 = scalar_lea.vmem %s1, %s253
          %s255 = smul.u32 %s21, 2
          %s256 = ssub.s32 1, %s255
          %s257 = smul.u32 %s20, %s256
          %s258 = sadd.s32 %s21, %s257
          %s259 = smul.u32 4, %s258
        $region24: #{_device_forward.3} parent=19 // pred_fallthru
          _
        // Predicated region
        $region25: #{_device_forward.3} parent=19 // pred_check
          %p260 = pneg %p100
        $region26: #{_device_forward.3} parent=19 // pred_check_branch
          %262 = sbr.rel (%p260) target = $region28
        $region27: #{_device_forward.3} parent=19 // pred_region
          %p263 = scmp.lt.s32.totalorder %s20, 1
          %s264 = scalar_select %p263, %s20, 1
          %s265 = smul.addr %s264, 128
          %s266 = smul.addr %s265, 4
          %s267 = scalar_lea.vmem %s2, %s266
        $region28: #{_device_forward.3} parent=19 // pred_fallthru
          _
        // Predicated region
        $region29: #{_device_forward.3} parent=19 // pred_check
          %p268 = pneg %p126
        $region30: #{_device_forward.3} parent=19 // pred_check_branch
          %270 = sbr.rel (%p268) target = $region32
        $region31: #{_device_forward.3} parent=19 // pred_region
          %p271 = scmp.lt.s32.totalorder %s20, 1
          %s272 = scalar_select %p271, %s20, 1
          %s273 = smul.addr %s272, 64
          %s274 = smul.addr %s273, 4
          %s275 = scalar_lea.vmem %s3, %s274
        $region32: #{_device_forward.3} parent=19 // pred_fallthru
          _
        // Predicated region
        $region33: #{_device_forward.3} parent=19 // pred_check
          %p276 = pneg %p152
        $region34: #{_device_forward.3} parent=19 // pred_check_branch
          %278 = sbr.rel (%p276) target = $region36
        $region35: #{_device_forward.3} parent=19 // pred_region
          %p279 = scmp.lt.s32.totalorder %s20, 1
          %s280 = scalar_select %p279, %s20, 1
          %s281 = smul.addr %s280, 4
          %s282 = scalar_lea.vmem %s4, %s281
        $region36: #{_device_forward.3} parent=19 // pred_fallthru
          _
      $region20: #{_device_forward.3} parent=5 // pred_fallthru
        _
      %p283 = scmp.le.s32.totalorder 1, %s13
      %p284 = scmp.lt.s32.totalorder %s13, 5
      %p285 = pnand %p283, %p284
      %p286 = pneg %p285
      // Predicated region
      $region37: #{_device_forward.3} parent=5 // pred_check
        _
      $region38: #{_device_forward.3} parent=5 // pred_check_branch
        %288 = sbr.rel (%p285) target = $region40
      $region39: #{_device_forward.3} parent=5 // pred_region
        %s289 = ssub.s32 %s13, 1
        %p290 = pneg %p46
        %p291 = pneg %p43
        %s292 = smul.u32 %s23, 2
        %s293 = ssub.s32 1, %s292
        %s294 = smul.u32 %s22, %s293
        %s295 = sadd.s32 %s23, %s294
        %s296 = smul.u32 4, %s295
        %p297 = scmp.lt.s32.totalorder %s296, 7
        %s298 = scalar_select %p297, %s296, 7
        %s299 = smul.addr %s298, 2
        %s300 = smul.addr %s299, 4
        %s301 = scalar_lea.vmem %s1, %s300
        %p302 = pneg %p80
        %p303 = pneg %p77
        %p304 = scmp.lt.s32.totalorder %s22, 1
        %s305 = scalar_select %p304, %s22, 1
        %s306 = smul.addr %s305, 128
        %s307 = smul.addr %s306, 4
        %s308 = scalar_lea.vmem %s2, %s307
        %p309 = pneg %p106
        %p310 = pneg %p103
        %p311 = scmp.lt.s32.totalorder %s22, 1
        %s312 = scalar_select %p311, %s22, 1
        %s313 = smul.addr %s312, 64
        %s314 = smul.addr %s313, 4
        %s315 = scalar_lea.vmem %s3, %s314
        %p316 = pneg %p132
        %p317 = pneg %p129
        %p318 = scmp.lt.s32.totalorder %s22, 1
        %s319 = scalar_select %p318, %s22, 1
        %s320 = smul.addr %s319, 4
        %s321 = scalar_lea.vmem %s4, %s320
        %p322 = pneg %p158
        %p323 = pneg %p155
        %p324 = pneg %p194
        %p325 = pneg %p191
        %s326 = sand.u32 %s181, 1
        %s327 = sand.u32 %s181, 1
        %s328 = smul.addr %s327, 16
        %s329 = scalar_lea.vmem [#allocation5], %s328
        %p330 = pneg %p220
        %p331 = pneg %p217
        %p332 = scmp.lt.s32.totalorder %s22, 1
        %s333 = scalar_select %p332, %s22, 1
        %s334 = smul.addr %s333, 8
        %s335 = scalar_lea.vmem %s6, %s334
        %s336 = smul.u32 %s23, 2
        %s337 = ssub.s32 1, %s336
        %s338 = smul.u32 %s22, %s337
        %s339 = sadd.s32 %s23, %s338
        %s340 = smul.u32 4, %s339
        %p341 = scmp.lt.s32.totalorder %s340, 7
        %s342 = scalar_select %p341, %s340, 7
        %s343 = smul.addr %s342, 2
        %s344 = smul.addr %s343, 4
        %s345 = scalar_lea.vmem %s1, %s344
        %s346 = smul.u32 %s23, 2
        %s347 = ssub.s32 1, %s346
        %s348 = smul.u32 %s22, %s347
        %s349 = sadd.s32 %s23, %s348
        %s350 = smul.u32 4, %s349
        %p351 = scmp.lt.s32.totalorder %s22, 1
        %s352 = scalar_select %p351, %s22, 1
        %s353 = smul.addr %s352, 128
        %s354 = smul.addr %s353, 4
        %s355 = scalar_lea.vmem %s2, %s354
        %p356 = scmp.lt.s32.totalorder %s22, 1
        %s357 = scalar_select %p356, %s22, 1
        %s358 = smul.addr %s357, 64
        %s359 = smul.addr %s358, 4
        %s360 = scalar_lea.vmem %s3, %s359
        %p361 = scmp.lt.s32.totalorder %s22, 1
        %s362 = scalar_select %p361, %s22, 1
        %s363 = smul.addr %s362, 4
        %s364 = scalar_lea.vmem %s4, %s363
        %s365 = smul.u32 %s23, 2
        %s366 = ssub.s32 1, %s365
        %s367 = smul.u32 %s22, %s366
        %s368 = sadd.s32 %s23, %s367
        %s369 = smul.u32 4, %s368
        %p370 = scmp.lt.s32.totalorder %s22, 1
        %s371 = scalar_select %p370, %s22, 1
        %s372 = smul.addr %s371, 8
        %s373 = scalar_lea.vmem %s6, %s372
        %p375 = scmp.eq.s32.totalorder %s23, 0
        // Predicated region
        $region41: #{_device_forward.3} parent=39 // pred_check
          %p376 = pneg %p375
        $region42: #{_device_forward.3} parent=39 // pred_check_branch
          %378 = sbr.rel (%p376) target = $region44
        $region43: #{_device_forward.3} parent=39 // pred_region
          %379 = vst [vmem:[#allocation2] sm:$0xff] 0.0
          %380 = vst [vmem:[#allocation3] sm:$0xff] 0.0
        $region44: #{_device_forward.3} parent=39 // pred_fallthru
          _
        %v381 = vld [vmem:[%s345] sm:$0xff]
        %v382 = vld [vmem:[%s345 + $0x8] sm:$0xff]
        %v383 = vld [vmem:[%s345 + $0x10] sm:$0xff]
        %v384 = vld [vmem:[%s345 + $0x18] sm:$0xff]
        %v385 = vld [vmem:[%s355] sm:$0xff]
        %v386 = vld [vmem:[%s355 + $0x8] sm:$0xff]
        %v387 = vld [vmem:[%s355 + $0x10] sm:$0xff]
        %v388 = vld [vmem:[%s355 + $0x18] sm:$0xff]
        %v389 = vld [vmem:[%s355 + $0x20] sm:$0xff]
        %v390 = vld [vmem:[%s355 + $0x28] sm:$0xff]
        %v391 = vld [vmem:[%s355 + $0x30] sm:$0xff]
        %v392 = vld [vmem:[%s355 + $0x38] sm:$0xff]
        %v393 = vld [vmem:[%s355 + $0x40] sm:$0xff]
        %v394 = vld [vmem:[%s355 + $0x48] sm:$0xff]
        %v395 = vld [vmem:[%s355 + $0x50] sm:$0xff]
        %v396 = vld [vmem:[%s355 + $0x58] sm:$0xff]
        %v397 = vld [vmem:[%s355 + $0x60] sm:$0xff]
        %v398 = vld [vmem:[%s355 + $0x68] sm:$0xff]
        %v399 = vld [vmem:[%s355 + $0x70] sm:$0xff]
        %v400 = vld [vmem:[%s355 + $0x78] sm:$0xff]
        %v401 = vld [vmem:[%s355 + $0x80] sm:$0xff]
        %v402 = vld [vmem:[%s355 + $0x88] sm:$0xff]
        %v403 = vld [vmem:[%s355 + $0x90] sm:$0xff]
        %v404 = vld [vmem:[%s355 + $0x98] sm:$0xff]
        %v405 = vld [vmem:[%s355 + $0xa0] sm:$0xff]
        %v406 = vld [vmem:[%s355 + $0xa8] sm:$0xff]
        %v407 = vld [vmem:[%s355 + $0xb0] sm:$0xff]
        %v408 = vld [vmem:[%s355 + $0xb8] sm:$0xff]
        %v409 = vld [vmem:[%s355 + $0xc0] sm:$0xff]
        %v410 = vld [vmem:[%s355 + $0xc8] sm:$0xff]
        %v411 = vld [vmem:[%s355 + $0xd0] sm:$0xff]
        %v412 = vld [vmem:[%s355 + $0xd8] sm:$0xff]
        %v413 = vld [vmem:[%s355 + $0xe0] sm:$0xff]
        %v414 = vld [vmem:[%s355 + $0xe8] sm:$0xff]
        %v415 = vld [vmem:[%s355 + $0xf0] sm:$0xff]
        %v416 = vld [vmem:[%s355 + $0xf8] sm:$0xff]
        %v417 = vld [vmem:[%s355 + $0x100] sm:$0xff]
        %v418 = vld [vmem:[%s355 + $0x108] sm:$0xff]
        %v419 = vld [vmem:[%s355 + $0x110] sm:$0xff]
        %v420 = vld [vmem:[%s355 + $0x118] sm:$0xff]
        %v421 = vld [vmem:[%s355 + $0x120] sm:$0xff]
        %v422 = vld [vmem:[%s355 + $0x128] sm:$0xff]
        %v423 = vld [vmem:[%s355 + $0x130] sm:$0xff]
        %v424 = vld [vmem:[%s355 + $0x138] sm:$0xff]
        %v425 = vld [vmem:[%s355 + $0x140] sm:$0xff]
        %v426 = vld [vmem:[%s355 + $0x148] sm:$0xff]
        %v427 = vld [vmem:[%s355 + $0x150] sm:$0xff]
        %v428 = vld [vmem:[%s355 + $0x158] sm:$0xff]
        %v429 = vld [vmem:[%s355 + $0x160] sm:$0xff]
        %v430 = vld [vmem:[%s355 + $0x168] sm:$0xff]
        %v431 = vld [vmem:[%s355 + $0x170] sm:$0xff]
        %v432 = vld [vmem:[%s355 + $0x178] sm:$0xff]
        %v433 = vld [vmem:[%s355 + $0x180] sm:$0xff]
        %v434 = vld [vmem:[%s355 + $0x188] sm:$0xff]
        %v435 = vld [vmem:[%s355 + $0x190] sm:$0xff]
        %v436 = vld [vmem:[%s355 + $0x198] sm:$0xff]
        %v437 = vld [vmem:[%s355 + $0x1a0] sm:$0xff]
        %v438 = vld [vmem:[%s355 + $0x1a8] sm:$0xff]
        %v439 = vld [vmem:[%s355 + $0x1b0] sm:$0xff]
        %v440 = vld [vmem:[%s355 + $0x1b8] sm:$0xff]
        %v441 = vld [vmem:[%s355 + $0x1c0] sm:$0xff]
        %v442 = vld [vmem:[%s355 + $0x1c8] sm:$0xff]
        %v443 = vld [vmem:[%s355 + $0x1d0] sm:$0xff]
        %v444 = vld [vmem:[%s355 + $0x1d8] sm:$0xff]
        %v445 = vld [vmem:[%s355 + $0x1e0] sm:$0xff]
        %v446 = vld [vmem:[%s355 + $0x1e8] sm:$0xff]
        %v447 = vld [vmem:[%s355 + $0x1f0] sm:$0xff]
        %v448 = vld [vmem:[%s355 + $0x1f8] sm:$0xff]
        %v449 = vld [vmem:[%s364] sm:$0xf]
        %v451 = vlaneseq
        %v452 = vshrl.u32 %v451, 7
        %v453 = vsub.s32 0, %v452
        %v454 = vrot.slane %v449, %v453
        %v455 = vlaneseq
        %v456 = vshrl.u32 %v455, 7
        %v457 = vsub.s32 1, %v456
        %v458 = vrot.slane %v449, %v457
        %v459 = vlaneseq
        %v460 = vshrl.u32 %v459, 7
        %v461 = vsub.s32 2, %v460
        %v462 = vrot.slane %v449, %v461
        %v463 = vlaneseq
        %v464 = vshrl.u32 %v463, 7
        %v465 = vsub.s32 3, %v464
        %v466 = vrot.slane %v449, %v465
        %v475 = vunpack.c.l.b16 %v381
        %v476 = vunpack.c.h.b16 %v381
        %v477 = vunpack.c.l.b16 %v382
        %v478 = vunpack.c.h.b16 %v382
        %v479 = vunpack.c.l.b16 %v383
        %v480 = vunpack.c.h.b16 %v383
        %v481 = vunpack.c.l.b16 %v384
        %v482 = vunpack.c.h.b16 %v384
        %v483 = vpack.c.b16 %v477, %v475
        %v484 = vpack.c.b16 %v478, %v476
        %v485 = vpack.c.b16 %v481, %v479
        %v486 = vpack.c.b16 %v482, %v480
        %v555 = vunpack.c.l.b16 %v385
        %v556 = vunpack.c.h.b16 %v385
        %v557 = vunpack.c.l.b16 %v386
        %v558 = vunpack.c.h.b16 %v386
        %v559 = vunpack.c.l.b16 %v387
        %v560 = vunpack.c.h.b16 %v387
        %v561 = vunpack.c.l.b16 %v388
        %v562 = vunpack.c.h.b16 %v388
        %v563 = vunpack.c.l.b16 %v389
        %v564 = vunpack.c.h.b16 %v389
        %v565 = vunpack.c.l.b16 %v390
        %v566 = vunpack.c.h.b16 %v390
        %v567 = vunpack.c.l.b16 %v391
        %v568 = vunpack.c.h.b16 %v391
        %v569 = vunpack.c.l.b16 %v392
        %v570 = vunpack.c.h.b16 %v392
        %v571 = vunpack.c.l.b16 %v393
        %v572 = vunpack.c.h.b16 %v393
        %v573 = vunpack.c.l.b16 %v394
        %v574 = vunpack.c.h.b16 %v394
        %v575 = vunpack.c.l.b16 %v395
        %v576 = vunpack.c.h.b16 %v395
        %v577 = vunpack.c.l.b16 %v396
        %v578 = vunpack.c.h.b16 %v396
        %v579 = vunpack.c.l.b16 %v397
        %v580 = vunpack.c.h.b16 %v397
        %v581 = vunpack.c.l.b16 %v398
        %v582 = vunpack.c.h.b16 %v398
        %v583 = vunpack.c.l.b16 %v399
        %v584 = vunpack.c.h.b16 %v399
        %v585 = vunpack.c.l.b16 %v400
        %v586 = vunpack.c.h.b16 %v400
        %v587 = vunpack.c.l.b16 %v401
        %v588 = vunpack.c.h.b16 %v401
        %v589 = vunpack.c.l.b16 %v402
        %v590 = vunpack.c.h.b16 %v402
        %v591 = vunpack.c.l.b16 %v403
        %v592 = vunpack.c.h.b16 %v403
        %v593 = vunpack.c.l.b16 %v404
        %v594 = vunpack.c.h.b16 %v404
        %v595 = vunpack.c.l.b16 %v405
        %v596 = vunpack.c.h.b16 %v405
        %v597 = vunpack.c.l.b16 %v406
        %v598 = vunpack.c.h.b16 %v406
        %v599 = vunpack.c.l.b16 %v407
        %v600 = vunpack.c.h.b16 %v407
        %v601 = vunpack.c.l.b16 %v408
        %v602 = vunpack.c.h.b16 %v408
        %v603 = vunpack.c.l.b16 %v409
        %v604 = vunpack.c.h.b16 %v409
        %v605 = vunpack.c.l.b16 %v410
        %v606 = vunpack.c.h.b16 %v410
        %v607 = vunpack.c.l.b16 %v411
        %v608 = vunpack.c.h.b16 %v411
        %v609 = vunpack.c.l.b16 %v412
        %v610 = vunpack.c.h.b16 %v412
        %v611 = vunpack.c.l.b16 %v413
        %v612 = vunpack.c.h.b16 %v413
        %v613 = vunpack.c.l.b16 %v414
        %v614 = vunpack.c.h.b16 %v414
        %v615 = vunpack.c.l.b16 %v415
        %v616 = vunpack.c.h.b16 %v415
        %v617 = vunpack.c.l.b16 %v416
        %v618 = vunpack.c.h.b16 %v416
        %v619 = vunpack.c.l.b16 %v417
        %v620 = vunpack.c.h.b16 %v417
        %v621 = vunpack.c.l.b16 %v418
        %v622 = vunpack.c.h.b16 %v418
        %v623 = vunpack.c.l.b16 %v419
        %v624 = vunpack.c.h.b16 %v419
        %v625 = vunpack.c.l.b16 %v420
        %v626 = vunpack.c.h.b16 %v420
        %v627 = vunpack.c.l.b16 %v421
        %v628 = vunpack.c.h.b16 %v421
        %v629 = vunpack.c.l.b16 %v422
        %v630 = vunpack.c.h.b16 %v422
        %v631 = vunpack.c.l.b16 %v423
        %v632 = vunpack.c.h.b16 %v423
        %v633 = vunpack.c.l.b16 %v424
        %v634 = vunpack.c.h.b16 %v424
        %v635 = vunpack.c.l.b16 %v425
        %v636 = vunpack.c.h.b16 %v425
        %v637 = vunpack.c.l.b16 %v426
        %v638 = vunpack.c.h.b16 %v426
        %v639 = vunpack.c.l.b16 %v427
        %v640 = vunpack.c.h.b16 %v427
        %v641 = vunpack.c.l.b16 %v428
        %v642 = vunpack.c.h.b16 %v428
        %v643 = vunpack.c.l.b16 %v429
        %v644 = vunpack.c.h.b16 %v429
        %v645 = vunpack.c.l.b16 %v430
        %v646 = vunpack.c.h.b16 %v430
        %v647 = vunpack.c.l.b16 %v431
        %v648 = vunpack.c.h.b16 %v431
        %v649 = vunpack.c.l.b16 %v432
        %v650 = vunpack.c.h.b16 %v432
        %v651 = vunpack.c.l.b16 %v433
        %v652 = vunpack.c.h.b16 %v433
        %v653 = vunpack.c.l.b16 %v434
        %v654 = vunpack.c.h.b16 %v434
        %v655 = vunpack.c.l.b16 %v435
        %v656 = vunpack.c.h.b16 %v435
        %v657 = vunpack.c.l.b16 %v436
        %v658 = vunpack.c.h.b16 %v436
        %v659 = vunpack.c.l.b16 %v437
        %v660 = vunpack.c.h.b16 %v437
        %v661 = vunpack.c.l.b16 %v438
        %v662 = vunpack.c.h.b16 %v438
        %v663 = vunpack.c.l.b16 %v439
        %v664 = vunpack.c.h.b16 %v439
        %v665 = vunpack.c.l.b16 %v440
        %v666 = vunpack.c.h.b16 %v440
        %v667 = vunpack.c.l.b16 %v441
        %v668 = vunpack.c.h.b16 %v441
        %v669 = vunpack.c.l.b16 %v442
        %v670 = vunpack.c.h.b16 %v442
        %v671 = vunpack.c.l.b16 %v443
        %v672 = vunpack.c.h.b16 %v443
        %v673 = vunpack.c.l.b16 %v444
        %v674 = vunpack.c.h.b16 %v444
        %v675 = vunpack.c.l.b16 %v445
        %v676 = vunpack.c.h.b16 %v445
        %v677 = vunpack.c.l.b16 %v446
        %v678 = vunpack.c.h.b16 %v446
        %v679 = vunpack.c.l.b16 %v447
        %v680 = vunpack.c.h.b16 %v447
        %v681 = vunpack.c.l.b16 %v448
        %v682 = vunpack.c.h.b16 %v448
        %v683 = vpack.c.b16 %v559, %v555
        %v684 = vpack.c.b16 %v560, %v556
        %v685 = vpack.c.b16 %v561, %v557
        %v686 = vpack.c.b16 %v562, %v558
        %v687 = vpack.c.b16 %v567, %v563
        %v688 = vpack.c.b16 %v568, %v564
        %v689 = vpack.c.b16 %v569, %v565
        %v690 = vpack.c.b16 %v570, %v566
        %v691 = vpack.c.b16 %v575, %v571
        %v692 = vpack.c.b16 %v576, %v572
        %v693 = vpack.c.b16 %v577, %v573
        %v694 = vpack.c.b16 %v578, %v574
        %v695 = vpack.c.b16 %v583, %v579
        %v696 = vpack.c.b16 %v584, %v580
        %v697 = vpack.c.b16 %v585, %v581
        %v698 = vpack.c.b16 %v586, %v582
        %v699 = vpack.c.b16 %v591, %v587
        %v700 = vpack.c.b16 %v592, %v588
        %v701 = vpack.c.b16 %v593, %v589
        %v702 = vpack.c.b16 %v594, %v590
        %v703 = vpack.c.b16 %v599, %v595
        %v704 = vpack.c.b16 %v600, %v596
        %v705 = vpack.c.b16 %v601, %v597
        %v706 = vpack.c.b16 %v602, %v598
        %v707 = vpack.c.b16 %v607, %v603
        %v708 = vpack.c.b16 %v608, %v604
        %v709 = vpack.c.b16 %v609, %v605
        %v710 = vpack.c.b16 %v610, %v606
        %v711 = vpack.c.b16 %v615, %v611
        %v712 = vpack.c.b16 %v616, %v612
        %v713 = vpack.c.b16 %v617, %v613
        %v714 = vpack.c.b16 %v618, %v614
        %v715 = vpack.c.b16 %v623, %v619
        %v716 = vpack.c.b16 %v624, %v620
        %v717 = vpack.c.b16 %v625, %v621
        %v718 = vpack.c.b16 %v626, %v622
        %v719 = vpack.c.b16 %v631, %v627
        %v720 = vpack.c.b16 %v632, %v628
        %v721 = vpack.c.b16 %v633, %v629
        %v722 = vpack.c.b16 %v634, %v630
        %v723 = vpack.c.b16 %v639, %v635
        %v724 = vpack.c.b16 %v640, %v636
        %v725 = vpack.c.b16 %v641, %v637
        %v726 = vpack.c.b16 %v642, %v638
        %v727 = vpack.c.b16 %v647, %v643
        %v728 = vpack.c.b16 %v648, %v644
        %v729 = vpack.c.b16 %v649, %v645
        %v730 = vpack.c.b16 %v650, %v646
        %v731 = vpack.c.b16 %v655, %v651
        %v732 = vpack.c.b16 %v656, %v652
        %v733 = vpack.c.b16 %v657, %v653
        %v734 = vpack.c.b16 %v658, %v654
        %v735 = vpack.c.b16 %v663, %v659
        %v736 = vpack.c.b16 %v664, %v660
        %v737 = vpack.c.b16 %v665, %v661
        %v738 = vpack.c.b16 %v666, %v662
        %v739 = vpack.c.b16 %v671, %v667
        %v740 = vpack.c.b16 %v672, %v668
        %v741 = vpack.c.b16 %v673, %v669
        %v742 = vpack.c.b16 %v674, %v670
        %v743 = vpack.c.b16 %v679, %v675
        %v744 = vpack.c.b16 %v680, %v676
        %v745 = vpack.c.b16 %v681, %v677
        %v746 = vpack.c.b16 %v682, %v678
        %811 = vmatprep.subr.bf16.mxu0 %v684
        %812 = vmatpush1.bf16.msra.mxu0 %v683
        %813 = vmatprep.subr.bf16.mxu0 %v688
        %814 = vmatpush1.bf16.msra.mxu0 %v687
        %815 = vmatprep.subr.bf16.mxu0 %v692
        %816 = vmatpush1.bf16.msra.mxu0 %v691
        %817 = vmatprep.subr.bf16.mxu0 %v696
        %818 = vmatpush1.bf16.msra.mxu0 %v695
        %819 = vmatprep.subr.bf16.mxu0 %v700
        %820 = vmatpush1.bf16.msra.mxu0 %v699
        %821 = vmatprep.subr.bf16.mxu0 %v704
        %822 = vmatpush1.bf16.msra.mxu0 %v703
        %823 = vmatprep.subr.bf16.mxu0 %v708
        %824 = vmatpush1.bf16.msra.mxu0 %v707
        %825 = vmatprep.subr.bf16.mxu0 %v712
        %826 = vmatpush1.bf16.msra.mxu0 %v711
        %827 = vmatprep.subr.bf16.mxu0 %v716
        %828 = vmatpush1.bf16.msra.mxu0 %v715
        %829 = vmatprep.subr.bf16.mxu0 %v720
        %830 = vmatpush1.bf16.msra.mxu0 %v719
        %831 = vmatprep.subr.bf16.mxu0 %v724
        %832 = vmatpush1.bf16.msra.mxu0 %v723
        %833 = vmatprep.subr.bf16.mxu0 %v728
        %834 = vmatpush1.bf16.msra.mxu0 %v727
        %835 = vmatprep.subr.bf16.mxu0 %v732
        %836 = vmatpush1.bf16.msra.mxu0 %v731
        %837 = vmatprep.subr.bf16.mxu0 %v736
        %838 = vmatpush1.bf16.msra.mxu0 %v735
        %839 = vmatprep.subr.bf16.mxu0 %v740
        %840 = vmatpush1.bf16.msra.mxu0 %v739
        %841 = vmatprep.subr.bf16.mxu0 %v744
        %842 = vmatpush1.bf16.msra.mxu0 %v743
        %843 = vmatprep.mubr.bf16.mxu0 %v484
        %844 = vmatmul.mubr.bf16.gmra.mrb[0].mxu0 %v483
        %v845 = vpop.f32.mrb[0].mxu0
        %v846 = vadd.f32 %v454, %v845
        %v847 = vpop.f32.mrb[0].mxu0
        %v848 = vadd.f32 %v458, %v847
        %v849 = vpop.f32.mrb[0].mxu0
        %v850 = vadd.f32 %v454, %v849
        %v851 = vpop.f32.mrb[0].mxu0
        %v852 = vadd.f32 %v458, %v851
        %853 = vmatprep.mubr.bf16.mxu0 %v486
        %854 = vmatmul.mubr.bf16.gmra.mrb[0].mxu0 %v485
        %v855 = vpop.f32.mrb[0].mxu0
        %v856 = vadd.f32 %v454, %v855
        %v857 = vpop.f32.mrb[0].mxu0
        %v858 = vadd.f32 %v458, %v857
        %v859 = vpop.f32.mrb[0].mxu0
        %v860 = vadd.f32 %v454, %v859
        %v861 = vpop.f32.mrb[0].mxu0
        %v862 = vadd.f32 %v458, %v861
        %863 = vdwg.mxu0
        %864 = vmatprep.subr.bf16.mxu0 %v686
        %865 = vmatpush1.bf16.msra.mxu0 %v685
        %866 = vmatprep.subr.bf16.mxu0 %v690
        %867 = vmatpush1.bf16.msra.mxu0 %v689
        %868 = vmatprep.subr.bf16.mxu0 %v694
        %869 = vmatpush1.bf16.msra.mxu0 %v693
        %870 = vmatprep.subr.bf16.mxu0 %v698
        %871 = vmatpush1.bf16.msra.mxu0 %v697
        %872 = vmatprep.subr.bf16.mxu0 %v702
        %873 = vmatpush1.bf16.msra.mxu0 %v701
        %874 = vmatprep.subr.bf16.mxu0 %v706
        %875 = vmatpush1.bf16.msra.mxu0 %v705
        %876 = vmatprep.subr.bf16.mxu0 %v710
        %877 = vmatpush1.bf16.msra.mxu0 %v709
        %878 = vmatprep.subr.bf16.mxu0 %v714
        %879 = vmatpush1.bf16.msra.mxu0 %v713
        %880 = vmatprep.subr.bf16.mxu0 %v718
        %881 = vmatpush1.bf16.msra.mxu0 %v717
        %882 = vmatprep.subr.bf16.mxu0 %v722
        %883 = vmatpush1.bf16.msra.mxu0 %v721
        %884 = vmatprep.subr.bf16.mxu0 %v726
        %885 = vmatpush1.bf16.msra.mxu0 %v725
        %886 = vmatprep.subr.bf16.mxu0 %v730
        %887 = vmatpush1.bf16.msra.mxu0 %v729
        %888 = vmatprep.subr.bf16.mxu0 %v734
        %889 = vmatpush1.bf16.msra.mxu0 %v733
        %890 = vmatprep.subr.bf16.mxu0 %v738
        %891 = vmatpush1.bf16.msra.mxu0 %v737
        %892 = vmatprep.subr.bf16.mxu0 %v742
        %893 = vmatpush1.bf16.msra.mxu0 %v741
        %894 = vmatprep.subr.bf16.mxu0 %v746
        %895 = vmatpush1.bf16.msra.mxu0 %v745
        %896 = vmatprep.mubr.bf16.mxu0 %v484
        %897 = vmatmul.mubr.bf16.gmra.mrb[0].mxu0 %v483
        %v898 = vpop.f32.mrb[0].mxu0
        %v899 = vadd.f32 %v462, %v898
        %v900 = vpop.f32.mrb[0].mxu0
        %v901 = vadd.f32 %v466, %v900
        %v902 = vpop.f32.mrb[0].mxu0
        %v903 = vadd.f32 %v462, %v902
        %v904 = vpop.f32.mrb[0].mxu0
        %v905 = vadd.f32 %v466, %v904
        %906 = vmatprep.mubr.bf16.mxu0 %v486
        %907 = vmatmul.mubr.bf16.gmra.mrb[0].mxu0 %v485
        %v908 = vpop.f32.mrb[0].mxu0
        %v909 = vadd.f32 %v462, %v908
        %v910 = vpop.f32.mrb[0].mxu0
        %v911 = vadd.f32 %v466, %v910
        %v912 = vpop.f32.mrb[0].mxu0
        %v913 = vadd.f32 %v462, %v912
        %v914 = vpop.f32.mrb[0].mxu0
        %v915 = vadd.f32 %v466, %v914
        %916 = vdwg.mxu0
        %917 = vst [vmem:[#allocation4] sm:$0xff] %v846
        %918 = vst [vmem:[#allocation4 + $0x8] sm:$0xff] %v848
        %919 = vst [vmem:[#allocation4 + $0x10] sm:$0xff] %v899
        %920 = vst [vmem:[#allocation4 + $0x18] sm:$0xff] %v901
        %921 = vst [vmem:[#allocation4 + $0x20] sm:$0xff] %v850
        %922 = vst [vmem:[#allocation4 + $0x28] sm:$0xff] %v852
        %923 = vst [vmem:[#allocation4 + $0x30] sm:$0xff] %v903
        %924 = vst [vmem:[#allocation4 + $0x38] sm:$0xff] %v905
        %925 = vst [vmem:[#allocation4 + $0x40] sm:$0xff] %v856
        %926 = vst [vmem:[#allocation4 + $0x48] sm:$0xff] %v858
        %927 = vst [vmem:[#allocation4 + $0x50] sm:$0xff] %v909
        %928 = vst [vmem:[#allocation4 + $0x58] sm:$0xff] %v911
        %929 = vst [vmem:[#allocation4 + $0x60] sm:$0xff] %v860
        %930 = vst [vmem:[#allocation4 + $0x68] sm:$0xff] %v862
        %931 = vst [vmem:[#allocation4 + $0x70] sm:$0xff] %v913
        %932 = vst [vmem:[#allocation4 + $0x78] sm:$0xff] %v915
        %v933 = vld [vmem:[%s360] sm:$0xff]
        %v934 = vld [vmem:[%s360 + $0x8] sm:$0xff]
        %v935 = vld [vmem:[%s360 + $0x10] sm:$0xff]
        %v936 = vld [vmem:[%s360 + $0x18] sm:$0xff]
        %v937 = vld [vmem:[%s360 + $0x20] sm:$0xff]
        %v938 = vld [vmem:[%s360 + $0x28] sm:$0xff]
        %v939 = vld [vmem:[%s360 + $0x30] sm:$0xff]
        %v940 = vld [vmem:[%s360 + $0x38] sm:$0xff]
        %v941 = vld [vmem:[%s360 + $0x40] sm:$0xff]
        %v942 = vld [vmem:[%s360 + $0x48] sm:$0xff]
        %v943 = vld [vmem:[%s360 + $0x50] sm:$0xff]
        %v944 = vld [vmem:[%s360 + $0x58] sm:$0xff]
        %v945 = vld [vmem:[%s360 + $0x60] sm:$0xff]
        %v946 = vld [vmem:[%s360 + $0x68] sm:$0xff]
        %v947 = vld [vmem:[%s360 + $0x70] sm:$0xff]
        %v948 = vld [vmem:[%s360 + $0x78] sm:$0xff]
        %v949 = vld [vmem:[%s360 + $0x80] sm:$0xff]
        %v950 = vld [vmem:[%s360 + $0x88] sm:$0xff]
        %v951 = vld [vmem:[%s360 + $0x90] sm:$0xff]
        %v952 = vld [vmem:[%s360 + $0x98] sm:$0xff]
        %v953 = vld [vmem:[%s360 + $0xa0] sm:$0xff]
        %v954 = vld [vmem:[%s360 + $0xa8] sm:$0xff]
        %v955 = vld [vmem:[%s360 + $0xb0] sm:$0xff]
        %v956 = vld [vmem:[%s360 + $0xb8] sm:$0xff]
        %v957 = vld [vmem:[%s360 + $0xc0] sm:$0xff]
        %v958 = vld [vmem:[%s360 + $0xc8] sm:$0xff]
        %v959 = vld [vmem:[%s360 + $0xd0] sm:$0xff]
        %v960 = vld [vmem:[%s360 + $0xd8] sm:$0xff]
        %v961 = vld [vmem:[%s360 + $0xe0] sm:$0xff]
        %v962 = vld [vmem:[%s360 + $0xe8] sm:$0xff]
        %v963 = vld [vmem:[%s360 + $0xf0] sm:$0xff]
        %v964 = vld [vmem:[%s360 + $0xf8] sm:$0xff]
        %v965 = vld [vmem:[%s0] sm:$0xff]
        %966 = vset.pattern.permute.xlu0 0
        %967 = vperm.xlu0 %966, %v965
        %v968 = vpop.permute.xlu0 %967
        %v969 = vld [vmem:[#allocation2] sm:$0xff]
        %v970 = vld [vmem:[#allocation3] sm:$0xff]
        %s971 = smul.u32 %s23, 4
        %s972 = smul.u32 %s23, 8
        %s973 = ssub.s32 7, %s972
        %s974 = smul.u32 %s22, %s973
        %s975 = sadd.s32 %s971, %s974
        %s976 = smul.u32 %s22, 24
        %s977 = sshra.s32 %s976, 3
        %s978 = sand.u32 %s976, 7
        %s979 = smul.u32 %s977, 4
        %s980 = smul.addr %s979, 8
        %s981 = scalar_lea.vmem [#allocation4], %s980
        %v982 = vld [vmem:[%s981] sm:$0xff]
        %v983 = vld [vmem:[%s981 + $0x8] sm:$0xff]
        %v984 = vld [vmem:[%s981 + $0x10] sm:$0xff]
        %v985 = vld [vmem:[%s981 + $0x18] sm:$0xff]
        %v986 = vpack.c.bf16 %v969, %v969
        %v1019 = vunpack.c.l.b16 %v933
        %v1020 = vunpack.c.h.b16 %v933
        %v1021 = vunpack.c.l.b16 %v934
        %v1022 = vunpack.c.h.b16 %v934
        %v1023 = vunpack.c.l.b16 %v935
        %v1024 = vunpack.c.h.b16 %v935
        %v1025 = vunpack.c.l.b16 %v936
        %v1026 = vunpack.c.h.b16 %v936
        %v1027 = vunpack.c.l.b16 %v937
        %v1028 = vunpack.c.h.b16 %v937
        %v1029 = vunpack.c.l.b16 %v938
        %v1030 = vunpack.c.h.b16 %v938
        %v1031 = vunpack.c.l.b16 %v939
        %v1032 = vunpack.c.h.b16 %v939
        %v1033 = vunpack.c.l.b16 %v940
        %v1034 = vunpack.c.h.b16 %v940
        %v1035 = vunpack.c.l.b16 %v941
        %v1036 = vunpack.c.h.b16 %v941
        %v1037 = vunpack.c.l.b16 %v942
        %v1038 = vunpack.c.h.b16 %v942
        %v1039 = vunpack.c.l.b16 %v943
        %v1040 = vunpack.c.h.b16 %v943
        %v1041 = vunpack.c.l.b16 %v944
        %v1042 = vunpack.c.h.b16 %v944
        %v1043 = vunpack.c.l.b16 %v945
        %v1044 = vunpack.c.h.b16 %v945
        %v1045 = vunpack.c.l.b16 %v946
        %v1046 = vunpack.c.h.b16 %v946
        %v1047 = vunpack.c.l.b16 %v947
        %v1048 = vunpack.c.h.b16 %v947
        %v1049 = vunpack.c.l.b16 %v948
        %v1050 = vunpack.c.h.b16 %v948
        %v1051 = vunpack.c.l.b16 %v949
        %v1052 = vunpack.c.h.b16 %v949
        %v1053 = vunpack.c.l.b16 %v950
        %v1054 = vunpack.c.h.b16 %v950
        %v1055 = vunpack.c.l.b16 %v951
        %v1056 = vunpack.c.h.b16 %v951
        %v1057 = vunpack.c.l.b16 %v952
        %v1058 = vunpack.c.h.b16 %v952
        %v1059 = vunpack.c.l.b16 %v953
        %v1060 = vunpack.c.h.b16 %v953
        %v1061 = vunpack.c.l.b16 %v954
        %v1062 = vunpack.c.h.b16 %v954
        %v1063 = vunpack.c.l.b16 %v955
        %v1064 = vunpack.c.h.b16 %v955
        %v1065 = vunpack.c.l.b16 %v956
        %v1066 = vunpack.c.h.b16 %v956
        %v1067 = vunpack.c.l.b16 %v957
        %v1068 = vunpack.c.h.b16 %v957
        %v1069 = vunpack.c.l.b16 %v958
        %v1070 = vunpack.c.h.b16 %v958
        %v1071 = vunpack.c.l.b16 %v959
        %v1072 = vunpack.c.h.b16 %v959
        %v1073 = vunpack.c.l.b16 %v960
        %v1074 = vunpack.c.h.b16 %v960
        %v1075 = vunpack.c.l.b16 %v961
        %v1076 = vunpack.c.h.b16 %v961
        %v1077 = vunpack.c.l.b16 %v962
        %v1078 = vunpack.c.h.b16 %v962
        %v1079 = vunpack.c.l.b16 %v963
        %v1080 = vunpack.c.h.b16 %v963
        %v1081 = vunpack.c.l.b16 %v964
        %v1082 = vunpack.c.h.b16 %v964
        %v1083 = vpack.c.b16 %v1023, %v1019
        %v1084 = vpack.c.b16 %v1024, %v1020
        %v1085 = vpack.c.b16 %v1025, %v1021
        %v1086 = vpack.c.b16 %v1026, %v1022
        %v1087 = vpack.c.b16 %v1031, %v1027
        %v1088 = vpack.c.b16 %v1032, %v1028
        %v1089 = vpack.c.b16 %v1033, %v1029
        %v1090 = vpack.c.b16 %v1034, %v1030
        %v1091 = vpack.c.b16 %v1039, %v1035
        %v1092 = vpack.c.b16 %v1040, %v1036
        %v1093 = vpack.c.b16 %v1041, %v1037
        %v1094 = vpack.c.b16 %v1042, %v1038
        %v1095 = vpack.c.b16 %v1047, %v1043
        %v1096 = vpack.c.b16 %v1048, %v1044
        %v1097 = vpack.c.b16 %v1049, %v1045
        %v1098 = vpack.c.b16 %v1050, %v1046
        %v1099 = vpack.c.b16 %v1055, %v1051
        %v1100 = vpack.c.b16 %v1056, %v1052
        %v1101 = vpack.c.b16 %v1057, %v1053
        %v1102 = vpack.c.b16 %v1058, %v1054
        %v1103 = vpack.c.b16 %v1063, %v1059
        %v1104 = vpack.c.b16 %v1064, %v1060
        %v1105 = vpack.c.b16 %v1065, %v1061
        %v1106 = vpack.c.b16 %v1066, %v1062
        %v1107 = vpack.c.b16 %v1071, %v1067
        %v1108 = vpack.c.b16 %v1072, %v1068
        %v1109 = vpack.c.b16 %v1073, %v1069
        %v1110 = vpack.c.b16 %v1074, %v1070
        %v1111 = vpack.c.b16 %v1079, %v1075
        %v1112 = vpack.c.b16 %v1080, %v1076
        %v1113 = vpack.c.b16 %v1081, %v1077
        %v1114 = vpack.c.b16 %v1082, %v1078
        %1147 = vmatprep.subr.bf16.mxu0 %v1084
        %1148 = vmatpush1.bf16.msra.mxu0 %v1083
        %1149 = vmatprep.subr.bf16.mxu0 %v1088
        %1150 = vmatpush1.bf16.msra.mxu0 %v1087
        %1151 = vmatprep.subr.bf16.mxu0 %v1092
        %1152 = vmatpush1.bf16.msra.mxu0 %v1091
        %1153 = vmatprep.subr.bf16.mxu0 %v1096
        %1154 = vmatpush1.bf16.msra.mxu0 %v1095
        %1155 = vmatprep.subr.bf16.mxu0 %v1100
        %1156 = vmatpush1.bf16.msra.mxu0 %v1099
        %1157 = vmatprep.subr.bf16.mxu0 %v1104
        %1158 = vmatpush1.bf16.msra.mxu0 %v1103
        %1159 = vmatprep.subr.bf16.mxu0 %v1108
        %1160 = vmatpush1.bf16.msra.mxu0 %v1107
        %1161 = vmatprep.subr.bf16.mxu0 %v1112
        %1162 = vmatpush1.bf16.msra.mxu0 %v1111
        %1163 = vmatprep.subr.bf16.mxu0 0
        %1164 = vmatpush1.bf16.msra.mxu0 0
        %1165 = vmatprep.subr.bf16.mxu0 0
        %1166 = vmatpush1.bf16.msra.mxu0 0
        %1167 = vmatprep.subr.bf16.mxu0 0
        %1168 = vmatpush1.bf16.msra.mxu0 0
        %1169 = vmatprep.subr.bf16.mxu0 0
        %1170 = vmatpush1.bf16.msra.mxu0 0
        %1171 = vmatprep.subr.bf16.mxu0 0
        %1172 = vmatpush1.bf16.msra.mxu0 0
        %1173 = vmatprep.subr.bf16.mxu0 0
        %1174 = vmatpush1.bf16.msra.mxu0 0
        %1175 = vmatprep.subr.bf16.mxu0 0
        %1176 = vmatpush1.bf16.msra.mxu0 0
        %1177 = vmatprep.subr.bf16.mxu0 0
        %1178 = vmatpush1.bf16.msra.mxu0 0
        %1179 = vmatprep.mubr.bf16.mxu0 0
        %1180 = vmatmul.mubr.bf16.gmra.mrb[0].mxu0 %v986
        %v1181 = vpop.f32.mrb[0].mxu0
        %v1182 = vadd.f32 0.0, %v1181
        %v1183 = vpop.f32.mrb[0].mxu0
        %v1184 = vadd.f32 0.0, %v1183
        %v1185 = vpop.f32.mrb[0].mxu0
        %v1186 = vpop.f32.mrb[0].mxu0
        %1187 = vdwg.mxu0
        %1188 = vmatprep.subr.bf16.mxu0 %v1086
        %1189 = vmatpush1.bf16.msra.mxu0 %v1085
        %1190 = vmatprep.subr.bf16.mxu0 %v1090
        %1191 = vmatpush1.bf16.msra.mxu0 %v1089
        %1192 = vmatprep.subr.bf16.mxu0 %v1094
        %1193 = vmatpush1.bf16.msra.mxu0 %v1093
        %1194 = vmatprep.subr.bf16.mxu0 %v1098
        %1195 = vmatpush1.bf16.msra.mxu0 %v1097
        %1196 = vmatprep.subr.bf16.mxu0 %v1102
        %1197 = vmatpush1.bf16.msra.mxu0 %v1101
        %1198 = vmatprep.subr.bf16.mxu0 %v1106
        %1199 = vmatpush1.bf16.msra.mxu0 %v1105
        %1200 = vmatprep.subr.bf16.mxu0 %v1110
        %1201 = vmatpush1.bf16.msra.mxu0 %v1109
        %1202 = vmatprep.subr.bf16.mxu0 %v1114
        %1203 = vmatpush1.bf16.msra.mxu0 %v1113
        %1204 = vmatprep.subr.bf16.mxu0 0
        %1205 = vmatpush1.bf16.msra.mxu0 0
        %1206 = vmatprep.subr.bf16.mxu0 0
        %1207 = vmatpush1.bf16.msra.mxu0 0
        %1208 = vmatprep.subr.bf16.mxu0 0
        %1209 = vmatpush1.bf16.msra.mxu0 0
        %1210 = vmatprep.subr.bf16.mxu0 0
        %1211 = vmatpush1.bf16.msra.mxu0 0
        %1212 = vmatprep.subr.bf16.mxu0 0
        %1213 = vmatpush1.bf16.msra.mxu0 0
        %1214 = vmatprep.subr.bf16.mxu0 0
        %1215 = vmatpush1.bf16.msra.mxu0 0
        %1216 = vmatprep.subr.bf16.mxu0 0
        %1217 = vmatpush1.bf16.msra.mxu0 0
        %1218 = vmatprep.subr.bf16.mxu0 0
        %1219 = vmatpush1.bf16.msra.mxu0 0
        %1220 = vmatprep.mubr.bf16.mxu0 0
        %1221 = vmatmul.mubr.bf16.gmra.mrb[0].mxu0 %v986
        %v1222 = vpop.f32.mrb[0].mxu0
        %v1223 = vadd.f32 0.0, %v1222
        %v1224 = vpop.f32.mrb[0].mxu0
        %v1225 = vadd.f32 0.0, %v1224
        %v1226 = vpop.f32.mrb[0].mxu0
        %v1227 = vpop.f32.mrb[0].mxu0
        %1228 = vdwg.mxu0
        %v1229 = vadd.f32 %v982, %v1182
        %v1230 = vadd.f32 %v983, %v1184
        %v1231 = vadd.f32 %v984, %v1223
        %v1232 = vadd.f32 %v985, %v1225
        %v1233 = vxor.u32 %v1229, 2147483648
        %v1234 = vmul.f32 %v1233, 1.442695
        %v1235 = vpow.pop %v1234
        %v1236 = vadd.f32 %v1235, 1.0
        %v1237 = vrcp.pop %v1236
        %v1238 = vmul.f32 1.0, %v1237
        %v1239 = vxor.u32 %v1230, 2147483648
        %v1240 = vmul.f32 %v1239, 1.442695
        %v1241 = vpow.pop %v1240
        %v1242 = vadd.f32 %v1241, 1.0
        %v1243 = vrcp.pop %v1242
        %v1244 = vmul.f32 1.0, %v1243
        %v1245 = vtanh.pop %v1231
        %v1246 = vxor.u32 %v1232, 2147483648
        %v1247 = vmul.f32 %v1246, 1.442695
        %v1248 = vpow.pop %v1247
        %v1249 = vadd.f32 %v1248, 1.0
        %v1250 = vrcp.pop %v1249
        %v1251 = vmul.f32 1.0, %v1250
        %v1252 = vmul.f32 %v1244, %v970
        %v1253 = vmul.f32 %v1238, %v1245
        %v1254 = vadd.f32 %v1252, %v1253
        %v1255 = vtanh.pop %v1254
        %v1256 = vmul.f32 %v1251, %v1255
        %v1257 = vstv %s975
        %vm1258 = vcmp.gt.s32.totalorder %v968, %v1257
        %v1259 = vsel %vm1258, %v1256, 0.0
        %v1260 = vpack.c.bf16 %v1259, %v1259
        %s1261 = smul.addr %s977, 4
        %s1262 = scalar_lea.vmem %s329, %s1261 [#allocation5]
        %1263 = vst [vmem:[%s1262] sm:$0xf] %v1260
        %v1264 = vsel %vm1258, %v1256, %v969
        %v1265 = vsel %vm1258, %v1254, %v970
        %s1266 = sadd.s32 %s22, 1
        %s1267 = sadd.s32 %s971, 1
        %s1268 = smul.u32 %s1267, 2
        %s1269 = ssub.s32 7, %s1268
        %s1270 = smul.u32 %s22, %s1269
        %s1271 = sadd.s32 %s1267, %s1270
        %s1272 = smul.u32 %s1266, 8
        %s1273 = sshra.s32 %s1272, 3
        %s1274 = sand.u32 %s1272, 7
        %s1275 = smul.u32 %s1273, 4
        %s1276 = smul.addr %s1275, 8
        %s1277 = scalar_lea.vmem [#allocation4], %s1276
        %v1278 = vld [vmem:[%s1277] sm:$0xff]
        %v1279 = vld [vmem:[%s1277 + $0x8] sm:$0xff]
        %v1280 = vld [vmem:[%s1277 + $0x10] sm:$0xff]
        %v1281 = vld [vmem:[%s1277 + $0x18] sm:$0xff]
        %v1282 = vpack.c.bf16 %v1264, %v1264
        %1283 = vmatprep.subr.bf16.mxu0 %v1084
        %1284 = vmatpush1.bf16.msra.mxu0 %v1083
        %1285 = vmatprep.subr.bf16.mxu0 %v1088
        %1286 = vmatpush1.bf16.msra.mxu0 %v1087
        %1287 = vmatprep.subr.bf16.mxu0 %v1092
        %1288 = vmatpush1.bf16.msra.mxu0 %v1091
        %1289 = vmatprep.subr.bf16.mxu0 %v1096
        %1290 = vmatpush1.bf16.msra.mxu0 %v1095
        %1291 = vmatprep.subr.bf16.mxu0 %v1100
        %1292 = vmatpush1.bf16.msra.mxu0 %v1099
        %1293 = vmatprep.subr.bf16.mxu0 %v1104
        %1294 = vmatpush1.bf16.msra.mxu0 %v1103
        %1295 = vmatprep.subr.bf16.mxu0 %v1108
        %1296 = vmatpush1.bf16.msra.mxu0 %v1107
        %1297 = vmatprep.subr.bf16.mxu0 %v1112
        %1298 = vmatpush1.bf16.msra.mxu0 %v1111
        %1299 = vmatprep.subr.bf16.mxu0 0
        %1300 = vmatpush1.bf16.msra.mxu0 0
        %1301 = vmatprep.subr.bf16.mxu0 0
        %1302 = vmatpush1.bf16.msra.mxu0 0
        %1303 = vmatprep.subr.bf16.mxu0 0
        %1304 = vmatpush1.bf16.msra.mxu0 0
        %1305 = vmatprep.subr.bf16.mxu0 0
        %1306 = vmatpush1.bf16.msra.mxu0 0
        %1307 = vmatprep.subr.bf16.mxu0 0
        %1308 = vmatpush1.bf16.msra.mxu0 0
        %1309 = vmatprep.subr.bf16.mxu0 0
        %1310 = vmatpush1.bf16.msra.mxu0 0
        %1311 = vmatprep.subr.bf16.mxu0 0
        %1312 = vmatpush1.bf16.msra.mxu0 0
        %1313 = vmatprep.subr.bf16.mxu0 0
        %1314 = vmatpush1.bf16.msra.mxu0 0
        %1315 = vmatprep.mubr.bf16.mxu0 0
        %1316 = vmatmul.mubr.bf16.gmra.mrb[0].mxu0 %v1282
        %v1317 = vpop.f32.mrb[0].mxu0
        %v1318 = vadd.f32 0.0, %v1317
        %v1319 = vpop.f32.mrb[0].mxu0
        %v1320 = vadd.f32 0.0, %v1319
        %v1321 = vpop.f32.mrb[0].mxu0
        %v1322 = vpop.f32.mrb[0].mxu0
        %1323 = vdwg.mxu0
        %1324 = vmatprep.subr.bf16.mxu0 %v1086
        %1325 = vmatpush1.bf16.msra.mxu0 %v1085
        %1326 = vmatprep.subr.bf16.mxu0 %v1090
        %1327 = vmatpush1.bf16.msra.mxu0 %v1089
        %1328 = vmatprep.subr.bf16.mxu0 %v1094
        %1329 = vmatpush1.bf16.msra.mxu0 %v1093
        %1330 = vmatprep.subr.bf16.mxu0 %v1098
        %1331 = vmatpush1.bf16.msra.mxu0 %v1097
        %1332 = vmatprep.subr.bf16.mxu0 %v1102
        %1333 = vmatpush1.bf16.msra.mxu0 %v1101
        %1334 = vmatprep.subr.bf16.mxu0 %v1106
        %1335 = vmatpush1.bf16.msra.mxu0 %v1105
        %1336 = vmatprep.subr.bf16.mxu0 %v1110
        %1337 = vmatpush1.bf16.msra.mxu0 %v1109
        %1338 = vmatprep.subr.bf16.mxu0 %v1114
        %1339 = vmatpush1.bf16.msra.mxu0 %v1113
        %1340 = vmatprep.subr.bf16.mxu0 0
        %1341 = vmatpush1.bf16.msra.mxu0 0
        %1342 = vmatprep.subr.bf16.mxu0 0
        %1343 = vmatpush1.bf16.msra.mxu0 0
        %1344 = vmatprep.subr.bf16.mxu0 0
        %1345 = vmatpush1.bf16.msra.mxu0 0
        %1346 = vmatprep.subr.bf16.mxu0 0
        %1347 = vmatpush1.bf16.msra.mxu0 0
        %1348 = vmatprep.subr.bf16.mxu0 0
        %1349 = vmatpush1.bf16.msra.mxu0 0
        %1350 = vmatprep.subr.bf16.mxu0 0
        %1351 = vmatpush1.bf16.msra.mxu0 0
        %1352 = vmatprep.subr.bf16.mxu0 0
        %1353 = vmatpush1.bf16.msra.mxu0 0
        %1354 = vmatprep.subr.bf16.mxu0 0
        %1355 = vmatpush1.bf16.msra.mxu0 0
        %1356 = vmatprep.mubr.bf16.mxu0 0
        %1357 = vmatmul.mubr.bf16.gmra.mrb[0].mxu0 %v1282
        %v1358 = vpop.f32.mrb[0].mxu0
        %v1359 = vadd.f32 0.0, %v1358
        %v1360 = vpop.f32.mrb[0].mxu0
        %v1361 = vadd.f32 0.0, %v1360
        %v1362 = vpop.f32.mrb[0].mxu0
        %v1363 = vpop.f32.mrb[0].mxu0
        %1364 = vdwg.mxu0
        %v1365 = vadd.f32 %v1278, %v1318
        %v1366 = vadd.f32 %v1279, %v1320
        %v1367 = vadd.f32 %v1280, %v1359
        %v1368 = vadd.f32 %v1281, %v1361
        %v1369 = vxor.u32 %v1365, 2147483648
        %v1370 = vmul.f32 %v1369, 1.442695
        %v1371 = vpow.pop %v1370
        %v1372 = vadd.f32 %v1371, 1.0
        %v1373 = vrcp.pop %v1372
        %v1374 = vmul.f32 1.0, %v1373
        %v1375 = vxor.u32 %v1366, 2147483648
        %v1376 = vmul.f32 %v1375, 1.442695
        %v1377 = vpow.pop %v1376
        %v1378 = vadd.f32 %v1377, 1.0
        %v1379 = vrcp.pop %v1378
        %v1380 = vmul.f32 1.0, %v1379
        %v1381 = vtanh.pop %v1367
        %v1382 = vxor.u32 %v1368, 2147483648
        %v1383 = vmul.f32 %v1382, 1.442695
        %v1384 = vpow.pop %v1383
        %v1385 = vadd.f32 %v1384, 1.0
        %v1386 = vrcp.pop %v1385
        %v1387 = vmul.f32 1.0, %v1386
        %v1388 = vmul.f32 %v1380, %v1265
        %v1389 = vmul.f32 %v1374, %v1381
        %v1390 = vadd.f32 %v1388, %v1389
        %v1391 = vtanh.pop %v1390
        %v1392 = vmul.f32 %v1387, %v1391
        %v1393 = vstv %s1271
        %vm1394 = vcmp.gt.s32.totalorder %v968, %v1393
        %v1395 = vsel %vm1394, %v1392, 0.0
        %v1396 = vpack.c.bf16 %v1395, %v1395
        %s1397 = smul.addr %s1273, 4
        %s1398 = scalar_lea.vmem %s329, %s1397 [#allocation5]
        %1399 = vst [vmem:[%s1398] sm:$0xf] %v1396
        %v1400 = vsel %vm1394, %v1392, %v1264
        %v1401 = vsel %vm1394, %v1390, %v1265
        %s1402 = ssub.s32 2, %s22
        %s1403 = sadd.s32 %s971, 2
        %s1404 = smul.u32 %s1403, 2
        %s1405 = ssub.s32 7, %s1404
        %s1406 = smul.u32 %s22, %s1405
        %s1407 = sadd.s32 %s1403, %s1406
        %s1408 = smul.u32 %s1402, 8
        %s1409 = sshra.s32 %s1408, 3
        %s1410 = sand.u32 %s1408, 7
        %s1411 = smul.u32 %s1409, 4
        %s1412 = smul.addr %s1411, 8
        %s1413 = scalar_lea.vmem [#allocation4], %s1412
        %v1414 = vld [vmem:[%s1413] sm:$0xff]
        %v1415 = vld [vmem:[%s1413 + $0x8] sm:$0xff]
        %v1416 = vld [vmem:[%s1413 + $0x10] sm:$0xff]
        %v1417 = vld [vmem:[%s1413 + $0x18] sm:$0xff]
        %v1418 = vpack.c.bf16 %v1400, %v1400
        %1419 = vmatprep.subr.bf16.mxu0 %v1084
        %1420 = vmatpush1.bf16.msra.mxu0 %v1083
        %1421 = vmatprep.subr.bf16.mxu0 %v1088
        %1422 = vmatpush1.bf16.msra.mxu0 %v1087
        %1423 = vmatprep.subr.bf16.mxu0 %v1092
        %1424 = vmatpush1.bf16.msra.mxu0 %v1091
        %1425 = vmatprep.subr.bf16.mxu0 %v1096
        %1426 = vmatpush1.bf16.msra.mxu0 %v1095
        %1427 = vmatprep.subr.bf16.mxu0 %v1100
        %1428 = vmatpush1.bf16.msra.mxu0 %v1099
        %1429 = vmatprep.subr.bf16.mxu0 %v1104
        %1430 = vmatpush1.bf16.msra.mxu0 %v1103
        %1431 = vmatprep.subr.bf16.mxu0 %v1108
        %1432 = vmatpush1.bf16.msra.mxu0 %v1107
        %1433 = vmatprep.subr.bf16.mxu0 %v1112
        %1434 = vmatpush1.bf16.msra.mxu0 %v1111
        %1435 = vmatprep.subr.bf16.mxu0 0
        %1436 = vmatpush1.bf16.msra.mxu0 0
        %1437 = vmatprep.subr.bf16.mxu0 0
        %1438 = vmatpush1.bf16.msra.mxu0 0
        %1439 = vmatprep.subr.bf16.mxu0 0
        %1440 = vmatpush1.bf16.msra.mxu0 0
        %1441 = vmatprep.subr.bf16.mxu0 0
        %1442 = vmatpush1.bf16.msra.mxu0 0
        %1443 = vmatprep.subr.bf16.mxu0 0
        %1444 = vmatpush1.bf16.msra.mxu0 0
        %1445 = vmatprep.subr.bf16.mxu0 0
        %1446 = vmatpush1.bf16.msra.mxu0 0
        %1447 = vmatprep.subr.bf16.mxu0 0
        %1448 = vmatpush1.bf16.msra.mxu0 0
        %1449 = vmatprep.subr.bf16.mxu0 0
        %1450 = vmatpush1.bf16.msra.mxu0 0
        %1451 = vmatprep.mubr.bf16.mxu0 0
        %1452 = vmatmul.mubr.bf16.gmra.mrb[0].mxu0 %v1418
        %v1453 = vpop.f32.mrb[0].mxu0
        %v1454 = vadd.f32 0.0, %v1453
        %v1455 = vpop.f32.mrb[0].mxu0
        %v1456 = vadd.f32 0.0, %v1455
        %v1457 = vpop.f32.mrb[0].mxu0
        %v1458 = vpop.f32.mrb[0].mxu0
        %1459 = vdwg.mxu0
        %1460 = vmatprep.subr.bf16.mxu0 %v1086
        %1461 = vmatpush1.bf16.msra.mxu0 %v1085
        %1462 = vmatprep.subr.bf16.mxu0 %v1090
        %1463 = vmatpush1.bf16.msra.mxu0 %v1089
        %1464 = vmatprep.subr.bf16.mxu0 %v1094
        %1465 = vmatpush1.bf16.msra.mxu0 %v1093
        %1466 = vmatprep.subr.bf16.mxu0 %v1098
        %1467 = vmatpush1.bf16.msra.mxu0 %v1097
        %1468 = vmatprep.subr.bf16.mxu0 %v1102
        %1469 = vmatpush1.bf16.msra.mxu0 %v1101
        %1470 = vmatprep.subr.bf16.mxu0 %v1106
        %1471 = vmatpush1.bf16.msra.mxu0 %v1105
        %1472 = vmatprep.subr.bf16.mxu0 %v1110
        %1473 = vmatpush1.bf16.msra.mxu0 %v1109
        %1474 = vmatprep.subr.bf16.mxu0 %v1114
        %1475 = vmatpush1.bf16.msra.mxu0 %v1113
        %1476 = vmatprep.subr.bf16.mxu0 0
        %1477 = vmatpush1.bf16.msra.mxu0 0
        %1478 = vmatprep.subr.bf16.mxu0 0
        %1479 = vmatpush1.bf16.msra.mxu0 0
        %1480 = vmatprep.subr.bf16.mxu0 0
        %1481 = vmatpush1.bf16.msra.mxu0 0
        %1482 = vmatprep.subr.bf16.mxu0 0
        %1483 = vmatpush1.bf16.msra.mxu0 0
        %1484 = vmatprep.subr.bf16.mxu0 0
        %1485 = vmatpush1.bf16.msra.mxu0 0
        %1486 = vmatprep.subr.bf16.mxu0 0
        %1487 = vmatpush1.bf16.msra.mxu0 0
        %1488 = vmatprep.subr.bf16.mxu0 0
        %1489 = vmatpush1.bf16.msra.mxu0 0
        %1490 = vmatprep.subr.bf16.mxu0 0
        %1491 = vmatpush1.bf16.msra.mxu0 0
        %1492 = vmatprep.mubr.bf16.mxu0 0
        %1493 = vmatmul.mubr.bf16.gmra.mrb[0].mxu0 %v1418
        %v1494 = vpop.f32.mrb[0].mxu0
        %v1495 = vadd.f32 0.0, %v1494
        %v1496 = vpop.f32.mrb[0].mxu0
        %v1497 = vadd.f32 0.0, %v1496
        %v1498 = vpop.f32.mrb[0].mxu0
        %v1499 = vpop.f32.mrb[0].mxu0
        %1500 = vdwg.mxu0
        %v1501 = vadd.f32 %v1414, %v1454
        %v1502 = vadd.f32 %v1415, %v1456
        %v1503 = vadd.f32 %v1416, %v1495
        %v1504 = vadd.f32 %v1417, %v1497
        %v1505 = vxor.u32 %v1501, 2147483648
        %v1506 = vmul.f32 %v1505, 1.442695
        %v1507 = vpow.pop %v1506
        %v1508 = vadd.f32 %v1507, 1.0
        %v1509 = vrcp.pop %v1508
        %v1510 = vmul.f32 1.0, %v1509
        %v1511 = vxor.u32 %v1502, 2147483648
        %v1512 = vmul.f32 %v1511, 1.442695
        %v1513 = vpow.pop %v1512
        %v1514 = vadd.f32 %v1513, 1.0
        %v1515 = vrcp.pop %v1514
        %v1516 = vmul.f32 1.0, %v1515
        %v1517 = vtanh.pop %v1503
        %v1518 = vxor.u32 %v1504, 2147483648
        %v1519 = vmul.f32 %v1518, 1.442695
        %v1520 = vpow.pop %v1519
        %v1521 = vadd.f32 %v1520, 1.0
        %v1522 = vrcp.pop %v1521
        %v1523 = vmul.f32 1.0, %v1522
        %v1524 = vmul.f32 %v1516, %v1401
        %v1525 = vmul.f32 %v1510, %v1517
        %v1526 = vadd.f32 %v1524, %v1525
        %v1527 = vtanh.pop %v1526
        %v1528 = vmul.f32 %v1523, %v1527
        %v1529 = vstv %s1407
        %vm1530 = vcmp.gt.s32.totalorder %v968, %v1529
        %v1531 = vsel %vm1530, %v1528, 0.0
        %v1532 = vpack.c.bf16 %v1531, %v1531
        %s1533 = smul.addr %s1409, 4
        %s1534 = scalar_lea.vmem %s329, %s1533 [#allocation5]
        %1535 = vst [vmem:[%s1534] sm:$0xf] %v1532
        %v1536 = vsel %vm1530, %v1528, %v1400
        %v1537 = vsel %vm1530, %v1526, %v1401
        %s1538 = smul.u32 %s22, 4294967293
        %s1539 = sadd.s32 %s1538, 3
        %s1540 = sadd.s32 %s971, 3
        %s1541 = smul.u32 %s1540, 2
        %s1542 = ssub.s32 7, %s1541
        %s1543 = smul.u32 %s22, %s1542
        %s1544 = sadd.s32 %s1540, %s1543
        %s1545 = smul.u32 %s1539, 8
        %s1546 = sshra.s32 %s1545, 3
        %s1547 = sand.u32 %s1545, 7
        %s1548 = smul.u32 %s1546, 4
        %s1549 = smul.addr %s1548, 8
        %s1550 = scalar_lea.vmem [#allocation4], %s1549
        %v1551 = vld [vmem:[%s1550] sm:$0xff]
        %v1552 = vld [vmem:[%s1550 + $0x8] sm:$0xff]
        %v1553 = vld [vmem:[%s1550 + $0x10] sm:$0xff]
        %v1554 = vld [vmem:[%s1550 + $0x18] sm:$0xff]
        %v1555 = vpack.c.bf16 %v1536, %v1536
        %1556 = vmatprep.subr.bf16.mxu0 %v1084
        %1557 = vmatpush1.bf16.msra.mxu0 %v1083
        %1558 = vmatprep.subr.bf16.mxu0 %v1088
        %1559 = vmatpush1.bf16.msra.mxu0 %v1087
        %1560 = vmatprep.subr.bf16.mxu0 %v1092
        %1561 = vmatpush1.bf16.msra.mxu0 %v1091
        %1562 = vmatprep.subr.bf16.mxu0 %v1096
        %1563 = vmatpush1.bf16.msra.mxu0 %v1095
        %1564 = vmatprep.subr.bf16.mxu0 %v1100
        %1565 = vmatpush1.bf16.msra.mxu0 %v1099
        %1566 = vmatprep.subr.bf16.mxu0 %v1104
        %1567 = vmatpush1.bf16.msra.mxu0 %v1103
        %1568 = vmatprep.subr.bf16.mxu0 %v1108
        %1569 = vmatpush1.bf16.msra.mxu0 %v1107
        %1570 = vmatprep.subr.bf16.mxu0 %v1112
        %1571 = vmatpush1.bf16.msra.mxu0 %v1111
        %1572 = vmatprep.subr.bf16.mxu0 0
        %1573 = vmatpush1.bf16.msra.mxu0 0
        %1574 = vmatprep.subr.bf16.mxu0 0
        %1575 = vmatpush1.bf16.msra.mxu0 0
        %1576 = vmatprep.subr.bf16.mxu0 0
        %1577 = vmatpush1.bf16.msra.mxu0 0
        %1578 = vmatprep.subr.bf16.mxu0 0
        %1579 = vmatpush1.bf16.msra.mxu0 0
        %1580 = vmatprep.subr.bf16.mxu0 0
        %1581 = vmatpush1.bf16.msra.mxu0 0
        %1582 = vmatprep.subr.bf16.mxu0 0
        %1583 = vmatpush1.bf16.msra.mxu0 0
        %1584 = vmatprep.subr.bf16.mxu0 0
        %1585 = vmatpush1.bf16.msra.mxu0 0
        %1586 = vmatprep.subr.bf16.mxu0 0
        %1587 = vmatpush1.bf16.msra.mxu0 0
        %1588 = vmatprep.mubr.bf16.mxu0 0
        %1589 = vmatmul.mubr.bf16.gmra.mrb[0].mxu0 %v1555
        %v1590 = vpop.f32.mrb[0].mxu0
        %v1591 = vadd.f32 0.0, %v1590
        %v1592 = vpop.f32.mrb[0].mxu0
        %v1593 = vadd.f32 0.0, %v1592
        %v1594 = vpop.f32.mrb[0].mxu0
        %v1595 = vpop.f32.mrb[0].mxu0
        %1596 = vdwg.mxu0
        %1597 = vmatprep.subr.bf16.mxu0 %v1086
        %1598 = vmatpush1.bf16.msra.mxu0 %v1085
        %1599 = vmatprep.subr.bf16.mxu0 %v1090
        %1600 = vmatpush1.bf16.msra.mxu0 %v1089
        %1601 = vmatprep.subr.bf16.mxu0 %v1094
        %1602 = vmatpush1.bf16.msra.mxu0 %v1093
        %1603 = vmatprep.subr.bf16.mxu0 %v1098
        %1604 = vmatpush1.bf16.msra.mxu0 %v1097
        %1605 = vmatprep.subr.bf16.mxu0 %v1102
        %1606 = vmatpush1.bf16.msra.mxu0 %v1101
        %1607 = vmatprep.subr.bf16.mxu0 %v1106
        %1608 = vmatpush1.bf16.msra.mxu0 %v1105
        %1609 = vmatprep.subr.bf16.mxu0 %v1110
        %1610 = vmatpush1.bf16.msra.mxu0 %v1109
        %1611 = vmatprep.subr.bf16.mxu0 %v1114
        %1612 = vmatpush1.bf16.msra.mxu0 %v1113
        %1613 = vmatprep.subr.bf16.mxu0 0
        %1614 = vmatpush1.bf16.msra.mxu0 0
        %1615 = vmatprep.subr.bf16.mxu0 0
        %1616 = vmatpush1.bf16.msra.mxu0 0
        %1617 = vmatprep.subr.bf16.mxu0 0
        %1618 = vmatpush1.bf16.msra.mxu0 0
        %1619 = vmatprep.subr.bf16.mxu0 0
        %1620 = vmatpush1.bf16.msra.mxu0 0
        %1621 = vmatprep.subr.bf16.mxu0 0
        %1622 = vmatpush1.bf16.msra.mxu0 0
        %1623 = vmatprep.subr.bf16.mxu0 0
        %1624 = vmatpush1.bf16.msra.mxu0 0
        %1625 = vmatprep.subr.bf16.mxu0 0
        %1626 = vmatpush1.bf16.msra.mxu0 0
        %1627 = vmatprep.subr.bf16.mxu0 0
        %1628 = vmatpush1.bf16.msra.mxu0 0
        %1629 = vmatprep.mubr.bf16.mxu0 0
        %1630 = vmatmul.mubr.bf16.gmra.mrb[0].mxu0 %v1555
        %v1631 = vpop.f32.mrb[0].mxu0
        %v1632 = vadd.f32 0.0, %v1631
        %v1633 = vpop.f32.mrb[0].mxu0
        %v1634 = vadd.f32 0.0, %v1633
        %v1635 = vpop.f32.mrb[0].mxu0
        %v1636 = vpop.f32.mrb[0].mxu0
        %1637 = vdwg.mxu0
        %v1638 = vadd.f32 %v1551, %v1591
        %v1639 = vadd.f32 %v1552, %v1593
        %v1640 = vadd.f32 %v1553, %v1632
        %v1641 = vadd.f32 %v1554, %v1634
        %v1642 = vxor.u32 %v1638, 2147483648
        %v1643 = vmul.f32 %v1642, 1.442695
        %v1644 = vpow.pop %v1643
        %v1645 = vadd.f32 %v1644, 1.0
        %v1646 = vrcp.pop %v1645
        %v1647 = vmul.f32 1.0, %v1646
        %v1648 = vxor.u32 %v1639, 2147483648
        %v1649 = vmul.f32 %v1648, 1.442695
        %v1650 = vpow.pop %v1649
        %v1651 = vadd.f32 %v1650, 1.0
        %v1652 = vrcp.pop %v1651
        %v1653 = vmul.f32 1.0, %v1652
        %v1654 = vtanh.pop %v1640
        %v1655 = vxor.u32 %v1641, 2147483648
        %v1656 = vmul.f32 %v1655, 1.442695
        %v1657 = vpow.pop %v1656
        %v1658 = vadd.f32 %v1657, 1.0
        %v1659 = vrcp.pop %v1658
        %v1660 = vmul.f32 1.0, %v1659
        %v1661 = vmul.f32 %v1653, %v1537
        %v1662 = vmul.f32 %v1647, %v1654
        %v1663 = vadd.f32 %v1661, %v1662
        %v1664 = vtanh.pop %v1663
        %v1665 = vmul.f32 %v1660, %v1664
        %v1666 = vstv %s1544
        %vm1667 = vcmp.gt.s32.totalorder %v968, %v1666
        %v1668 = vsel %vm1667, %v1665, 0.0
        %v1669 = vpack.c.bf16 %v1668, %v1668
        %s1670 = smul.addr %s1546, 4
        %s1671 = scalar_lea.vmem %s329, %s1670 [#allocation5]
        %1672 = vst [vmem:[%s1671] sm:$0xf] %v1669
        %v1673 = vsel %vm1667, %v1665, %v1536
        %v1674 = vsel %vm1667, %v1663, %v1537
        %1675 = vst [vmem:[#allocation2] sm:$0xff] %v1673
        %1676 = vst [vmem:[#allocation3] sm:$0xff] %v1674
        %p1677 = scmp.eq.s32.totalorder %s23, 1
        // Predicated region
        $region45: #{_device_forward.3} parent=39 // pred_check
          %p1678 = pneg %p1677
        $region46: #{_device_forward.3} parent=39 // pred_check_branch
          %1680 = sbr.rel (%p1678) target = $region48
        $region47: #{_device_forward.3} parent=39 // pred_region
          %1681 = vst [vmem:[%s373] sm:$0xff] %v1673
        $region48: #{_device_forward.3} parent=39 // pred_fallthru
          _
        %s1682 = sand.u32 %s181, 1
        %s1683 = sand.u32 %s181, 1
        %s1684 = smul.addr %s1683, 16
        %s1685 = scalar_lea.vmem [#allocation5], %s1684
        %p1686 = scmp.lt.s32.totalorder %s22, 1
        %s1687 = scalar_select %p1686, %s22, 1
        %s1688 = smul.addr %s1687, 8
        %s1689 = scalar_lea.vmem %s6, %s1688
        // Predicated region
        $region49: #{_device_forward.3} parent=39 // pred_check
          %p1690 = pneg %p191
        $region50: #{_device_forward.3} parent=39 // pred_check_branch
          %1692 = sbr.rel (%p1690) target = $region52
        $region51: #{_device_forward.3} parent=39 // pred_region
          %s1693 = smul.u32 %s23, 2
          %s1694 = ssub.s32 1, %s1693
          %s1695 = smul.u32 %s22, %s1694
          %s1696 = sadd.s32 %s23, %s1695
          %s1697 = smul.u32 4, %s1696
          %s1698 = smul.addr %s1697, 2
          %s1699 = sadd.s32 %s22, %s1698
          %s1700 = smul.addr %s1699, 4
          %s1701 = scalar_lea.vmem %s5, %s1700
          // Predicated region
          $region53: #{_device_forward.3} parent=51 // pred_check
            _
          $region54: #{_device_forward.3} parent=51 // pred_check_branch
            %1703 = sbr.rel (0) target = $region56
          $region55: #{_device_forward.3} parent=51 // pred_region
            // Predicated region
            $region57: #{_device_forward.3} parent=55 // pred_check
              _
            $region58: #{_device_forward.3} parent=55 // pred_check_branch
              %1705 = sbr.rel target = $region60
            $region59: #{_device_forward.3} parent=55 // pred_region
              // Predicated region
              $region72: #{_device_forward.3} parent=59 // pred_check
                _
              $region73: #{_device_forward.3} parent=59 // pred_check_branch
                %1726 = sbr.rel (0) target = $region75
              $region74: #{_device_forward.3} parent=59 // pred_region
                loop: start=0, step=1, limit=1
                $region76: #{_device_forward.3} parent=74 // loop_pre_header
                  _
                $region77: #{_device_forward.3} parent=74 // loop_header
                  %s1728 = sphi 0, %s1732
                  %p1729 = scmp.ge.s32.totalorder %s1728, 1
                  %s1733 = sphi %s1685, %s1685
                  %s1734 = sphi %s1701, %s1701
                $region78: #{_device_forward.3} parent=74 // loop_header_branch
                  %1731 = sbr.rel (%p1729) target = $region82
                $region79: #{_device_forward.3} parent=74 // loop_body
                  _
                $region80: #{_device_forward.3} parent=74 // loop_footer
                  %s1732 = sadd.s32 1, %s1728
                $region81: #{_device_forward.3} parent=74 // loop_footer_branch
                  %1727 = sbr.rel target = $region77
                $region82: #{_device_forward.3} parent=74 // loop_exit
                  _
                loop: start=0, step=1, limit=1
                $region83: #{_device_forward.3} parent=74 // loop_pre_header
                  _
                $region84: #{_device_forward.3} parent=74 // loop_header
                  %s1737 = sphi 0, %s1741
                  %p1738 = scmp.ge.s32.totalorder %s1737, 1
                  %s1742 = sphi %s1685, %s1685
                  %s1743 = sphi %s1701, %s1701
                $region85: #{_device_forward.3} parent=74 // loop_header_branch
                  %1740 = sbr.rel (%p1738) target = $region89
                $region86: #{_device_forward.3} parent=74 // loop_body
                  %v1744 = vld [vmem:[%s1742] sm:$0xf]
                  %1745 = vst [vmem:[%s1743] sm:$0xf] %v1744
                  %v1746 = vld [vmem:[%s1742 + $0x4] sm:$0xf]
                  %1747 = vst [vmem:[%s1743 + $0x8] sm:$0xf] %v1746
                  %v1748 = vld [vmem:[%s1742 + $0x8] sm:$0xf]
                  %1749 = vst [vmem:[%s1743 + $0x10] sm:$0xf] %v1748
                  %v1750 = vld [vmem:[%s1742 + $0xc] sm:$0xf]
                  %1751 = vst [vmem:[%s1743 + $0x18] sm:$0xf] %v1750
                $region87: #{_device_forward.3} parent=74 // loop_footer
                  %s1741 = sadd.s32 1, %s1737
                $region88: #{_device_forward.3} parent=74 // loop_footer_branch
                  %1736 = sbr.rel target = $region84
                $region89: #{_device_forward.3} parent=74 // loop_exit
                  _
              $region75: #{_device_forward.3} parent=59 // pred_fallthru
                _
            $region60: #{_device_forward.3} parent=55 // pred_fallthru
              _
            // Predicated region
            $region61: #{_device_forward.3} parent=55 // pred_check
              _
            $region62: #{_device_forward.3} parent=55 // pred_check_branch
              %1707 = sbr.rel (0) target = $region64
            $region63: #{_device_forward.3} parent=55 // pred_region
              loop: start=0, step=1, limit=1
              $region65: #{_device_forward.3} parent=63 // loop_pre_header
                _
              $region66: #{_device_forward.3} parent=63 // loop_header
                %s1710 = sphi 0, %s1714
                %p1711 = scmp.ge.s32.totalorder %s1710, 1
                %s1715 = sphi %s1685, %s1685
                %s1716 = sphi %s1701, %s1701
              $region67: #{_device_forward.3} parent=63 // loop_header_branch
                %1713 = sbr.rel (%p1711) target = $region71
              $region68: #{_device_forward.3} parent=63 // loop_body
                %v1717 = vld [vmem:[%s1715] sm:$0xf]
                %1718 = vst [vmem:[%s1716] sm:$0xf] %v1717
                %v1719 = vld [vmem:[%s1715 + $0x4] sm:$0xf]
                %1720 = vst [vmem:[%s1716 + $0x8] sm:$0xf] %v1719
                %v1721 = vld [vmem:[%s1715 + $0x8] sm:$0xf]
                %1722 = vst [vmem:[%s1716 + $0x10] sm:$0xf] %v1721
                %v1723 = vld [vmem:[%s1715 + $0xc] sm:$0xf]
                %1724 = vst [vmem:[%s1716 + $0x18] sm:$0xf] %v1723
              $region69: #{_device_forward.3} parent=63 // loop_footer
                %s1714 = sadd.s32 1, %s1710
              $region70: #{_device_forward.3} parent=63 // loop_footer_branch
                %1709 = sbr.rel target = $region66
              $region71: #{_device_forward.3} parent=63 // loop_exit
                _
            $region64: #{_device_forward.3} parent=55 // pred_fallthru
              _
          $region56: #{_device_forward.3} parent=51 // pred_fallthru
            _
          %1752 = vnop
        $region52: #{_device_forward.3} parent=39 // pred_fallthru
          _
        // Predicated region
        $region90: #{_device_forward.3} parent=39 // pred_check
          %p1753 = pneg %p217
        $region91: #{_device_forward.3} parent=39 // pred_check_branch
          %1755 = sbr.rel (%p1753) target = $region93
        $region92: #{_device_forward.3} parent=39 // pred_region
          _
        $region93: #{_device_forward.3} parent=39 // pred_fallthru
          _
      $region40: #{_device_forward.3} parent=5 // pred_fallthru
        _
      %p1756 = scmp.le.s32.totalorder 2, %s13
      // Predicated region
      $region94: #{_device_forward.3} parent=5 // pred_check
        %p1757 = pneg %p1756
      $region95: #{_device_forward.3} parent=5 // pred_check_branch
        %1759 = sbr.rel (%p1757) target = $region97
      $region96: #{_device_forward.3} parent=5 // pred_region
        %s1760 = ssub.s32 %s13, 2
        // Predicated region
        $region98: #{_device_forward.3} parent=96 // pred_check
          %p1761 = pneg %p197
        $region99: #{_device_forward.3} parent=96 // pred_check_branch
          %1763 = sbr.rel (%p1761) target = $region101
        $region100: #{_device_forward.3} parent=96 // pred_region
          %s1764 = sand.u32 %s182, 1
          %s1765 = sand.u32 %s182, 1
          %s1766 = smul.addr %s1765, 16
          %s1767 = scalar_lea.vmem [#allocation5], %s1766
        $region101: #{_device_forward.3} parent=96 // pred_fallthru
          _
        // Predicated region
        $region102: #{_device_forward.3} parent=96 // pred_check
          %p1768 = pneg %p223
        $region103: #{_device_forward.3} parent=96 // pred_check_branch
          %1770 = sbr.rel (%p1768) target = $region105
        $region104: #{_device_forward.3} parent=96 // pred_region
          %p1771 = scmp.lt.s32.totalorder %s24, 1
          %s1772 = scalar_select %p1771, %s24, 1
          %s1773 = smul.addr %s1772, 8
          %s1774 = scalar_lea.vmem %s6, %s1773
        $region105: #{_device_forward.3} parent=96 // pred_fallthru
          _
      $region97: #{_device_forward.3} parent=5 // pred_fallthru
        _
    $region6: #{_device_forward.3} parent=1 // loop_footer
      %s17 = sadd.s32 1, %s13
    $region7: #{_device_forward.3} parent=1 // loop_footer_branch
      %12 = sbr.rel target = $region3
    $region8: #{_device_forward.3} parent=1 // loop_exit
      _

</llo_original>
